<compile_context>
chip_gen: v7x
topology: tpu7x:2x2x1
jax: 0.10.0
libtpu: 0.0.40
codegen_flags: <defaults>
</compile_context>

<pallas_src>
import functools

import jax
import jax.numpy as jnp
import numpy as np
from jax.experimental import pallas as pl
from jax.experimental.pallas import tpu as pltpu


# ----------------------------------------------------------------------------- kernel
def daily_model_kernel(
    x_ref,       # (B*T, D0)   flattened batch-major input
    w1_ref,      # (D0, D1)    linear.weight^T with bn_lin scale folded in
    b1_ref,      # (1, D1)     linear bias with bn_lin folded in
    wih_ref,     # (D1, 3*D2)  gru.weight_ih_l0^T (gate order r,z,n)
    bih_ref,     # (1, 3*D2)
    whh_ref,     # (D2, 3*D2)  gru.weight_hh_l0^T
    bhh_ref,     # (1, 3*D2)
    bng_s_ref,   # (1, D2)     bn_gru folded scale
    bng_b_ref,   # (1, D2)     bn_gru folded shift
    wa_ref,      # (D2, D2)    linear_a.weight^T with bn_lin_a scale folded in
    ba_ref,      # (1, D2)     linear_a bias with bn_lin_a folded in
    wout_ref,    # (1, D2)     linear_out.weight (row vector)
    bout_ref,    # (1, 1)
    o_ref,       # (B, 1)      output
):
    B = o_ref.shape[0]
    BT, _ = x_ref.shape
    T = BT // B
    D2 = whh_ref.shape[0]

    # ---- hoisted, time-invariant input path: two (B*T)-row matmuls ----------
    # linear + folded bn_lin, (dropout = id), relu
    act = jnp.maximum(
        jnp.dot(x_ref[...], w1_ref[...], preferred_element_type=jnp.float32)
        + b1_ref[...],
        0.0,
    )                                                              # (B*T, D1)
    # GRU input-to-hidden projection for all timesteps at once
    gi_all = (
        jnp.dot(act, wih_ref[...], preferred_element_type=jnp.float32)
        + bih_ref[...]
    ).reshape(B, T, 3 * D2)                                        # (B, T, 3*D2)

    whh = whh_ref[...]
    bhh = bhh_ref[...]

    # ---- recurrence: only h @ Whh + gates remain on the critical path -------
    h = jnp.zeros((B, D2), jnp.float32)
    for t in range(T):  # statically unrolled (T is compile-time constant)
        gi = gi_all[:, t, :]                                        # (B, 3*D2)
        gh = jnp.dot(h, whh, preferred_element_type=jnp.float32) + bhh
        r = jax.nn.sigmoid(gi[:, 0:D2] + gh[:, 0:D2])
        z = jax.nn.sigmoid(gi[:, D2:2 * D2] + gh[:, D2:2 * D2])
        n = jnp.tanh(gi[:, 2 * D2:3 * D2] + r * gh[:, 2 * D2:3 * D2])
        h = (1.0 - z) * n + z * h

    # bn_gru (eval affine) on the last hidden state
    h = h * bng_s_ref[...] + bng_b_ref[...]

    # attention branch: linear_a (+ folded bn_lin_a) -> (dropout=id) -> tanh
    # -> softmax over the feature axis
    a = jnp.dot(h, wa_ref[...], preferred_element_type=jnp.float32) + ba_ref[...]
    a = jnp.tanh(a)
    a = a - jnp.max(a, axis=1, keepdims=True)
    e = jnp.exp(a)
    a = e * pl.reciprocal(jnp.sum(e, axis=1, keepdims=True), approx=True)

    # gate hidden state and project to scalar via VPU mul + lane reduce
    gated = h * a
    y = jnp.sum(gated * wout_ref[...], axis=1, keepdims=True) + bout_ref[...]
    o_ref[...] = y


# ----------------------------------------------------------------------------- wrapper
def daily_model_forward(x, params):
    """x: (B, T, dim_0) float32  ->  (B,) float32 (matches out.view(-1))."""
    B, T, D0 = x.shape
    x_flat = x.reshape(B * T, D0)  # contiguous, free (no transpose)

    args = (
        x_flat,
        params["w1_t_f"], params["b1_f"],
        params["wih_t"], params["bih"], params["whh_t"], params["bhh"],
        params["bng_s"], params["bng_b"],
        params["wa_t_f"], params["ba_f"],
        params["wout_row"], params["bout"],
    )
    y = pl.pallas_call(
        daily_model_kernel,
        out_shape=jax.ShapeDtypeStruct((B, 1), jnp.float32),
        in_specs=[pl.BlockSpec(memory_space=pltpu.MemorySpace.VMEM)] * len(args),
        out_specs=pl.BlockSpec(memory_space=pltpu.MemorySpace.VMEM),
    )(*args)
    return y.reshape(-1)


# ----------------------------------------------------------------------------- params
def init_params(key, dim_0, dim_1, dim_2, eps=1e-5):
    ks = jax.random.split(key, 8)

    def uni(k, shape, fan_in):
        bound = 1.0 / np.sqrt(fan_in)
        return jax.random.uniform(k, shape, jnp.float32, -bound, bound)

    # nn.Linear / nn.GRU style uniform init (deterministic via PRNGKey)
    w1 = uni(ks[0], (dim_1, dim_0), dim_0)
    b1 = uni(ks[1], (dim_1,), dim_0)
    wih = uni(ks[2], (3 * dim_2, dim_1), dim_2)
    whh = uni(ks[3], (3 * dim_2, dim_2), dim_2)
    bih = uni(ks[4], (3 * dim_2,), dim_2)
    bhh = uni(ks[5], (3 * dim_2,), dim_2)
    wa = uni(ks[6], (dim_2, dim_2), dim_2)
    ba = jnp.zeros((dim_2,), jnp.float32)
    wout = uni(ks[7], (1, dim_2), dim_2)
    bout = jnp.zeros((1,), jnp.float32)

    # BatchNorm1d fresh-module stats: gamma=1, beta=0, running_mean=0, running_var=1
    def bn_fold(dim):
        gamma = jnp.ones((dim,), jnp.float32)
        beta = jnp.zeros((dim,), jnp.float32)
        mean = jnp.zeros((dim,), jnp.float32)
        var = jnp.ones((dim,), jnp.float32)
        scale = gamma / jnp.sqrt(var + eps)
        shift = beta - mean * scale
        return scale, shift

    bn1_s, bn1_b = bn_fold(dim_1)
    bng_s, bng_b = bn_fold(dim_2)
    bna_s, bna_b = bn_fold(dim_2)

    # Fold eval-mode BN affines into adjacent weights (offline, zero runtime cost):
    #   relu(((x@w1^T + b1) * s1) + t1)  ==  relu(x @ (w1^T * s1) + (b1*s1 + t1))
    w1_t_f = w1.T * bn1_s[None, :]
    b1_f = b1 * bn1_s + bn1_b
    #   ((h@wa^T + ba) * sa) + ta  ==  h @ (wa^T * sa) + (ba*sa + ta)
    wa_t_f = wa.T * bna_s[None, :]
    ba_f = ba * bna_s + bna_b

    return {
        # raw (for the pure-JAX reference)
        "w1": w1, "b1": b1, "wih": wih, "whh": whh, "wa": wa, "wout": wout,
        "ba_raw": ba, "bout_raw": bout,
        "bn1_s_raw": bn1_s, "bn1_b_raw": bn1_b,
        "bng_s_raw": bng_s, "bng_b_raw": bng_b,
        "bna_s_raw": bna_s, "bna_b_raw": bna_b,
        "bih_raw": bih, "bhh_raw": bhh,
        # kernel-ready (transposed / folded / 2-D broadcastable)
        "w1_t_f": w1_t_f, "b1_f": b1_f.reshape(1, -1),
        "wih_t": wih.T, "bih": bih.reshape(1, -1),
        "whh_t": whh.T, "bhh": bhh.reshape(1, -1),
        "bng_s": bng_s.reshape(1, -1), "bng_b": bng_b.reshape(1, -1),
        "wa_t_f": wa_t_f, "ba_f": ba_f.reshape(1, -1),
        "wout_row": wout,                     # (1, dim_2) row vector
        "bout": bout.reshape(1, 1),
    }


# ----------------------------------------------------------------------------- reference
def reference_forward(x, p):
    B, T, D0 = x.shape
    D2 = p["whh"].shape[1]
    out = x @ p["w1"].T + p["b1"]                       # (B, T, D1)
    out = out * p["bn1_s_raw"] + p["bn1_b_raw"]
    out = jnp.maximum(out, 0.0)
    h = jnp.zeros((B, D2), jnp.float32)
    for t in range(T):
        xt = out[:, t, :]
        gi = xt @ p["wih"].T + p["bih_raw"]
        gh = h @ p["whh"].T + p["bhh_raw"]
        r = jax.nn.sigmoid(gi[:, :D2] + gh[:, :D2])
        z = jax.nn.sigmoid(gi[:, D2:2 * D2] + gh[:, D2:2 * D2])
        n = jnp.tanh(gi[:, 2 * D2:] + r * gh[:, 2 * D2:])
        h = (1.0 - z) * n + z * h
    h = h * p["bng_s_raw"] + p["bng_b_raw"]
    a = h @ p["wa"].T + p["ba_raw"]
    a = a * p["bna_s_raw"] + p["bna_b_raw"]
    a = jnp.tanh(a)
    a = jax.nn.softmax(a, axis=1)
    y = (h * a) @ p["wout"].T + p["bout_raw"]
    return y.reshape(-1)


# ----------------------------------------------------------------------------- main
if __name__ == "__main__":
    B, T = 8, 6
    dim_0, dim_1, dim_2 = 32, 128, 128

    key = jax.random.PRNGKey(0)
    k_x, k_p = jax.random.split(key)
    x = jax.random.normal(k_x, (B, T, dim_0), jnp.float32)
    params = init_params(k_p, dim_0, dim_1, dim_2)

    fwd = jax.jit(functools.partial(daily_model_forward))
    y = fwd(x, params)
    y = jax.block_until_ready(y)

    y_ref = reference_forward(x, params)
    assert y.shape == (B,), y.shape
    np.testing.assert_allclose(np.asarray(y), np.asarray(y_ref), rtol=2e-2, atol=2e-3)

    print("KERNEL_OK")
</pallas_src>

<mosaic_0001>
module attributes {stable_mosaic.version = 11 : i64} {
  func.func @daily_model_kernel(%arg0: memref<48x32xf32, #tpu.memory_space<vmem>>, %arg1: memref<32x128xf32, #tpu.memory_space<vmem>>, %arg2: memref<1x128xf32, #tpu.memory_space<vmem>>, %arg3: memref<128x384xf32, #tpu.memory_space<vmem>>, %arg4: memref<1x384xf32, #tpu.memory_space<vmem>>, %arg5: memref<128x384xf32, #tpu.memory_space<vmem>>, %arg6: memref<1x384xf32, #tpu.memory_space<vmem>>, %arg7: memref<1x128xf32, #tpu.memory_space<vmem>>, %arg8: memref<1x128xf32, #tpu.memory_space<vmem>>, %arg9: memref<128x128xf32, #tpu.memory_space<vmem>>, %arg10: memref<1x128xf32, #tpu.memory_space<vmem>>, %arg11: memref<1x128xf32, #tpu.memory_space<vmem>>, %arg12: memref<1x1xf32, #tpu.memory_space<vmem>>, %arg13: memref<8x1xf32, #tpu.memory_space<vmem>>) attributes {dimension_semantics = [], scalar_prefetch = 0 : i64, scratch_operands = 0 : i64, tpu.core_type = #tpu.core_type<tc>} {
    %c0 = arith.constant 0 : index
    %c0_0 = arith.constant 0 : index
    %0 = vector.load %arg0[%c0, %c0_0] : memref<48x32xf32, #tpu.memory_space<vmem>>, vector<48x32xf32>
    %c0_1 = arith.constant 0 : index
    %c0_2 = arith.constant 0 : index
    %1 = vector.load %arg1[%c0_1, %c0_2] : memref<32x128xf32, #tpu.memory_space<vmem>>, vector<32x128xf32>
    %cst = arith.constant dense<0.000000e+00> : vector<48x128xf32>
    %2 = tpu.matmul %0, %1, %cst {dimension_numbers = #tpu.dot_dimension_numbers<[1], [0], [0], [1], [0, 0, 1, 1], [], []>} : vector<48x32xf32>, vector<32x128xf32>, vector<48x128xf32> -> vector<48x128xf32>
    %c0_3 = arith.constant 0 : index
    %c0_4 = arith.constant 0 : index
    %3 = vector.load %arg2[%c0_3, %c0_4] : memref<1x128xf32, #tpu.memory_space<vmem>>, vector<1x128xf32>
    %4 = vector.broadcast %3 : vector<1x128xf32> to vector<48x128xf32>
    %5 = arith.addf %2, %4 : vector<48x128xf32>
    %cst_5 = arith.constant 0.000000e+00 : f32
    %6 = vector.broadcast %cst_5 : f32 to vector<48x128xf32>
    %7 = arith.maximumf %5, %6 : vector<48x128xf32>
    %c0_6 = arith.constant 0 : index
    %c0_7 = arith.constant 0 : index
    %8 = vector.load %arg3[%c0_6, %c0_7] : memref<128x384xf32, #tpu.memory_space<vmem>>, vector<128x384xf32>
    %cst_8 = arith.constant dense<0.000000e+00> : vector<48x384xf32>
    %9 = tpu.matmul %7, %8, %cst_8 {dimension_numbers = #tpu.dot_dimension_numbers<[1], [0], [0], [1], [0, 0, 1, 1], [], []>} : vector<48x128xf32>, vector<128x384xf32>, vector<48x384xf32> -> vector<48x384xf32>
    %c0_9 = arith.constant 0 : index
    %c0_10 = arith.constant 0 : index
    %10 = vector.load %arg4[%c0_9, %c0_10] : memref<1x384xf32, #tpu.memory_space<vmem>>, vector<1x384xf32>
    %11 = vector.broadcast %10 : vector<1x384xf32> to vector<48x384xf32>
    %12 = arith.addf %9, %11 : vector<48x384xf32>
    %13 = vector.shape_cast %12 : vector<48x384xf32> to vector<8x6x384xf32>
    %c0_11 = arith.constant 0 : index
    %c0_12 = arith.constant 0 : index
    %14 = vector.load %arg5[%c0_11, %c0_12] : memref<128x384xf32, #tpu.memory_space<vmem>>, vector<128x384xf32>
    %c0_13 = arith.constant 0 : index
    %c0_14 = arith.constant 0 : index
    %15 = vector.load %arg6[%c0_13, %c0_14] : memref<1x384xf32, #tpu.memory_space<vmem>>, vector<1x384xf32>
    %cst_15 = arith.constant 0.000000e+00 : f32
    %16 = vector.broadcast %cst_15 : f32 to vector<8x128xf32>
    %17 = vector.extract_strided_slice %13 {offsets = [0, 0, 0], sizes = [8, 1, 384], strides = [1, 1, 1]} : vector<8x6x384xf32> to vector<8x1x384xf32>
    %18 = vector.shape_cast %17 : vector<8x1x384xf32> to vector<8x384xf32>
    %cst_16 = arith.constant dense<0.000000e+00> : vector<8x384xf32>
    %19 = tpu.matmul %16, %14, %cst_16 {dimension_numbers = #tpu.dot_dimension_numbers<[1], [0], [0], [1], [0, 0, 1, 1], [], []>} : vector<8x128xf32>, vector<128x384xf32>, vector<8x384xf32> -> vector<8x384xf32>
    %20 = vector.broadcast %15 : vector<1x384xf32> to vector<8x384xf32>
    %21 = arith.addf %19, %20 : vector<8x384xf32>
    %22 = vector.extract_strided_slice %18 {offsets = [0, 0], sizes = [8, 128], strides = [1, 1]} : vector<8x384xf32> to vector<8x128xf32>
    %23 = vector.extract_strided_slice %21 {offsets = [0, 0], sizes = [8, 128], strides = [1, 1]} : vector<8x384xf32> to vector<8x128xf32>
    %24 = arith.addf %22, %23 : vector<8x128xf32>
    %25 = arith.negf %24 : vector<8x128xf32>
    %26 = math.exp %25 : vector<8x128xf32>
    %cst_17 = arith.constant 1.000000e+00 : f32
    %27 = vector.broadcast %cst_17 : f32 to vector<8x128xf32>
    %28 = arith.addf %27, %26 : vector<8x128xf32>
    %29 = arith.divf %27, %28 : vector<8x128xf32>
    %30 = vector.extract_strided_slice %18 {offsets = [0, 128], sizes = [8, 128], strides = [1, 1]} : vector<8x384xf32> to vector<8x128xf32>
    %31 = vector.extract_strided_slice %21 {offsets = [0, 128], sizes = [8, 128], strides = [1, 1]} : vector<8x384xf32> to vector<8x128xf32>
    %32 = arith.addf %30, %31 : vector<8x128xf32>
    %33 = arith.negf %32 : vector<8x128xf32>
    %34 = math.exp %33 : vector<8x128xf32>
    %cst_18 = arith.constant 1.000000e+00 : f32
    %35 = vector.broadcast %cst_18 : f32 to vector<8x128xf32>
    %36 = arith.addf %35, %34 : vector<8x128xf32>
    %37 = arith.divf %35, %36 : vector<8x128xf32>
    %38 = vector.extract_strided_slice %18 {offsets = [0, 256], sizes = [8, 128], strides = [1, 1]} : vector<8x384xf32> to vector<8x128xf32>
    %39 = vector.extract_strided_slice %21 {offsets = [0, 256], sizes = [8, 128], strides = [1, 1]} : vector<8x384xf32> to vector<8x128xf32>
    %40 = arith.mulf %29, %39 : vector<8x128xf32>
    %41 = arith.addf %38, %40 : vector<8x128xf32>
    %42 = math.tanh %41 : vector<8x128xf32>
    %cst_19 = arith.constant 1.000000e+00 : f32
    %43 = vector.broadcast %cst_19 : f32 to vector<8x128xf32>
    %44 = arith.subf %43, %37 : vector<8x128xf32>
    %45 = arith.mulf %44, %42 : vector<8x128xf32>
    %46 = arith.mulf %37, %16 : vector<8x128xf32>
    %47 = arith.addf %45, %46 : vector<8x128xf32>
    %48 = vector.extract_strided_slice %13 {offsets = [0, 1, 0], sizes = [8, 1, 384], strides = [1, 1, 1]} : vector<8x6x384xf32> to vector<8x1x384xf32>
    %49 = vector.shape_cast %48 : vector<8x1x384xf32> to vector<8x384xf32>
    %cst_20 = arith.constant dense<0.000000e+00> : vector<8x384xf32>
    %50 = tpu.matmul %47, %14, %cst_20 {dimension_numbers = #tpu.dot_dimension_numbers<[1], [0], [0], [1], [0, 0, 1, 1], [], []>} : vector<8x128xf32>, vector<128x384xf32>, vector<8x384xf32> -> vector<8x384xf32>
    %51 = vector.broadcast %15 : vector<1x384xf32> to vector<8x384xf32>
    %52 = arith.addf %50, %51 : vector<8x384xf32>
    %53 = vector.extract_strided_slice %49 {offsets = [0, 0], sizes = [8, 128], strides = [1, 1]} : vector<8x384xf32> to vector<8x128xf32>
    %54 = vector.extract_strided_slice %52 {offsets = [0, 0], sizes = [8, 128], strides = [1, 1]} : vector<8x384xf32> to vector<8x128xf32>
    %55 = arith.addf %53, %54 : vector<8x128xf32>
    %56 = arith.negf %55 : vector<8x128xf32>
    %57 = math.exp %56 : vector<8x128xf32>
    %cst_21 = arith.constant 1.000000e+00 : f32
    %58 = vector.broadcast %cst_21 : f32 to vector<8x128xf32>
    %59 = arith.addf %58, %57 : vector<8x128xf32>
    %60 = arith.divf %58, %59 : vector<8x128xf32>
    %61 = vector.extract_strided_slice %49 {offsets = [0, 128], sizes = [8, 128], strides = [1, 1]} : vector<8x384xf32> to vector<8x128xf32>
    %62 = vector.extract_strided_slice %52 {offsets = [0, 128], sizes = [8, 128], strides = [1, 1]} : vector<8x384xf32> to vector<8x128xf32>
    %63 = arith.addf %61, %62 : vector<8x128xf32>
    %64 = arith.negf %63 : vector<8x128xf32>
    %65 = math.exp %64 : vector<8x128xf32>
    %cst_22 = arith.constant 1.000000e+00 : f32
    %66 = vector.broadcast %cst_22 : f32 to vector<8x128xf32>
    %67 = arith.addf %66, %65 : vector<8x128xf32>
    %68 = arith.divf %66, %67 : vector<8x128xf32>
    %69 = vector.extract_strided_slice %49 {offsets = [0, 256], sizes = [8, 128], strides = [1, 1]} : vector<8x384xf32> to vector<8x128xf32>
    %70 = vector.extract_strided_slice %52 {offsets = [0, 256], sizes = [8, 128], strides = [1, 1]} : vector<8x384xf32> to vector<8x128xf32>
    %71 = arith.mulf %60, %70 : vector<8x128xf32>
    %72 = arith.addf %69, %71 : vector<8x128xf32>
    %73 = math.tanh %72 : vector<8x128xf32>
    %cst_23 = arith.constant 1.000000e+00 : f32
    %74 = vector.broadcast %cst_23 : f32 to vector<8x128xf32>
    %75 = arith.subf %74, %68 : vector<8x128xf32>
    %76 = arith.mulf %75, %73 : vector<8x128xf32>
    %77 = arith.mulf %68, %47 : vector<8x128xf32>
    %78 = arith.addf %76, %77 : vector<8x128xf32>
    %79 = vector.extract_strided_slice %13 {offsets = [0, 2, 0], sizes = [8, 1, 384], strides = [1, 1, 1]} : vector<8x6x384xf32> to vector<8x1x384xf32>
    %80 = vector.shape_cast %79 : vector<8x1x384xf32> to vector<8x384xf32>
    %cst_24 = arith.constant dense<0.000000e+00> : vector<8x384xf32>
    %81 = tpu.matmul %78, %14, %cst_24 {dimension_numbers = #tpu.dot_dimension_numbers<[1], [0], [0], [1], [0, 0, 1, 1], [], []>} : vector<8x128xf32>, vector<128x384xf32>, vector<8x384xf32> -> vector<8x384xf32>
    %82 = vector.broadcast %15 : vector<1x384xf32> to vector<8x384xf32>
    %83 = arith.addf %81, %82 : vector<8x384xf32>
    %84 = vector.extract_strided_slice %80 {offsets = [0, 0], sizes = [8, 128], strides = [1, 1]} : vector<8x384xf32> to vector<8x128xf32>
    %85 = vector.extract_strided_slice %83 {offsets = [0, 0], sizes = [8, 128], strides = [1, 1]} : vector<8x384xf32> to vector<8x128xf32>
    %86 = arith.addf %84, %85 : vector<8x128xf32>
    %87 = arith.negf %86 : vector<8x128xf32>
    %88 = math.exp %87 : vector<8x128xf32>
    %cst_25 = arith.constant 1.000000e+00 : f32
    %89 = vector.broadcast %cst_25 : f32 to vector<8x128xf32>
    %90 = arith.addf %89, %88 : vector<8x128xf32>
    %91 = arith.divf %89, %90 : vector<8x128xf32>
    %92 = vector.extract_strided_slice %80 {offsets = [0, 128], sizes = [8, 128], strides = [1, 1]} : vector<8x384xf32> to vector<8x128xf32>
    %93 = vector.extract_strided_slice %83 {offsets = [0, 128], sizes = [8, 128], strides = [1, 1]} : vector<8x384xf32> to vector<8x128xf32>
    %94 = arith.addf %92, %93 : vector<8x128xf32>
    %95 = arith.negf %94 : vector<8x128xf32>
    %96 = math.exp %95 : vector<8x128xf32>
    %cst_26 = arith.constant 1.000000e+00 : f32
    %97 = vector.broadcast %cst_26 : f32 to vector<8x128xf32>
    %98 = arith.addf %97, %96 : vector<8x128xf32>
    %99 = arith.divf %97, %98 : vector<8x128xf32>
    %100 = vector.extract_strided_slice %80 {offsets = [0, 256], sizes = [8, 128], strides = [1, 1]} : vector<8x384xf32> to vector<8x128xf32>
    %101 = vector.extract_strided_slice %83 {offsets = [0, 256], sizes = [8, 128], strides = [1, 1]} : vector<8x384xf32> to vector<8x128xf32>
    %102 = arith.mulf %91, %101 : vector<8x128xf32>
    %103 = arith.addf %100, %102 : vector<8x128xf32>
    %104 = math.tanh %103 : vector<8x128xf32>
    %cst_27 = arith.constant 1.000000e+00 : f32
    %105 = vector.broadcast %cst_27 : f32 to vector<8x128xf32>
    %106 = arith.subf %105, %99 : vector<8x128xf32>
    %107 = arith.mulf %106, %104 : vector<8x128xf32>
    %108 = arith.mulf %99, %78 : vector<8x128xf32>
    %109 = arith.addf %107, %108 : vector<8x128xf32>
    %110 = vector.extract_strided_slice %13 {offsets = [0, 3, 0], sizes = [8, 1, 384], strides = [1, 1, 1]} : vector<8x6x384xf32> to vector<8x1x384xf32>
    %111 = vector.shape_cast %110 : vector<8x1x384xf32> to vector<8x384xf32>
    %cst_28 = arith.constant dense<0.000000e+00> : vector<8x384xf32>
    %112 = tpu.matmul %109, %14, %cst_28 {dimension_numbers = #tpu.dot_dimension_numbers<[1], [0], [0], [1], [0, 0, 1, 1], [], []>} : vector<8x128xf32>, vector<128x384xf32>, vector<8x384xf32> -> vector<8x384xf32>
    %113 = vector.broadcast %15 : vector<1x384xf32> to vector<8x384xf32>
    %114 = arith.addf %112, %113 : vector<8x384xf32>
    %115 = vector.extract_strided_slice %111 {offsets = [0, 0], sizes = [8, 128], strides = [1, 1]} : vector<8x384xf32> to vector<8x128xf32>
    %116 = vector.extract_strided_slice %114 {offsets = [0, 0], sizes = [8, 128], strides = [1, 1]} : vector<8x384xf32> to vector<8x128xf32>
    %117 = arith.addf %115, %116 : vector<8x128xf32>
    %118 = arith.negf %117 : vector<8x128xf32>
    %119 = math.exp %118 : vector<8x128xf32>
    %cst_29 = arith.constant 1.000000e+00 : f32
    %120 = vector.broadcast %cst_29 : f32 to vector<8x128xf32>
    %121 = arith.addf %120, %119 : vector<8x128xf32>
    %122 = arith.divf %120, %121 : vector<8x128xf32>
    %123 = vector.extract_strided_slice %111 {offsets = [0, 128], sizes = [8, 128], strides = [1, 1]} : vector<8x384xf32> to vector<8x128xf32>
    %124 = vector.extract_strided_slice %114 {offsets = [0, 128], sizes = [8, 128], strides = [1, 1]} : vector<8x384xf32> to vector<8x128xf32>
    %125 = arith.addf %123, %124 : vector<8x128xf32>
    %126 = arith.negf %125 : vector<8x128xf32>
    %127 = math.exp %126 : vector<8x128xf32>
    %cst_30 = arith.constant 1.000000e+00 : f32
    %128 = vector.broadcast %cst_30 : f32 to vector<8x128xf32>
    %129 = arith.addf %128, %127 : vector<8x128xf32>
    %130 = arith.divf %128, %129 : vector<8x128xf32>
    %131 = vector.extract_strided_slice %111 {offsets = [0, 256], sizes = [8, 128], strides = [1, 1]} : vector<8x384xf32> to vector<8x128xf32>
    %132 = vector.extract_strided_slice %114 {offsets = [0, 256], sizes = [8, 128], strides = [1, 1]} : vector<8x384xf32> to vector<8x128xf32>
    %133 = arith.mulf %122, %132 : vector<8x128xf32>
    %134 = arith.addf %131, %133 : vector<8x128xf32>
    %135 = math.tanh %134 : vector<8x128xf32>
    %cst_31 = arith.constant 1.000000e+00 : f32
    %136 = vector.broadcast %cst_31 : f32 to vector<8x128xf32>
    %137 = arith.subf %136, %130 : vector<8x128xf32>
    %138 = arith.mulf %137, %135 : vector<8x128xf32>
    %139 = arith.mulf %130, %109 : vector<8x128xf32>
    %140 = arith.addf %138, %139 : vector<8x128xf32>
    %141 = vector.extract_strided_slice %13 {offsets = [0, 4, 0], sizes = [8, 1, 384], strides = [1, 1, 1]} : vector<8x6x384xf32> to vector<8x1x384xf32>
    %142 = vector.shape_cast %141 : vector<8x1x384xf32> to vector<8x384xf32>
    %cst_32 = arith.constant dense<0.000000e+00> : vector<8x384xf32>
    %143 = tpu.matmul %140, %14, %cst_32 {dimension_numbers = #tpu.dot_dimension_numbers<[1], [0], [0], [1], [0, 0, 1, 1], [], []>} : vector<8x128xf32>, vector<128x384xf32>, vector<8x384xf32> -> vector<8x384xf32>
    %144 = vector.broadcast %15 : vector<1x384xf32> to vector<8x384xf32>
    %145 = arith.addf %143, %144 : vector<8x384xf32>
    %146 = vector.extract_strided_slice %142 {offsets = [0, 0], sizes = [8, 128], strides = [1, 1]} : vector<8x384xf32> to vector<8x128xf32>
    %147 = vector.extract_strided_slice %145 {offsets = [0, 0], sizes = [8, 128], strides = [1, 1]} : vector<8x384xf32> to vector<8x128xf32>
    %148 = arith.addf %146, %147 : vector<8x128xf32>
    %149 = arith.negf %148 : vector<8x128xf32>
    %150 = math.exp %149 : vector<8x128xf32>
    %cst_33 = arith.constant 1.000000e+00 : f32
    %151 = vector.broadcast %cst_33 : f32 to vector<8x128xf32>
    %152 = arith.addf %151, %150 : vector<8x128xf32>
    %153 = arith.divf %151, %152 : vector<8x128xf32>
    %154 = vector.extract_strided_slice %142 {offsets = [0, 128], sizes = [8, 128], strides = [1, 1]} : vector<8x384xf32> to vector<8x128xf32>
    %155 = vector.extract_strided_slice %145 {offsets = [0, 128], sizes = [8, 128], strides = [1, 1]} : vector<8x384xf32> to vector<8x128xf32>
    %156 = arith.addf %154, %155 : vector<8x128xf32>
    %157 = arith.negf %156 : vector<8x128xf32>
    %158 = math.exp %157 : vector<8x128xf32>
    %cst_34 = arith.constant 1.000000e+00 : f32
    %159 = vector.broadcast %cst_34 : f32 to vector<8x128xf32>
    %160 = arith.addf %159, %158 : vector<8x128xf32>
    %161 = arith.divf %159, %160 : vector<8x128xf32>
    %162 = vector.extract_strided_slice %142 {offsets = [0, 256], sizes = [8, 128], strides = [1, 1]} : vector<8x384xf32> to vector<8x128xf32>
    %163 = vector.extract_strided_slice %145 {offsets = [0, 256], sizes = [8, 128], strides = [1, 1]} : vector<8x384xf32> to vector<8x128xf32>
    %164 = arith.mulf %153, %163 : vector<8x128xf32>
    %165 = arith.addf %162, %164 : vector<8x128xf32>
    %166 = math.tanh %165 : vector<8x128xf32>
    %cst_35 = arith.constant 1.000000e+00 : f32
    %167 = vector.broadcast %cst_35 : f32 to vector<8x128xf32>
    %168 = arith.subf %167, %161 : vector<8x128xf32>
    %169 = arith.mulf %168, %166 : vector<8x128xf32>
    %170 = arith.mulf %161, %140 : vector<8x128xf32>
    %171 = arith.addf %169, %170 : vector<8x128xf32>
    %172 = vector.extract_strided_slice %13 {offsets = [0, 5, 0], sizes = [8, 1, 384], strides = [1, 1, 1]} : vector<8x6x384xf32> to vector<8x1x384xf32>
    %173 = vector.shape_cast %172 : vector<8x1x384xf32> to vector<8x384xf32>
    %cst_36 = arith.constant dense<0.000000e+00> : vector<8x384xf32>
    %174 = tpu.matmul %171, %14, %cst_36 {dimension_numbers = #tpu.dot_dimension_numbers<[1], [0], [0], [1], [0, 0, 1, 1], [], []>} : vector<8x128xf32>, vector<128x384xf32>, vector<8x384xf32> -> vector<8x384xf32>
    %175 = vector.broadcast %15 : vector<1x384xf32> to vector<8x384xf32>
    %176 = arith.addf %174, %175 : vector<8x384xf32>
    %177 = vector.extract_strided_slice %173 {offsets = [0, 0], sizes = [8, 128], strides = [1, 1]} : vector<8x384xf32> to vector<8x128xf32>
    %178 = vector.extract_strided_slice %176 {offsets = [0, 0], sizes = [8, 128], strides = [1, 1]} : vector<8x384xf32> to vector<8x128xf32>
    %179 = arith.addf %177, %178 : vector<8x128xf32>
    %180 = arith.negf %179 : vector<8x128xf32>
    %181 = math.exp %180 : vector<8x128xf32>
    %cst_37 = arith.constant 1.000000e+00 : f32
    %182 = vector.broadcast %cst_37 : f32 to vector<8x128xf32>
    %183 = arith.addf %182, %181 : vector<8x128xf32>
    %184 = arith.divf %182, %183 : vector<8x128xf32>
    %185 = vector.extract_strided_slice %173 {offsets = [0, 128], sizes = [8, 128], strides = [1, 1]} : vector<8x384xf32> to vector<8x128xf32>
    %186 = vector.extract_strided_slice %176 {offsets = [0, 128], sizes = [8, 128], strides = [1, 1]} : vector<8x384xf32> to vector<8x128xf32>
    %187 = arith.addf %185, %186 : vector<8x128xf32>
    %188 = arith.negf %187 : vector<8x128xf32>
    %189 = math.exp %188 : vector<8x128xf32>
    %cst_38 = arith.constant 1.000000e+00 : f32
    %190 = vector.broadcast %cst_38 : f32 to vector<8x128xf32>
    %191 = arith.addf %190, %189 : vector<8x128xf32>
    %192 = arith.divf %190, %191 : vector<8x128xf32>
    %193 = vector.extract_strided_slice %173 {offsets = [0, 256], sizes = [8, 128], strides = [1, 1]} : vector<8x384xf32> to vector<8x128xf32>
    %194 = vector.extract_strided_slice %176 {offsets = [0, 256], sizes = [8, 128], strides = [1, 1]} : vector<8x384xf32> to vector<8x128xf32>
    %195 = arith.mulf %184, %194 : vector<8x128xf32>
    %196 = arith.addf %193, %195 : vector<8x128xf32>
    %197 = math.tanh %196 : vector<8x128xf32>
    %cst_39 = arith.constant 1.000000e+00 : f32
    %198 = vector.broadcast %cst_39 : f32 to vector<8x128xf32>
    %199 = arith.subf %198, %192 : vector<8x128xf32>
    %200 = arith.mulf %199, %197 : vector<8x128xf32>
    %201 = arith.mulf %192, %171 : vector<8x128xf32>
    %202 = arith.addf %200, %201 : vector<8x128xf32>
    %c0_40 = arith.constant 0 : index
    %c0_41 = arith.constant 0 : index
    %203 = vector.load %arg7[%c0_40, %c0_41] : memref<1x128xf32, #tpu.memory_space<vmem>>, vector<1x128xf32>
    %204 = vector.broadcast %203 : vector<1x128xf32> to vector<8x128xf32>
    %205 = arith.mulf %202, %204 : vector<8x128xf32>
    %c0_42 = arith.constant 0 : index
    %c0_43 = arith.constant 0 : index
    %206 = vector.load %arg8[%c0_42, %c0_43] : memref<1x128xf32, #tpu.memory_space<vmem>>, vector<1x128xf32>
    %207 = vector.broadcast %206 : vector<1x128xf32> to vector<8x128xf32>
    %208 = arith.addf %205, %207 : vector<8x128xf32>
    %c0_44 = arith.constant 0 : index
    %c0_45 = arith.constant 0 : index
    %209 = vector.load %arg9[%c0_44, %c0_45] : memref<128x128xf32, #tpu.memory_space<vmem>>, vector<128x128xf32>
    %cst_46 = arith.constant dense<0.000000e+00> : vector<8x128xf32>
    %210 = tpu.matmul %208, %209, %cst_46 {dimension_numbers = #tpu.dot_dimension_numbers<[1], [0], [0], [1], [0, 0, 1, 1], [], []>} : vector<8x128xf32>, vector<128x128xf32>, vector<8x128xf32> -> vector<8x128xf32>
    %c0_47 = arith.constant 0 : index
    %c0_48 = arith.constant 0 : index
    %211 = vector.load %arg10[%c0_47, %c0_48] : memref<1x128xf32, #tpu.memory_space<vmem>>, vector<1x128xf32>
    %212 = vector.broadcast %211 : vector<1x128xf32> to vector<8x128xf32>
    %213 = arith.addf %210, %212 : vector<8x128xf32>
    %214 = math.tanh %213 : vector<8x128xf32>
    %cst_49 = arith.constant dense<0xFF800000> : vector<8xf32>
    %215 = vector.multi_reduction <maximumf>, %214, %cst_49 [1] : vector<8x128xf32> to vector<8xf32>
    %216 = vector.shape_cast %215 : vector<8xf32> to vector<8x1xf32>
    %217 = vector.broadcast %216 : vector<8x1xf32> to vector<8x128xf32>
    %218 = arith.subf %214, %217 : vector<8x128xf32>
    %219 = math.exp %218 : vector<8x128xf32>
    %cst_50 = arith.constant dense<0.000000e+00> : vector<8xf32>
    %220 = vector.multi_reduction <add>, %219, %cst_50 [1] : vector<8x128xf32> to vector<8xf32>
    %221 = vector.shape_cast %220 : vector<8xf32> to vector<8x1xf32>
    %222 = tpu.reciprocal %221 {approx = true} : vector<8x1xf32> -> vector<8x1xf32>
    %223 = vector.broadcast %222 : vector<8x1xf32> to vector<8x128xf32>
    %224 = arith.mulf %219, %223 : vector<8x128xf32>
    %225 = arith.mulf %208, %224 : vector<8x128xf32>
    %c0_51 = arith.constant 0 : index
    %c0_52 = arith.constant 0 : index
    %226 = vector.load %arg11[%c0_51, %c0_52] : memref<1x128xf32, #tpu.memory_space<vmem>>, vector<1x128xf32>
    %227 = vector.broadcast %226 : vector<1x128xf32> to vector<8x128xf32>
    %228 = arith.mulf %225, %227 : vector<8x128xf32>
    %cst_53 = arith.constant dense<0.000000e+00> : vector<8xf32>
    %229 = vector.multi_reduction <add>, %228, %cst_53 [1] : vector<8x128xf32> to vector<8xf32>
    %230 = vector.shape_cast %229 : vector<8xf32> to vector<8x1xf32>
    %c0_54 = arith.constant 0 : index
    %c0_55 = arith.constant 0 : index
    %231 = vector.load %arg12[%c0_54, %c0_55] : memref<1x1xf32, #tpu.memory_space<vmem>>, vector<1x1xf32>
    %232 = vector.broadcast %231 : vector<1x1xf32> to vector<8x1xf32>
    %233 = arith.addf %230, %232 : vector<8x1xf32>
    %c0_56 = arith.constant 0 : index
    %c0_57 = arith.constant 0 : index
    %234 = vector.load %arg13[%c0_56, %c0_57] : memref<8x1xf32, #tpu.memory_space<vmem>>, vector<8x1xf32>
    tpu.vector_store %arg13[%c0_56, %c0_57], %233 {strides = array<i32>} : memref<8x1xf32, #tpu.memory_space<vmem>>, vector<8x1xf32>,
    return
  }
}

</mosaic_0001>

<llo_original>
// kernel: daily_model_forward.1
$region0: #{daily_model_forward.1}
  #allocation0 [shape = 'u32[]', space=smem, size = 0x4, offset = 0x4, fixed_abs, tag = 'smem constant byte address 0x4 - core index']
  #allocation1 [shape = 'u32[144,128]{1,0:T(1,128)}', space=vmem, size = 0x12000, scoped, tag = 'internal scratch']
  #allocation2 [shape = 'f32[1,1]{1,0:T(1,128)S(1)}', space=vmem, size = 0x200, scoped, tag = 'scoped memory for daily_model_forward.1']
  %s0 = inlined_call_operand.vmem [shape: f32[48,32], index: 0, kind: input, shape index: {}]
  %s1 = inlined_call_operand.vmem [shape: f32[32,128], index: 1, kind: input, shape index: {}]
  %s2 = inlined_call_operand.vmem [shape: f32[1,128], index: 2, kind: input, shape index: {}]
  %s3 = inlined_call_operand.hbm [shape: f32[128,384], index: 3, kind: input, shape index: {}]
  %s4 = inlined_call_operand.vmem [shape: f32[1,384], index: 4, kind: input, shape index: {}]
  %s5 = inlined_call_operand.hbm [shape: f32[128,384], index: 5, kind: input, shape index: {}]
  %s6 = inlined_call_operand.vmem [shape: f32[1,384], index: 6, kind: input, shape index: {}]
  %s7 = inlined_call_operand.vmem [shape: f32[1,128], index: 7, kind: input, shape index: {}]
  %s8 = inlined_call_operand.vmem [shape: f32[1,128], index: 8, kind: input, shape index: {}]
  %s9 = inlined_call_operand.vmem [shape: f32[128,128], index: 9, kind: input, shape index: {}]
  %s10 = inlined_call_operand.vmem [shape: f32[1,128], index: 10, kind: input, shape index: {}]
  %s11 = inlined_call_operand.vmem [shape: f32[1,128], index: 11, kind: input, shape index: {}]
  %s12 = inlined_call_operand.<no memory space> [shape: f32[1,1], index: 12, kind: input, shape index: {}]
  %s13 = inlined_call_operand.vmem [shape: f32[8,1], index: 13, kind: output, shape index: {}]
  %s14 = sld [smem:[#allocation0]]
  $region70: #{daily_model_forward.1} parent=0
    _
  %s16 = ssub.s32 1, %s14
  %s17 = scalar_select 0, %s16, %s14
  %v18 = vstv %s12
  %19 = vst [vmem:[#allocation2] sm:$0x1] %v18
  $region1: #{daily_model_forward.1} parent=0
    #allocation3 [shape = 'u8[196608]{0}', space=vmem, size = 0x30000, scoped, tag = 'input window, operand 3, single buffered']
    #allocation4 [shape = 's32[1]{0}', space=sflag, size = 0x4, scoped, tag = 'scoped memory for daily_model_forward.1']
    #allocation5 [shape = 'u8[196608]{0}', space=vmem, size = 0x30000, scoped, tag = 'input window, operand 5, single buffered']
    #allocation6 [shape = 's32[1]{0}', space=sflag, size = 0x4, scoped, tag = 'scoped memory for daily_model_forward.1']
    %20 = vsyncpa [#allocation4], 0
    %21 = vsyncpa [#allocation6], 0
    // Predicated region
    $region2: #{daily_model_forward.1} parent=1 // pred_check
      _
    $region3: #{daily_model_forward.1} parent=1 // pred_check_branch
      %23 = sbr.rel (0) target = $region5
    $region4: #{daily_model_forward.1} parent=1 // pred_region
      _
    $region5: #{daily_model_forward.1} parent=1 // pred_fallthru
      _
    // Predicated region
    $region6: #{daily_model_forward.1} parent=1 // pred_check
      _
    $region7: #{daily_model_forward.1} parent=1 // pred_check_branch
      %25 = sbr.rel (0) target = $region9
    $region8: #{daily_model_forward.1} parent=1 // pred_region
      _
    $region9: #{daily_model_forward.1} parent=1 // pred_fallthru
      _
    // Predicated region
    $region10: #{daily_model_forward.1} parent=1 // pred_check
      _
    $region11: #{daily_model_forward.1} parent=1 // pred_check_branch
      %27 = sbr.rel (0) target = $region13
    $region12: #{daily_model_forward.1} parent=1 // pred_region
      _
    $region13: #{daily_model_forward.1} parent=1 // pred_fallthru
      _
    // Predicated region
    $region14: #{daily_model_forward.1} parent=1 // pred_check
      _
    $region15: #{daily_model_forward.1} parent=1 // pred_check_branch
      %29 = sbr.rel (0) target = $region17
    $region16: #{daily_model_forward.1} parent=1 // pred_region
      %s31 = ssub.s32 6144, 6144
      %32 = vsyncadd [#allocation4], %s31
      %s33 = sshll.u32 [#allocation3], 4
      %s34 = int_to_ptr.vmem [resolvable:$true] %s33
      %39 = dma.hbm_to_vmem [thread:$0]  %s3, 6144, %s34, [#allocation4], 384, 384, 24
    $region17: #{daily_model_forward.1} parent=1 // pred_fallthru
      _
    // Predicated region
    $region18: #{daily_model_forward.1} parent=1 // pred_check
      _
    $region19: #{daily_model_forward.1} parent=1 // pred_check_branch
      %41 = sbr.rel (0) target = $region21
    $region20: #{daily_model_forward.1} parent=1 // pred_region
      _
    $region21: #{daily_model_forward.1} parent=1 // pred_fallthru
      _
    // Predicated region
    $region22: #{daily_model_forward.1} parent=1 // pred_check
      _
    $region23: #{daily_model_forward.1} parent=1 // pred_check_branch
      %43 = sbr.rel (0) target = $region25
    $region24: #{daily_model_forward.1} parent=1 // pred_region
      %s45 = ssub.s32 6144, 6144
      %46 = vsyncadd [#allocation6], %s45
      %s47 = sshll.u32 [#allocation5], 4
      %s48 = int_to_ptr.vmem [resolvable:$true] %s47
      %53 = dma.hbm_to_vmem [thread:$0]  %s5, 6144, %s48, [#allocation6], 384, 384, 24
    $region25: #{daily_model_forward.1} parent=1 // pred_fallthru
      _
    // Predicated region
    $region26: #{daily_model_forward.1} parent=1 // pred_check
      _
    $region27: #{daily_model_forward.1} parent=1 // pred_check_branch
      %55 = sbr.rel (0) target = $region29
    $region28: #{daily_model_forward.1} parent=1 // pred_region
      _
    $region29: #{daily_model_forward.1} parent=1 // pred_fallthru
      _
    // Predicated region
    $region30: #{daily_model_forward.1} parent=1 // pred_check
      _
    $region31: #{daily_model_forward.1} parent=1 // pred_check_branch
      %57 = sbr.rel (0) target = $region33
    $region32: #{daily_model_forward.1} parent=1 // pred_region
      _
    $region33: #{daily_model_forward.1} parent=1 // pred_fallthru
      _
    // Predicated region
    $region34: #{daily_model_forward.1} parent=1 // pred_check
      _
    $region35: #{daily_model_forward.1} parent=1 // pred_check_branch
      %59 = sbr.rel (0) target = $region37
    $region36: #{daily_model_forward.1} parent=1 // pred_region
      _
    $region37: #{daily_model_forward.1} parent=1 // pred_fallthru
      _
    // Predicated region
    $region38: #{daily_model_forward.1} parent=1 // pred_check
      _
    $region39: #{daily_model_forward.1} parent=1 // pred_check_branch
      %61 = sbr.rel (0) target = $region41
    $region40: #{daily_model_forward.1} parent=1 // pred_region
      _
    $region41: #{daily_model_forward.1} parent=1 // pred_fallthru
      _
    // Predicated region
    $region42: #{daily_model_forward.1} parent=1 // pred_check
      _
    $region43: #{daily_model_forward.1} parent=1 // pred_check_branch
      %63 = sbr.rel (0) target = $region45
    $region44: #{daily_model_forward.1} parent=1 // pred_region
      _
    $region45: #{daily_model_forward.1} parent=1 // pred_fallthru
      _
    // Predicated region
    $region46: #{daily_model_forward.1} parent=1 // pred_check
      _
    $region47: #{daily_model_forward.1} parent=1 // pred_check_branch
      %65 = sbr.rel (0) target = $region49
    $region48: #{daily_model_forward.1} parent=1 // pred_region
      _
    $region49: #{daily_model_forward.1} parent=1 // pred_fallthru
      _
    // Predicated region
    $region50: #{daily_model_forward.1} parent=1 // pred_check
      _
    $region51: #{daily_model_forward.1} parent=1 // pred_check_branch
      %67 = sbr.rel (0) target = $region53
    $region52: #{daily_model_forward.1} parent=1 // pred_region
      _
    $region53: #{daily_model_forward.1} parent=1 // pred_fallthru
      _
    // Predicated region
    $region54: #{daily_model_forward.1} parent=1 // pred_check
      _
    $region55: #{daily_model_forward.1} parent=1 // pred_check_branch
      %69 = sbr.rel (0) target = $region57
    $region56: #{daily_model_forward.1} parent=1 // pred_region
      %70 = dma.done [#allocation4], 6144
    $region57: #{daily_model_forward.1} parent=1 // pred_fallthru
      _
    // Predicated region
    $region58: #{daily_model_forward.1} parent=1 // pred_check
      _
    $region59: #{daily_model_forward.1} parent=1 // pred_check_branch
      %72 = sbr.rel (0) target = $region61
    $region60: #{daily_model_forward.1} parent=1 // pred_region
      %73 = dma.done [#allocation6], 6144
    $region61: #{daily_model_forward.1} parent=1 // pred_fallthru
      _
    %v74 = vld [vmem:[%s0] sm:$0xff]
    %v75 = vld [vmem:[%s0 + $0x8] sm:$0xff]
    %v76 = vld [vmem:[%s0 + $0x10] sm:$0xff]
    %v77 = vld [vmem:[%s0 + $0x18] sm:$0xff]
    %v78 = vld [vmem:[%s0 + $0x20] sm:$0xff]
    %v79 = vld [vmem:[%s0 + $0x28] sm:$0xff]
    %v80 = vld [vmem:[%s1] sm:$0xff]
    %v81 = vld [vmem:[%s1 + $0x8] sm:$0xff]
    %v82 = vld [vmem:[%s1 + $0x10] sm:$0xff]
    %v83 = vld [vmem:[%s1 + $0x18] sm:$0xff]
    %v84 = vld [vmem:[%s2] sm:$0x1]
    %v86 = vlaneseq
    %v87 = vshrl.u32 %v86, 7
    %v88 = vsub.s32 0, %v87
    %v89 = vrot.slane %v84, %v88
    %vm91 = vcmask 261120
    %v93 = vsel %vm91, %v74, 0
    %v96 = vsel %vm91, %v75, 0
    %v99 = vsel %vm91, %v76, 0
    %v102 = vsel %vm91, %v77, 0
    %v105 = vsel %vm91, %v78, 0
    %v108 = vsel %vm91, %v79, 0
    %110 = vmatprep.subr.mxu0 0.0
    %111 = vmatpush1.msra.mxu0 %v80
    %112 = vmatprep.subr.mxu0 0.0
    %113 = vmatpush1.msra.mxu0 %v81
    %114 = vmatprep.subr.mxu0 0.0
    %115 = vmatpush1.msra.mxu0 %v82
    %116 = vmatprep.subr.mxu0 0.0
    %117 = vmatpush1.msra.mxu0 %v83
    %118 = vmatprep.subr.mxu0 0.0
    %119 = vmatpush1.msra.mxu0 0.0
    %120 = vmatprep.subr.mxu0 0.0
    %121 = vmatpush1.msra.mxu0 0.0
    %122 = vmatprep.subr.mxu0 0.0
    %123 = vmatpush1.msra.mxu0 0.0
    %124 = vmatprep.subr.mxu0 0.0
    %125 = vmatpush1.msra.mxu0 0.0
    %126 = vmatprep.subr.mxu0 0.0
    %127 = vmatpush1.msra.mxu0 0.0
    %128 = vmatprep.subr.mxu0 0.0
    %129 = vmatpush1.msra.mxu0 0.0
    %130 = vmatprep.subr.mxu0 0.0
    %131 = vmatpush1.msra.mxu0 0.0
    %132 = vmatprep.subr.mxu0 0.0
    %133 = vmatpush1.msra.mxu0 0.0
    %134 = vmatprep.subr.mxu0 0.0
    %135 = vmatpush1.msra.mxu0 0.0
    %136 = vmatprep.subr.mxu0 0.0
    %137 = vmatpush1.msra.mxu0 0.0
    %138 = vmatprep.subr.mxu0 0.0
    %139 = vmatpush1.msra.mxu0 0.0
    %140 = vmatprep.subr.mxu0 0.0
    %141 = vmatpush1.msra.mxu0 0.0
    %142 = vmatprep.subr.mxu0 0.0
    %143 = vmatpush1.msra.mxu0 0.0
    %144 = vmatprep.subr.mxu0 0.0
    %145 = vmatpush1.msra.mxu0 0.0
    %146 = vmatprep.subr.mxu0 0.0
    %147 = vmatpush1.msra.mxu0 0.0
    %148 = vmatprep.subr.mxu0 0.0
    %149 = vmatpush1.msra.mxu0 0.0
    %150 = vmatprep.subr.mxu0 0.0
    %151 = vmatpush1.msra.mxu0 0.0
    %152 = vmatprep.subr.mxu0 0.0
    %153 = vmatpush1.msra.mxu0 0.0
    %154 = vmatprep.subr.mxu0 0.0
    %155 = vmatpush1.msra.mxu0 0.0
    %156 = vmatprep.subr.mxu0 0.0
    %157 = vmatpush1.msra.mxu0 0.0
    %158 = vmatprep.subr.mxu0 0.0
    %159 = vmatpush1.msra.mxu0 0.0
    %160 = vmatprep.subr.mxu0 0.0
    %161 = vmatpush1.msra.mxu0 0.0
    %162 = vmatprep.subr.mxu0 0.0
    %163 = vmatpush1.msra.mxu0 0.0
    %164 = vmatprep.subr.mxu0 0.0
    %165 = vmatpush1.msra.mxu0 0.0
    %166 = vmatprep.subr.mxu0 0.0
    %167 = vmatpush1.msra.mxu0 0.0
    %168 = vmatprep.subr.mxu0 0.0
    %169 = vmatpush1.msra.mxu0 0.0
    %170 = vmatprep.subr.mxu0 0.0
    %171 = vmatpush1.msra.mxu0 0.0
    %172 = vmatprep.subr.mxu0 0.0
    %173 = vmatpush1.msra.mxu0 0.0
    %174 = vmatprep.mubr.f32.mxu0 0.0
    %175 = vmatmul.mubr.f32.gmra.mrb[0].mxu0 %v93
    %v176 = vpop.f32.mrb[0].mxu0
    %v177 = vadd.f32 %v89, %v176
    %v178 = vpop.f32.mrb[0].mxu0
    %179 = vmatprep.mubr.f32.mxu0 0.0
    %180 = vmatmul.mubr.f32.gmra.mrb[0].mxu0 %v96
    %v181 = vpop.f32.mrb[0].mxu0
    %v182 = vadd.f32 %v89, %v181
    %v183 = vpop.f32.mrb[0].mxu0
    %184 = vmatprep.mubr.f32.mxu0 0.0
    %185 = vmatmul.mubr.f32.gmra.mrb[0].mxu0 %v99
    %v186 = vpop.f32.mrb[0].mxu0
    %v187 = vadd.f32 %v89, %v186
    %v188 = vpop.f32.mrb[0].mxu0
    %189 = vmatprep.mubr.f32.mxu0 0.0
    %190 = vmatmul.mubr.f32.gmra.mrb[0].mxu0 %v102
    %v191 = vpop.f32.mrb[0].mxu0
    %v192 = vadd.f32 %v89, %v191
    %v193 = vpop.f32.mrb[0].mxu0
    %194 = vmatprep.mubr.f32.mxu0 0.0
    %195 = vmatmul.mubr.f32.gmra.mrb[0].mxu0 %v105
    %v196 = vpop.f32.mrb[0].mxu0
    %v197 = vadd.f32 %v89, %v196
    %v198 = vpop.f32.mrb[0].mxu0
    %199 = vmatprep.mubr.f32.mxu0 0.0
    %200 = vmatmul.mubr.f32.gmra.mrb[0].mxu0 %v108
    %v201 = vpop.f32.mrb[0].mxu0
    %v202 = vadd.f32 %v89, %v201
    %v203 = vpop.f32.mrb[0].mxu0
    %204 = vdwg.mxu0
    %v205 = vmax.f32 %v177, 0.0
    %v206 = vmax.f32 %v182, 0.0
    %v207 = vmax.f32 %v187, 0.0
    %v208 = vmax.f32 %v192, 0.0
    %v209 = vmax.f32 %v197, 0.0
    %v210 = vmax.f32 %v202, 0.0
    %v211 = vld [vmem:[#allocation3] sm:$0xff]
    %v212 = vld [vmem:[#allocation3 + $0x8] sm:$0xff]
    %v213 = vld [vmem:[#allocation3 + $0x10] sm:$0xff]
    %v214 = vld [vmem:[#allocation3 + $0x18] sm:$0xff]
    %v215 = vld [vmem:[#allocation3 + $0x20] sm:$0xff]
    %v216 = vld [vmem:[#allocation3 + $0x28] sm:$0xff]
    %v217 = vld [vmem:[#allocation3 + $0x30] sm:$0xff]
    %v218 = vld [vmem:[#allocation3 + $0x38] sm:$0xff]
    %v219 = vld [vmem:[#allocation3 + $0x40] sm:$0xff]
    %v220 = vld [vmem:[#allocation3 + $0x48] sm:$0xff]
    %v221 = vld [vmem:[#allocation3 + $0x50] sm:$0xff]
    %v222 = vld [vmem:[#allocation3 + $0x58] sm:$0xff]
    %v223 = vld [vmem:[#allocation3 + $0x60] sm:$0xff]
    %v224 = vld [vmem:[#allocation3 + $0x68] sm:$0xff]
    %v225 = vld [vmem:[#allocation3 + $0x70] sm:$0xff]
    %v226 = vld [vmem:[#allocation3 + $0x78] sm:$0xff]
    %v227 = vld [vmem:[#allocation3 + $0x80] sm:$0xff]
    %v228 = vld [vmem:[#allocation3 + $0x88] sm:$0xff]
    %v229 = vld [vmem:[#allocation3 + $0x90] sm:$0xff]
    %v230 = vld [vmem:[#allocation3 + $0x98] sm:$0xff]
    %v231 = vld [vmem:[#allocation3 + $0xa0] sm:$0xff]
    %v232 = vld [vmem:[#allocation3 + $0xa8] sm:$0xff]
    %v233 = vld [vmem:[#allocation3 + $0xb0] sm:$0xff]
    %v234 = vld [vmem:[#allocation3 + $0xb8] sm:$0xff]
    %v235 = vld [vmem:[#allocation3 + $0xc0] sm:$0xff]
    %v236 = vld [vmem:[#allocation3 + $0xc8] sm:$0xff]
    %v237 = vld [vmem:[#allocation3 + $0xd0] sm:$0xff]
    %v238 = vld [vmem:[#allocation3 + $0xd8] sm:$0xff]
    %v239 = vld [vmem:[#allocation3 + $0xe0] sm:$0xff]
    %v240 = vld [vmem:[#allocation3 + $0xe8] sm:$0xff]
    %v241 = vld [vmem:[#allocation3 + $0xf0] sm:$0xff]
    %v242 = vld [vmem:[#allocation3 + $0xf8] sm:$0xff]
    %v243 = vld [vmem:[#allocation3 + $0x100] sm:$0xff]
    %v244 = vld [vmem:[#allocation3 + $0x108] sm:$0xff]
    %v245 = vld [vmem:[#allocation3 + $0x110] sm:$0xff]
    %v246 = vld [vmem:[#allocation3 + $0x118] sm:$0xff]
    %v247 = vld [vmem:[#allocation3 + $0x120] sm:$0xff]
    %v248 = vld [vmem:[#allocation3 + $0x128] sm:$0xff]
    %v249 = vld [vmem:[#allocation3 + $0x130] sm:$0xff]
    %v250 = vld [vmem:[#allocation3 + $0x138] sm:$0xff]
    %v251 = vld [vmem:[#allocation3 + $0x140] sm:$0xff]
    %v252 = vld [vmem:[#allocation3 + $0x148] sm:$0xff]
    %v253 = vld [vmem:[#allocation3 + $0x150] sm:$0xff]
    %v254 = vld [vmem:[#allocation3 + $0x158] sm:$0xff]
    %v255 = vld [vmem:[#allocation3 + $0x160] sm:$0xff]
    %v256 = vld [vmem:[#allocation3 + $0x168] sm:$0xff]
    %v257 = vld [vmem:[#allocation3 + $0x170] sm:$0xff]
    %v258 = vld [vmem:[#allocation3 + $0x178] sm:$0xff]
    %v259 = vld [vmem:[%s4] sm:$0x7]
    %v261 = vlaneseq
    %v262 = vshrl.u32 %v261, 7
    %v263 = vsub.s32 0, %v262
    %v264 = vrot.slane %v259, %v263
    %v265 = vlaneseq
    %v266 = vshrl.u32 %v265, 7
    %v267 = vsub.s32 1, %v266
    %v268 = vrot.slane %v259, %v267
    %v269 = vlaneseq
    %v270 = vshrl.u32 %v269, 7
    %v271 = vsub.s32 2, %v270
    %v272 = vrot.slane %v259, %v271
    %276 = vmatprep.subr.mxu0 %v212
    %277 = vmatpush1.msra.mxu0 %v211
    %278 = vmatprep.subr.mxu0 %v215
    %279 = vmatpush1.msra.mxu0 %v214
    %280 = vmatprep.subr.mxu0 %v218
    %281 = vmatpush1.msra.mxu0 %v217
    %282 = vmatprep.subr.mxu0 %v221
    %283 = vmatpush1.msra.mxu0 %v220
    %284 = vmatprep.subr.mxu0 %v224
    %285 = vmatpush1.msra.mxu0 %v223
    %286 = vmatprep.subr.mxu0 %v227
    %287 = vmatpush1.msra.mxu0 %v226
    %288 = vmatprep.subr.mxu0 %v230
    %289 = vmatpush1.msra.mxu0 %v229
    %290 = vmatprep.subr.mxu0 %v233
    %291 = vmatpush1.msra.mxu0 %v232
    %292 = vmatprep.subr.mxu0 %v236
    %293 = vmatpush1.msra.mxu0 %v235
    %294 = vmatprep.subr.mxu0 %v239
    %295 = vmatpush1.msra.mxu0 %v238
    %296 = vmatprep.subr.mxu0 %v242
    %297 = vmatpush1.msra.mxu0 %v241
    %298 = vmatprep.subr.mxu0 %v245
    %299 = vmatpush1.msra.mxu0 %v244
    %300 = vmatprep.subr.mxu0 %v248
    %301 = vmatpush1.msra.mxu0 %v247
    %302 = vmatprep.subr.mxu0 %v251
    %303 = vmatpush1.msra.mxu0 %v250
    %304 = vmatprep.subr.mxu0 %v254
    %305 = vmatpush1.msra.mxu0 %v253
    %306 = vmatprep.subr.mxu0 %v257
    %307 = vmatpush1.msra.mxu0 %v256
    %308 = vmatprep.subr.mxu0 0.0
    %309 = vmatpush1.msra.mxu0 0.0
    %310 = vmatprep.subr.mxu0 0.0
    %311 = vmatpush1.msra.mxu0 0.0
    %312 = vmatprep.subr.mxu0 0.0
    %313 = vmatpush1.msra.mxu0 0.0
    %314 = vmatprep.subr.mxu0 0.0
    %315 = vmatpush1.msra.mxu0 0.0
    %316 = vmatprep.subr.mxu0 0.0
    %317 = vmatpush1.msra.mxu0 0.0
    %318 = vmatprep.subr.mxu0 0.0
    %319 = vmatpush1.msra.mxu0 0.0
    %320 = vmatprep.subr.mxu0 0.0
    %321 = vmatpush1.msra.mxu0 0.0
    %322 = vmatprep.subr.mxu0 0.0
    %323 = vmatpush1.msra.mxu0 0.0
    %324 = vmatprep.subr.mxu0 0.0
    %325 = vmatpush1.msra.mxu0 0.0
    %326 = vmatprep.subr.mxu0 0.0
    %327 = vmatpush1.msra.mxu0 0.0
    %328 = vmatprep.subr.mxu0 0.0
    %329 = vmatpush1.msra.mxu0 0.0
    %330 = vmatprep.subr.mxu0 0.0
    %331 = vmatpush1.msra.mxu0 0.0
    %332 = vmatprep.subr.mxu0 0.0
    %333 = vmatpush1.msra.mxu0 0.0
    %334 = vmatprep.subr.mxu0 0.0
    %335 = vmatpush1.msra.mxu0 0.0
    %336 = vmatprep.subr.mxu0 0.0
    %337 = vmatpush1.msra.mxu0 0.0
    %338 = vmatprep.subr.mxu0 0.0
    %339 = vmatpush1.msra.mxu0 0.0
    %340 = vmatprep.mubr.f32.mxu0 0.0
    %341 = vmatmul.mubr.f32.gmra.mrb[0].mxu0 %v205
    %v342 = vpop.f32.mrb[0].mxu0
    %v343 = vadd.f32 %v264, %v342
    %v344 = vpop.f32.mrb[0].mxu0
    %v345 = vadd.f32 %v268, %v344
    %346 = vmatprep.mubr.f32.mxu0 0.0
    %347 = vmatmul.mubr.f32.gmra.mrb[0].mxu0 %v206
    %v348 = vpop.f32.mrb[0].mxu0
    %v349 = vadd.f32 %v264, %v348
    %v350 = vpop.f32.mrb[0].mxu0
    %v351 = vadd.f32 %v268, %v350
    %352 = vmatprep.mubr.f32.mxu0 0.0
    %353 = vmatmul.mubr.f32.gmra.mrb[0].mxu0 %v207
    %v354 = vpop.f32.mrb[0].mxu0
    %v355 = vadd.f32 %v264, %v354
    %v356 = vpop.f32.mrb[0].mxu0
    %v357 = vadd.f32 %v268, %v356
    %358 = vmatprep.mubr.f32.mxu0 0.0
    %359 = vmatmul.mubr.f32.gmra.mrb[0].mxu0 %v208
    %v360 = vpop.f32.mrb[0].mxu0
    %v361 = vadd.f32 %v264, %v360
    %v362 = vpop.f32.mrb[0].mxu0
    %v363 = vadd.f32 %v268, %v362
    %364 = vmatprep.mubr.f32.mxu0 0.0
    %365 = vmatmul.mubr.f32.gmra.mrb[0].mxu0 %v209
    %v366 = vpop.f32.mrb[0].mxu0
    %v367 = vadd.f32 %v264, %v366
    %v368 = vpop.f32.mrb[0].mxu0
    %v369 = vadd.f32 %v268, %v368
    %370 = vmatprep.mubr.f32.mxu0 0.0
    %371 = vmatmul.mubr.f32.gmra.mrb[0].mxu0 %v210
    %v372 = vpop.f32.mrb[0].mxu0
    %v373 = vadd.f32 %v264, %v372
    %v374 = vpop.f32.mrb[0].mxu0
    %v375 = vadd.f32 %v268, %v374
    %376 = vdwg.mxu0
    %377 = vmatprep.subr.mxu0 0.0
    %378 = vmatpush1.msra.mxu0 %v213
    %379 = vmatprep.subr.mxu0 0.0
    %380 = vmatpush1.msra.mxu0 %v216
    %381 = vmatprep.subr.mxu0 0.0
    %382 = vmatpush1.msra.mxu0 %v219
    %383 = vmatprep.subr.mxu0 0.0
    %384 = vmatpush1.msra.mxu0 %v222
    %385 = vmatprep.subr.mxu0 0.0
    %386 = vmatpush1.msra.mxu0 %v225
    %387 = vmatprep.subr.mxu0 0.0
    %388 = vmatpush1.msra.mxu0 %v228
    %389 = vmatprep.subr.mxu0 0.0
    %390 = vmatpush1.msra.mxu0 %v231
    %391 = vmatprep.subr.mxu0 0.0
    %392 = vmatpush1.msra.mxu0 %v234
    %393 = vmatprep.subr.mxu0 0.0
    %394 = vmatpush1.msra.mxu0 %v237
    %395 = vmatprep.subr.mxu0 0.0
    %396 = vmatpush1.msra.mxu0 %v240
    %397 = vmatprep.subr.mxu0 0.0
    %398 = vmatpush1.msra.mxu0 %v243
    %399 = vmatprep.subr.mxu0 0.0
    %400 = vmatpush1.msra.mxu0 %v246
    %401 = vmatprep.subr.mxu0 0.0
    %402 = vmatpush1.msra.mxu0 %v249
    %403 = vmatprep.subr.mxu0 0.0
    %404 = vmatpush1.msra.mxu0 %v252
    %405 = vmatprep.subr.mxu0 0.0
    %406 = vmatpush1.msra.mxu0 %v255
    %407 = vmatprep.subr.mxu0 0.0
    %408 = vmatpush1.msra.mxu0 %v258
    %409 = vmatprep.subr.mxu0 0.0
    %410 = vmatpush1.msra.mxu0 0.0
    %411 = vmatprep.subr.mxu0 0.0
    %412 = vmatpush1.msra.mxu0 0.0
    %413 = vmatprep.subr.mxu0 0.0
    %414 = vmatpush1.msra.mxu0 0.0
    %415 = vmatprep.subr.mxu0 0.0
    %416 = vmatpush1.msra.mxu0 0.0
    %417 = vmatprep.subr.mxu0 0.0
    %418 = vmatpush1.msra.mxu0 0.0
    %419 = vmatprep.subr.mxu0 0.0
    %420 = vmatpush1.msra.mxu0 0.0
    %421 = vmatprep.subr.mxu0 0.0
    %422 = vmatpush1.msra.mxu0 0.0
    %423 = vmatprep.subr.mxu0 0.0
    %424 = vmatpush1.msra.mxu0 0.0
    %425 = vmatprep.subr.mxu0 0.0
    %426 = vmatpush1.msra.mxu0 0.0
    %427 = vmatprep.subr.mxu0 0.0
    %428 = vmatpush1.msra.mxu0 0.0
    %429 = vmatprep.subr.mxu0 0.0
    %430 = vmatpush1.msra.mxu0 0.0
    %431 = vmatprep.subr.mxu0 0.0
    %432 = vmatpush1.msra.mxu0 0.0
    %433 = vmatprep.subr.mxu0 0.0
    %434 = vmatpush1.msra.mxu0 0.0
    %435 = vmatprep.subr.mxu0 0.0
    %436 = vmatpush1.msra.mxu0 0.0
    %437 = vmatprep.subr.mxu0 0.0
    %438 = vmatpush1.msra.mxu0 0.0
    %439 = vmatprep.subr.mxu0 0.0
    %440 = vmatpush1.msra.mxu0 0.0
    %441 = vmatprep.mubr.f32.mxu0 0.0
    %442 = vmatmul.mubr.f32.gmra.mrb[0].mxu0 %v205
    %v443 = vpop.f32.mrb[0].mxu0
    %v444 = vadd.f32 %v272, %v443
    %v445 = vpop.f32.mrb[0].mxu0
    %446 = vmatprep.mubr.f32.mxu0 0.0
    %447 = vmatmul.mubr.f32.gmra.mrb[0].mxu0 %v206
    %v448 = vpop.f32.mrb[0].mxu0
    %v449 = vadd.f32 %v272, %v448
    %v450 = vpop.f32.mrb[0].mxu0
    %451 = vmatprep.mubr.f32.mxu0 0.0
    %452 = vmatmul.mubr.f32.gmra.mrb[0].mxu0 %v207
    %v453 = vpop.f32.mrb[0].mxu0
    %v454 = vadd.f32 %v272, %v453
    %v455 = vpop.f32.mrb[0].mxu0
    %456 = vmatprep.mubr.f32.mxu0 0.0
    %457 = vmatmul.mubr.f32.gmra.mrb[0].mxu0 %v208
    %v458 = vpop.f32.mrb[0].mxu0
    %v459 = vadd.f32 %v272, %v458
    %v460 = vpop.f32.mrb[0].mxu0
    %461 = vmatprep.mubr.f32.mxu0 0.0
    %462 = vmatmul.mubr.f32.gmra.mrb[0].mxu0 %v209
    %v463 = vpop.f32.mrb[0].mxu0
    %v464 = vadd.f32 %v272, %v463
    %v465 = vpop.f32.mrb[0].mxu0
    %466 = vmatprep.mubr.f32.mxu0 0.0
    %467 = vmatmul.mubr.f32.gmra.mrb[0].mxu0 %v210
    %v468 = vpop.f32.mrb[0].mxu0
    %v469 = vadd.f32 %v272, %v468
    %v470 = vpop.f32.mrb[0].mxu0
    %471 = vdwg.mxu0
    %v490 = vcombine.low %v343, %v345
    %v491 = vcombine.high %v343, %v345
    %v492 = vcombine.high %v444, %v444
    %v494 = vunpack.c.l.s4 1983009808
    %v495 = vunpack.c.0.s8 %v494
    %v496 = vlaneseq
    %v497 = vshrl.u32 %v496, 7
    %v498 = vsub.s32 %v495, %v497
    %v499 = vrot.slane %v490, %v498
    %v501 = vunpack.c.l.s4 1983009808
    %v502 = vunpack.c.0.s8 %v501
    %v503 = vlaneseq
    %v504 = vshrl.u32 %v503, 7
    %v505 = vsub.s32 %v502, %v504
    %v506 = vrot.slane %v491, %v505
    %v508 = vunpack.c.l.s4 1983009808
    %v509 = vunpack.c.0.s8 %v508
    %v510 = vlaneseq
    %v511 = vshrl.u32 %v510, 7
    %v512 = vsub.s32 %v509, %v511
    %v513 = vrot.slane %v444, %v512
    %v515 = vunpack.c.l.s4 1983009808
    %v516 = vunpack.c.0.s8 %v515
    %v517 = vlaneseq
    %v518 = vshrl.u32 %v517, 7
    %v519 = vsub.s32 %v516, %v518
    %v520 = vrot.slane %v492, %v519
    %v521 = vcombine.low %v499, %v513
    %v522 = vcombine.high %v499, %v513
    %v523 = vcombine.low %v506, %v520
    %v524 = vcombine.high %v506, %v520
    %v525 = vcombine.low %v349, %v351
    %v526 = vcombine.high %v349, %v351
    %v527 = vcombine.high %v449, %v449
    %v529 = vunpack.c.l.s4 1983009808
    %v530 = vunpack.c.0.s8 %v529
    %v531 = vlaneseq
    %v532 = vshrl.u32 %v531, 7
    %v533 = vsub.s32 %v530, %v532
    %v534 = vrot.slane %v525, %v533
    %v536 = vunpack.c.l.s4 1983009808
    %v537 = vunpack.c.0.s8 %v536
    %v538 = vlaneseq
    %v539 = vshrl.u32 %v538, 7
    %v540 = vsub.s32 %v537, %v539
    %v541 = vrot.slane %v526, %v540
    %v543 = vunpack.c.l.s4 1983009808
    %v544 = vunpack.c.0.s8 %v543
    %v545 = vlaneseq
    %v546 = vshrl.u32 %v545, 7
    %v547 = vsub.s32 %v544, %v546
    %v548 = vrot.slane %v449, %v547
    %v550 = vunpack.c.l.s4 1983009808
    %v551 = vunpack.c.0.s8 %v550
    %v552 = vlaneseq
    %v553 = vshrl.u32 %v552, 7
    %v554 = vsub.s32 %v551, %v553
    %v555 = vrot.slane %v527, %v554
    %v556 = vcombine.low %v534, %v548
    %v557 = vcombine.high %v534, %v548
    %v558 = vcombine.low %v541, %v555
    %v559 = vcombine.high %v541, %v555
    %v560 = vcombine.low %v355, %v357
    %v561 = vcombine.high %v355, %v357
    %v562 = vcombine.high %v454, %v454
    %v564 = vunpack.c.l.s4 1983009808
    %v565 = vunpack.c.0.s8 %v564
    %v566 = vlaneseq
    %v567 = vshrl.u32 %v566, 7
    %v568 = vsub.s32 %v565, %v567
    %v569 = vrot.slane %v560, %v568
    %v571 = vunpack.c.l.s4 1983009808
    %v572 = vunpack.c.0.s8 %v571
    %v573 = vlaneseq
    %v574 = vshrl.u32 %v573, 7
    %v575 = vsub.s32 %v572, %v574
    %v576 = vrot.slane %v561, %v575
    %v578 = vunpack.c.l.s4 1983009808
    %v579 = vunpack.c.0.s8 %v578
    %v580 = vlaneseq
    %v581 = vshrl.u32 %v580, 7
    %v582 = vsub.s32 %v579, %v581
    %v583 = vrot.slane %v454, %v582
    %v585 = vunpack.c.l.s4 1983009808
    %v586 = vunpack.c.0.s8 %v585
    %v587 = vlaneseq
    %v588 = vshrl.u32 %v587, 7
    %v589 = vsub.s32 %v586, %v588
    %v590 = vrot.slane %v562, %v589
    %v591 = vcombine.low %v569, %v583
    %v592 = vcombine.high %v569, %v583
    %v593 = vcombine.low %v576, %v590
    %v594 = vcombine.high %v576, %v590
    %v595 = vcombine.low %v361, %v363
    %v596 = vcombine.high %v361, %v363
    %v597 = vcombine.high %v459, %v459
    %v599 = vunpack.c.l.s4 1983009808
    %v600 = vunpack.c.0.s8 %v599
    %v601 = vlaneseq
    %v602 = vshrl.u32 %v601, 7
    %v603 = vsub.s32 %v600, %v602
    %v604 = vrot.slane %v595, %v603
    %v606 = vunpack.c.l.s4 1983009808
    %v607 = vunpack.c.0.s8 %v606
    %v608 = vlaneseq
    %v609 = vshrl.u32 %v608, 7
    %v610 = vsub.s32 %v607, %v609
    %v611 = vrot.slane %v596, %v610
    %v613 = vunpack.c.l.s4 1983009808
    %v614 = vunpack.c.0.s8 %v613
    %v615 = vlaneseq
    %v616 = vshrl.u32 %v615, 7
    %v617 = vsub.s32 %v614, %v616
    %v618 = vrot.slane %v459, %v617
    %v620 = vunpack.c.l.s4 1983009808
    %v621 = vunpack.c.0.s8 %v620
    %v622 = vlaneseq
    %v623 = vshrl.u32 %v622, 7
    %v624 = vsub.s32 %v621, %v623
    %v625 = vrot.slane %v597, %v624
    %v626 = vcombine.low %v604, %v618
    %v627 = vcombine.high %v604, %v618
    %v628 = vcombine.low %v611, %v625
    %v629 = vcombine.high %v611, %v625
    %v630 = vcombine.low %v367, %v369
    %v631 = vcombine.high %v367, %v369
    %v632 = vcombine.high %v464, %v464
    %v634 = vunpack.c.l.s4 1983009808
    %v635 = vunpack.c.0.s8 %v634
    %v636 = vlaneseq
    %v637 = vshrl.u32 %v636, 7
    %v638 = vsub.s32 %v635, %v637
    %v639 = vrot.slane %v630, %v638
    %v641 = vunpack.c.l.s4 1983009808
    %v642 = vunpack.c.0.s8 %v641
    %v643 = vlaneseq
    %v644 = vshrl.u32 %v643, 7
    %v645 = vsub.s32 %v642, %v644
    %v646 = vrot.slane %v631, %v645
    %v648 = vunpack.c.l.s4 1983009808
    %v649 = vunpack.c.0.s8 %v648
    %v650 = vlaneseq
    %v651 = vshrl.u32 %v650, 7
    %v652 = vsub.s32 %v649, %v651
    %v653 = vrot.slane %v464, %v652
    %v655 = vunpack.c.l.s4 1983009808
    %v656 = vunpack.c.0.s8 %v655
    %v657 = vlaneseq
    %v658 = vshrl.u32 %v657, 7
    %v659 = vsub.s32 %v656, %v658
    %v660 = vrot.slane %v632, %v659
    %v661 = vcombine.low %v639, %v653
    %v662 = vcombine.high %v639, %v653
    %v663 = vcombine.low %v646, %v660
    %v664 = vcombine.high %v646, %v660
    %v665 = vcombine.low %v373, %v375
    %v666 = vcombine.high %v373, %v375
    %v667 = vcombine.high %v469, %v469
    %v669 = vunpack.c.l.s4 1983009808
    %v670 = vunpack.c.0.s8 %v669
    %v671 = vlaneseq
    %v672 = vshrl.u32 %v671, 7
    %v673 = vsub.s32 %v670, %v672
    %v674 = vrot.slane %v665, %v673
    %v676 = vunpack.c.l.s4 1983009808
    %v677 = vunpack.c.0.s8 %v676
    %v678 = vlaneseq
    %v679 = vshrl.u32 %v678, 7
    %v680 = vsub.s32 %v677, %v679
    %v681 = vrot.slane %v666, %v680
    %v683 = vunpack.c.l.s4 1983009808
    %v684 = vunpack.c.0.s8 %v683
    %v685 = vlaneseq
    %v686 = vshrl.u32 %v685, 7
    %v687 = vsub.s32 %v684, %v686
    %v688 = vrot.slane %v469, %v687
    %v690 = vunpack.c.l.s4 1983009808
    %v691 = vunpack.c.0.s8 %v690
    %v692 = vlaneseq
    %v693 = vshrl.u32 %v692, 7
    %v694 = vsub.s32 %v691, %v693
    %v695 = vrot.slane %v667, %v694
    %v696 = vcombine.low %v674, %v688
    %v697 = vcombine.high %v674, %v688
    %v698 = vcombine.low %v681, %v695
    %v699 = vcombine.high %v681, %v695
    %v724 = vld [vmem:[#allocation5] sm:$0xff]
    %v725 = vld [vmem:[#allocation5 + $0x8] sm:$0xff]
    %v726 = vld [vmem:[#allocation5 + $0x10] sm:$0xff]
    %v727 = vld [vmem:[#allocation5 + $0x18] sm:$0xff]
    %v728 = vld [vmem:[#allocation5 + $0x20] sm:$0xff]
    %v729 = vld [vmem:[#allocation5 + $0x28] sm:$0xff]
    %v730 = vld [vmem:[#allocation5 + $0x30] sm:$0xff]
    %v731 = vld [vmem:[#allocation5 + $0x38] sm:$0xff]
    %v732 = vld [vmem:[#allocation5 + $0x40] sm:$0xff]
    %v733 = vld [vmem:[#allocation5 + $0x48] sm:$0xff]
    %v734 = vld [vmem:[#allocation5 + $0x50] sm:$0xff]
    %v735 = vld [vmem:[#allocation5 + $0x58] sm:$0xff]
    %v736 = vld [vmem:[#allocation5 + $0x60] sm:$0xff]
    %v737 = vld [vmem:[#allocation5 + $0x68] sm:$0xff]
    %v738 = vld [vmem:[#allocation5 + $0x70] sm:$0xff]
    %v739 = vld [vmem:[#allocation5 + $0x78] sm:$0xff]
    %v740 = vld [vmem:[#allocation5 + $0x80] sm:$0xff]
    %v741 = vld [vmem:[#allocation5 + $0x88] sm:$0xff]
    %v742 = vld [vmem:[#allocation5 + $0x90] sm:$0xff]
    %v743 = vld [vmem:[#allocation5 + $0x98] sm:$0xff]
    %v744 = vld [vmem:[#allocation5 + $0xa0] sm:$0xff]
    %v745 = vld [vmem:[#allocation5 + $0xa8] sm:$0xff]
    %v746 = vld [vmem:[#allocation5 + $0xb0] sm:$0xff]
    %v747 = vld [vmem:[#allocation5 + $0xb8] sm:$0xff]
    %v748 = vld [vmem:[#allocation5 + $0xc0] sm:$0xff]
    %v749 = vld [vmem:[#allocation5 + $0xc8] sm:$0xff]
    %v750 = vld [vmem:[#allocation5 + $0xd0] sm:$0xff]
    %v751 = vld [vmem:[#allocation5 + $0xd8] sm:$0xff]
    %v752 = vld [vmem:[#allocation5 + $0xe0] sm:$0xff]
    %v753 = vld [vmem:[#allocation5 + $0xe8] sm:$0xff]
    %v754 = vld [vmem:[#allocation5 + $0xf0] sm:$0xff]
    %v755 = vld [vmem:[#allocation5 + $0xf8] sm:$0xff]
    %v756 = vld [vmem:[#allocation5 + $0x100] sm:$0xff]
    %v757 = vld [vmem:[#allocation5 + $0x108] sm:$0xff]
    %v758 = vld [vmem:[#allocation5 + $0x110] sm:$0xff]
    %v759 = vld [vmem:[#allocation5 + $0x118] sm:$0xff]
    %v760 = vld [vmem:[#allocation5 + $0x120] sm:$0xff]
    %v761 = vld [vmem:[#allocation5 + $0x128] sm:$0xff]
    %v762 = vld [vmem:[#allocation5 + $0x130] sm:$0xff]
    %v763 = vld [vmem:[#allocation5 + $0x138] sm:$0xff]
    %v764 = vld [vmem:[#allocation5 + $0x140] sm:$0xff]
    %v765 = vld [vmem:[#allocation5 + $0x148] sm:$0xff]
    %v766 = vld [vmem:[#allocation5 + $0x150] sm:$0xff]
    %v767 = vld [vmem:[#allocation5 + $0x158] sm:$0xff]
    %v768 = vld [vmem:[#allocation5 + $0x160] sm:$0xff]
    %v769 = vld [vmem:[#allocation5 + $0x168] sm:$0xff]
    %v770 = vld [vmem:[#allocation5 + $0x170] sm:$0xff]
    %v771 = vld [vmem:[#allocation5 + $0x178] sm:$0xff]
    %v772 = vld [vmem:[%s6] sm:$0x7]
    %v774 = vlaneseq
    %v775 = vshrl.u32 %v774, 7
    %v776 = vsub.s32 0, %v775
    %v777 = vrot.slane %v772, %v776
    %v778 = vlaneseq
    %v779 = vshrl.u32 %v778, 7
    %v780 = vsub.s32 1, %v779
    %v781 = vrot.slane %v772, %v780
    %v782 = vlaneseq
    %v783 = vshrl.u32 %v782, 7
    %v784 = vsub.s32 2, %v783
    %v785 = vrot.slane %v772, %v784
    %789 = vmatprep.subr.mxu0 %v725
    %790 = vmatpush1.msra.mxu0 %v724
    %791 = vmatprep.subr.mxu0 %v728
    %792 = vmatpush1.msra.mxu0 %v727
    %793 = vmatprep.subr.mxu0 %v731
    %794 = vmatpush1.msra.mxu0 %v730
    %795 = vmatprep.subr.mxu0 %v734
    %796 = vmatpush1.msra.mxu0 %v733
    %797 = vmatprep.subr.mxu0 %v737
    %798 = vmatpush1.msra.mxu0 %v736
    %799 = vmatprep.subr.mxu0 %v740
    %800 = vmatpush1.msra.mxu0 %v739
    %801 = vmatprep.subr.mxu0 %v743
    %802 = vmatpush1.msra.mxu0 %v742
    %803 = vmatprep.subr.mxu0 %v746
    %804 = vmatpush1.msra.mxu0 %v745
    %805 = vmatprep.subr.mxu0 %v749
    %806 = vmatpush1.msra.mxu0 %v748
    %807 = vmatprep.subr.mxu0 %v752
    %808 = vmatpush1.msra.mxu0 %v751
    %809 = vmatprep.subr.mxu0 %v755
    %810 = vmatpush1.msra.mxu0 %v754
    %811 = vmatprep.subr.mxu0 %v758
    %812 = vmatpush1.msra.mxu0 %v757
    %813 = vmatprep.subr.mxu0 %v761
    %814 = vmatpush1.msra.mxu0 %v760
    %815 = vmatprep.subr.mxu0 %v764
    %816 = vmatpush1.msra.mxu0 %v763
    %817 = vmatprep.subr.mxu0 %v767
    %818 = vmatpush1.msra.mxu0 %v766
    %819 = vmatprep.subr.mxu0 %v770
    %820 = vmatpush1.msra.mxu0 %v769
    %821 = vmatprep.subr.mxu0 0.0
    %822 = vmatpush1.msra.mxu0 0.0
    %823 = vmatprep.subr.mxu0 0.0
    %824 = vmatpush1.msra.mxu0 0.0
    %825 = vmatprep.subr.mxu0 0.0
    %826 = vmatpush1.msra.mxu0 0.0
    %827 = vmatprep.subr.mxu0 0.0
    %828 = vmatpush1.msra.mxu0 0.0
    %829 = vmatprep.subr.mxu0 0.0
    %830 = vmatpush1.msra.mxu0 0.0
    %831 = vmatprep.subr.mxu0 0.0
    %832 = vmatpush1.msra.mxu0 0.0
    %833 = vmatprep.subr.mxu0 0.0
    %834 = vmatpush1.msra.mxu0 0.0
    %835 = vmatprep.subr.mxu0 0.0
    %836 = vmatpush1.msra.mxu0 0.0
    %837 = vmatprep.subr.mxu0 0.0
    %838 = vmatpush1.msra.mxu0 0.0
    %839 = vmatprep.subr.mxu0 0.0
    %840 = vmatpush1.msra.mxu0 0.0
    %841 = vmatprep.subr.mxu0 0.0
    %842 = vmatpush1.msra.mxu0 0.0
    %843 = vmatprep.subr.mxu0 0.0
    %844 = vmatpush1.msra.mxu0 0.0
    %845 = vmatprep.subr.mxu0 0.0
    %846 = vmatpush1.msra.mxu0 0.0
    %847 = vmatprep.subr.mxu0 0.0
    %848 = vmatpush1.msra.mxu0 0.0
    %849 = vmatprep.subr.mxu0 0.0
    %850 = vmatpush1.msra.mxu0 0.0
    %851 = vmatprep.subr.mxu0 0.0
    %852 = vmatpush1.msra.mxu0 0.0
    %853 = vmatprep.mubr.f32.mxu0 0.0
    %854 = vmatmul.mubr.f32.gmra.mrb[0].mxu0 0.0
    %v855 = vpop.f32.mrb[0].mxu0
    %v856 = vadd.f32 %v777, %v855
    %v857 = vpop.f32.mrb[0].mxu0
    %v858 = vadd.f32 %v781, %v857
    %859 = vdwg.mxu0
    %860 = vmatprep.subr.mxu0 0.0
    %861 = vmatpush1.msra.mxu0 %v726
    %862 = vmatprep.subr.mxu0 0.0
    %863 = vmatpush1.msra.mxu0 %v729
    %864 = vmatprep.subr.mxu0 0.0
    %865 = vmatpush1.msra.mxu0 %v732
    %866 = vmatprep.subr.mxu0 0.0
    %867 = vmatpush1.msra.mxu0 %v735
    %868 = vmatprep.subr.mxu0 0.0
    %869 = vmatpush1.msra.mxu0 %v738
    %870 = vmatprep.subr.mxu0 0.0
    %871 = vmatpush1.msra.mxu0 %v741
    %872 = vmatprep.subr.mxu0 0.0
    %873 = vmatpush1.msra.mxu0 %v744
    %874 = vmatprep.subr.mxu0 0.0
    %875 = vmatpush1.msra.mxu0 %v747
    %876 = vmatprep.subr.mxu0 0.0
    %877 = vmatpush1.msra.mxu0 %v750
    %878 = vmatprep.subr.mxu0 0.0
    %879 = vmatpush1.msra.mxu0 %v753
    %880 = vmatprep.subr.mxu0 0.0
    %881 = vmatpush1.msra.mxu0 %v756
    %882 = vmatprep.subr.mxu0 0.0
    %883 = vmatpush1.msra.mxu0 %v759
    %884 = vmatprep.subr.mxu0 0.0
    %885 = vmatpush1.msra.mxu0 %v762
    %886 = vmatprep.subr.mxu0 0.0
    %887 = vmatpush1.msra.mxu0 %v765
    %888 = vmatprep.subr.mxu0 0.0
    %889 = vmatpush1.msra.mxu0 %v768
    %890 = vmatprep.subr.mxu0 0.0
    %891 = vmatpush1.msra.mxu0 %v771
    %892 = vmatprep.subr.mxu0 0.0
    %893 = vmatpush1.msra.mxu0 0.0
    %894 = vmatprep.subr.mxu0 0.0
    %895 = vmatpush1.msra.mxu0 0.0
    %896 = vmatprep.subr.mxu0 0.0
    %897 = vmatpush1.msra.mxu0 0.0
    %898 = vmatprep.subr.mxu0 0.0
    %899 = vmatpush1.msra.mxu0 0.0
    %900 = vmatprep.subr.mxu0 0.0
    %901 = vmatpush1.msra.mxu0 0.0
    %902 = vmatprep.subr.mxu0 0.0
    %903 = vmatpush1.msra.mxu0 0.0
    %904 = vmatprep.subr.mxu0 0.0
    %905 = vmatpush1.msra.mxu0 0.0
    %906 = vmatprep.subr.mxu0 0.0
    %907 = vmatpush1.msra.mxu0 0.0
    %908 = vmatprep.subr.mxu0 0.0
    %909 = vmatpush1.msra.mxu0 0.0
    %910 = vmatprep.subr.mxu0 0.0
    %911 = vmatpush1.msra.mxu0 0.0
    %912 = vmatprep.subr.mxu0 0.0
    %913 = vmatpush1.msra.mxu0 0.0
    %914 = vmatprep.subr.mxu0 0.0
    %915 = vmatpush1.msra.mxu0 0.0
    %916 = vmatprep.subr.mxu0 0.0
    %917 = vmatpush1.msra.mxu0 0.0
    %918 = vmatprep.subr.mxu0 0.0
    %919 = vmatpush1.msra.mxu0 0.0
    %920 = vmatprep.subr.mxu0 0.0
    %921 = vmatpush1.msra.mxu0 0.0
    %922 = vmatprep.subr.mxu0 0.0
    %923 = vmatpush1.msra.mxu0 0.0
    %924 = vmatprep.mubr.f32.mxu0 0.0
    %925 = vmatmul.mubr.f32.gmra.mrb[0].mxu0 0.0
    %v926 = vpop.f32.mrb[0].mxu0
    %v927 = vadd.f32 %v785, %v926
    %v928 = vpop.f32.mrb[0].mxu0
    %929 = vdwg.mxu0
    %v931 = vcombine.high %v856, %v856
    %v933 = vunpack.c.l.s4 1983009808
    %v934 = vunpack.c.0.s8 %v933
    %v935 = vlaneseq
    %v936 = vshrl.u32 %v935, 7
    %v937 = vsub.s32 %v934, %v936
    %v938 = vrot.slane %v856, %v937
    %v940 = vunpack.c.l.s4 1983009808
    %v941 = vunpack.c.0.s8 %v940
    %v942 = vlaneseq
    %v943 = vshrl.u32 %v942, 7
    %v944 = vsub.s32 %v941, %v943
    %v945 = vrot.slane %v931, %v944
    %v946 = vcombine.high %v938, %v938
    %v947 = vcombine.high %v945, %v945
    %v948 = vrot.slane %v938, 1
    %v949 = vrot.slane %v946, 1
    %v950 = vrot.slane %v945, 1
    %v951 = vrot.slane %v947, 1
    %v960 = vadd.f32 %v521, %v938
    %v961 = vadd.f32 %v524, %v948
    %v962 = vadd.f32 %v558, %v946
    %v963 = vadd.f32 %v592, %v949
    %v964 = vadd.f32 %v626, %v945
    %v965 = vadd.f32 %v629, %v950
    %v966 = vadd.f32 %v663, %v947
    %v967 = vadd.f32 %v697, %v951
    %v968 = vxor.u32 %v960, 2147483648
    %v969 = vxor.u32 %v961, 2147483648
    %v970 = vxor.u32 %v962, 2147483648
    %v971 = vxor.u32 %v963, 2147483648
    %v972 = vxor.u32 %v964, 2147483648
    %v973 = vxor.u32 %v965, 2147483648
    %v974 = vxor.u32 %v966, 2147483648
    %v975 = vxor.u32 %v967, 2147483648
    %v976 = vmul.f32 %v968, 1.442695
    %v977 = vpow.pop %v976
    %v978 = vmul.f32 %v969, 1.442695
    %v979 = vpow.pop %v978
    %v980 = vmul.f32 %v970, 1.442695
    %v981 = vpow.pop %v980
    %v982 = vmul.f32 %v971, 1.442695
    %v983 = vpow.pop %v982
    %v984 = vmul.f32 %v972, 1.442695
    %v985 = vpow.pop %v984
    %v986 = vmul.f32 %v973, 1.442695
    %v987 = vpow.pop %v986
    %v988 = vmul.f32 %v974, 1.442695
    %v989 = vpow.pop %v988
    %v990 = vmul.f32 %v975, 1.442695
    %v991 = vpow.pop %v990
    %v992 = vadd.f32 %v977, 1.0
    %v993 = vadd.f32 %v979, 1.0
    %v994 = vadd.f32 %v981, 1.0
    %v995 = vadd.f32 %v983, 1.0
    %v996 = vadd.f32 %v985, 1.0
    %v997 = vadd.f32 %v987, 1.0
    %v998 = vadd.f32 %v989, 1.0
    %v999 = vadd.f32 %v991, 1.0
    %v1000 = vrcp.pop %v992
    %v1001 = vmul.f32 1.0, %v1000
    %v1002 = vrcp.pop %v993
    %v1003 = vmul.f32 1.0, %v1002
    %v1004 = vrcp.pop %v994
    %v1005 = vmul.f32 1.0, %v1004
    %v1006 = vrcp.pop %v995
    %v1007 = vmul.f32 1.0, %v1006
    %v1008 = vrcp.pop %v996
    %v1009 = vmul.f32 1.0, %v1008
    %v1010 = vrcp.pop %v997
    %v1011 = vmul.f32 1.0, %v1010
    %v1012 = vrcp.pop %v998
    %v1013 = vmul.f32 1.0, %v1012
    %v1014 = vrcp.pop %v999
    %v1015 = vmul.f32 1.0, %v1014
    %v1016 = vrot.slane %v521, 2
    %v1017 = vrot.slane %v524, 2
    %v1018 = vrot.slane %v558, 2
    %v1019 = vrot.slane %v592, 2
    %v1020 = vrot.slane %v626, 2
    %v1021 = vrot.slane %v629, 2
    %v1022 = vrot.slane %v663, 2
    %v1023 = vrot.slane %v697, 2
    %v1033 = vcombine.high %v858, %v858
    %v1035 = vunpack.c.l.s4 1983009808
    %v1036 = vunpack.c.0.s8 %v1035
    %v1037 = vlaneseq
    %v1038 = vshrl.u32 %v1037, 7
    %v1039 = vsub.s32 %v1036, %v1038
    %v1040 = vrot.slane %v858, %v1039
    %v1042 = vunpack.c.l.s4 1983009808
    %v1043 = vunpack.c.0.s8 %v1042
    %v1044 = vlaneseq
    %v1045 = vshrl.u32 %v1044, 7
    %v1046 = vsub.s32 %v1043, %v1045
    %v1047 = vrot.slane %v1033, %v1046
    %v1048 = vcombine.high %v1040, %v1040
    %v1049 = vcombine.high %v1047, %v1047
    %v1050 = vrot.slane %v1040, 1
    %v1051 = vrot.slane %v1048, 1
    %v1052 = vrot.slane %v1047, 1
    %v1053 = vrot.slane %v1049, 1
    %v1062 = vadd.f32 %v1016, %v1040
    %v1063 = vadd.f32 %v1017, %v1050
    %v1064 = vadd.f32 %v1018, %v1048
    %v1065 = vadd.f32 %v1019, %v1051
    %v1066 = vadd.f32 %v1020, %v1047
    %v1067 = vadd.f32 %v1021, %v1052
    %v1068 = vadd.f32 %v1022, %v1049
    %v1069 = vadd.f32 %v1023, %v1053
    %v1070 = vxor.u32 %v1062, 2147483648
    %v1071 = vxor.u32 %v1063, 2147483648
    %v1072 = vxor.u32 %v1064, 2147483648
    %v1073 = vxor.u32 %v1065, 2147483648
    %v1074 = vxor.u32 %v1066, 2147483648
    %v1075 = vxor.u32 %v1067, 2147483648
    %v1076 = vxor.u32 %v1068, 2147483648
    %v1077 = vxor.u32 %v1069, 2147483648
    %v1078 = vmul.f32 %v1070, 1.442695
    %v1079 = vpow.pop %v1078
    %v1080 = vmul.f32 %v1071, 1.442695
    %v1081 = vpow.pop %v1080
    %v1082 = vmul.f32 %v1072, 1.442695
    %v1083 = vpow.pop %v1082
    %v1084 = vmul.f32 %v1073, 1.442695
    %v1085 = vpow.pop %v1084
    %v1086 = vmul.f32 %v1074, 1.442695
    %v1087 = vpow.pop %v1086
    %v1088 = vmul.f32 %v1075, 1.442695
    %v1089 = vpow.pop %v1088
    %v1090 = vmul.f32 %v1076, 1.442695
    %v1091 = vpow.pop %v1090
    %v1092 = vmul.f32 %v1077, 1.442695
    %v1093 = vpow.pop %v1092
    %v1094 = vadd.f32 %v1079, 1.0
    %v1095 = vadd.f32 %v1081, 1.0
    %v1096 = vadd.f32 %v1083, 1.0
    %v1097 = vadd.f32 %v1085, 1.0
    %v1098 = vadd.f32 %v1087, 1.0
    %v1099 = vadd.f32 %v1089, 1.0
    %v1100 = vadd.f32 %v1091, 1.0
    %v1101 = vadd.f32 %v1093, 1.0
    %v1102 = vrcp.pop %v1094
    %v1103 = vmul.f32 1.0, %v1102
    %v1104 = vrcp.pop %v1095
    %v1105 = vmul.f32 1.0, %v1104
    %v1106 = vrcp.pop %v1096
    %v1107 = vmul.f32 1.0, %v1106
    %v1108 = vrcp.pop %v1097
    %v1109 = vmul.f32 1.0, %v1108
    %v1110 = vrcp.pop %v1098
    %v1111 = vmul.f32 1.0, %v1110
    %v1112 = vrcp.pop %v1099
    %v1113 = vmul.f32 1.0, %v1112
    %v1114 = vrcp.pop %v1100
    %v1115 = vmul.f32 1.0, %v1114
    %v1116 = vrcp.pop %v1101
    %v1117 = vmul.f32 1.0, %v1116
    %v1119 = vcombine.high %v927, %v927
    %v1121 = vunpack.c.l.s4 1983009808
    %v1122 = vunpack.c.0.s8 %v1121
    %v1123 = vlaneseq
    %v1124 = vshrl.u32 %v1123, 7
    %v1125 = vsub.s32 %v1122, %v1124
    %v1126 = vrot.slane %v927, %v1125
    %v1128 = vunpack.c.l.s4 1983009808
    %v1129 = vunpack.c.0.s8 %v1128
    %v1130 = vlaneseq
    %v1131 = vshrl.u32 %v1130, 7
    %v1132 = vsub.s32 %v1129, %v1131
    %v1133 = vrot.slane %v1119, %v1132
    %v1134 = vcombine.high %v1126, %v1126
    %v1135 = vcombine.high %v1133, %v1133
    %v1136 = vrot.slane %v1126, 1
    %v1137 = vrot.slane %v1134, 1
    %v1138 = vrot.slane %v1133, 1
    %v1139 = vrot.slane %v1135, 1
    %v1148 = vmul.f32 %v1001, %v1126
    %v1149 = vmul.f32 %v1003, %v1136
    %v1150 = vmul.f32 %v1005, %v1134
    %v1151 = vmul.f32 %v1007, %v1137
    %v1152 = vmul.f32 %v1009, %v1133
    %v1153 = vmul.f32 %v1011, %v1138
    %v1154 = vmul.f32 %v1013, %v1135
    %v1155 = vmul.f32 %v1015, %v1139
    %v1156 = vrot.slane %v521, 4
    %v1157 = vrot.slane %v524, 4
    %v1158 = vrot.slane %v558, 4
    %v1159 = vrot.slane %v592, 4
    %v1160 = vrot.slane %v626, 4
    %v1161 = vrot.slane %v629, 4
    %v1162 = vrot.slane %v663, 4
    %v1163 = vrot.slane %v697, 4
    %v1172 = vadd.f32 %v1156, %v1148
    %v1173 = vadd.f32 %v1157, %v1149
    %v1174 = vadd.f32 %v1158, %v1150
    %v1175 = vadd.f32 %v1159, %v1151
    %v1176 = vadd.f32 %v1160, %v1152
    %v1177 = vadd.f32 %v1161, %v1153
    %v1178 = vadd.f32 %v1162, %v1154
    %v1179 = vadd.f32 %v1163, %v1155
    %v1180 = vtanh.pop %v1172
    %v1181 = vtanh.pop %v1173
    %v1182 = vtanh.pop %v1174
    %v1183 = vtanh.pop %v1175
    %v1184 = vtanh.pop %v1176
    %v1185 = vtanh.pop %v1177
    %v1186 = vtanh.pop %v1178
    %v1187 = vtanh.pop %v1179
    %v1188 = vsub.f32 1.0, %v1103
    %v1189 = vsub.f32 1.0, %v1105
    %v1190 = vsub.f32 1.0, %v1107
    %v1191 = vsub.f32 1.0, %v1109
    %v1192 = vsub.f32 1.0, %v1111
    %v1193 = vsub.f32 1.0, %v1113
    %v1194 = vsub.f32 1.0, %v1115
    %v1195 = vsub.f32 1.0, %v1117
    %v1196 = vmul.f32 %v1188, %v1180
    %v1197 = vmul.f32 %v1189, %v1181
    %v1198 = vmul.f32 %v1190, %v1182
    %v1199 = vmul.f32 %v1191, %v1183
    %v1200 = vmul.f32 %v1192, %v1184
    %v1201 = vmul.f32 %v1193, %v1185
    %v1202 = vmul.f32 %v1194, %v1186
    %v1203 = vmul.f32 %v1195, %v1187
    %v1204 = vmul.f32 %v1103, 0.0
    %v1205 = vmul.f32 %v1105, 0.0
    %v1206 = vmul.f32 %v1107, 0.0
    %v1207 = vmul.f32 %v1109, 0.0
    %v1208 = vmul.f32 %v1111, 0.0
    %v1209 = vmul.f32 %v1113, 0.0
    %v1210 = vmul.f32 %v1115, 0.0
    %v1211 = vmul.f32 %v1117, 0.0
    %v1212 = vadd.f32 %v1196, %v1204
    %v1213 = vadd.f32 %v1197, %v1205
    %v1214 = vadd.f32 %v1198, %v1206
    %v1215 = vadd.f32 %v1199, %v1207
    %v1216 = vadd.f32 %v1200, %v1208
    %v1217 = vadd.f32 %v1201, %v1209
    %v1218 = vadd.f32 %v1202, %v1210
    %v1219 = vadd.f32 %v1203, %v1211
    %v1228 = vlaneseq
    %v1229 = vshrl.u32 %v1228, 7
    %v1230 = vsub.s32 0, %v1229
    %v1231 = vrot.slane %v1212, %v1230
    %v1232 = vlaneseq
    %v1233 = vshrl.u32 %v1232, 7
    %v1234 = vsub.s32 0, %v1233
    %v1235 = vrot.slane %v1213, %v1234
    %v1236 = vlaneseq
    %v1237 = vshrl.u32 %v1236, 7
    %v1238 = vsub.s32 0, %v1237
    %v1239 = vrot.slane %v1214, %v1238
    %v1240 = vlaneseq
    %v1241 = vshrl.u32 %v1240, 7
    %v1242 = vsub.s32 0, %v1241
    %v1243 = vrot.slane %v1215, %v1242
    %v1244 = vlaneseq
    %v1245 = vshrl.u32 %v1244, 7
    %v1246 = vsub.s32 0, %v1245
    %v1247 = vrot.slane %v1216, %v1246
    %v1248 = vlaneseq
    %v1249 = vshrl.u32 %v1248, 7
    %v1250 = vsub.s32 0, %v1249
    %v1251 = vrot.slane %v1217, %v1250
    %v1252 = vlaneseq
    %v1253 = vshrl.u32 %v1252, 7
    %v1254 = vsub.s32 0, %v1253
    %v1255 = vrot.slane %v1218, %v1254
    %v1256 = vlaneseq
    %v1257 = vshrl.u32 %v1256, 7
    %v1258 = vsub.s32 0, %v1257
    %v1259 = vrot.slane %v1219, %v1258
    %vm1260 = vcmask 1041409
    %v1261 = vsel %vm1260, %v1235, %v1231
    %vm1262 = vcmask 1042434
    %v1263 = vsel %vm1262, %v1239, %v1261
    %vm1264 = vcmask 1043459
    %v1265 = vsel %vm1264, %v1243, %v1263
    %vm1266 = vcmask 1044484
    %v1267 = vsel %vm1266, %v1247, %v1265
    %vm1268 = vcmask 1045509
    %v1269 = vsel %vm1268, %v1251, %v1267
    %vm1270 = vcmask 1046534
    %v1271 = vsel %vm1270, %v1255, %v1269
    %vm1272 = vcmask 1047559
    %v1273 = vsel %vm1272, %v1259, %v1271
    %1275 = vmatprep.subr.mxu0 %v725
    %1276 = vmatpush1.msra.mxu0 %v724
    %1277 = vmatprep.subr.mxu0 %v728
    %1278 = vmatpush1.msra.mxu0 %v727
    %1279 = vmatprep.subr.mxu0 %v731
    %1280 = vmatpush1.msra.mxu0 %v730
    %1281 = vmatprep.subr.mxu0 %v734
    %1282 = vmatpush1.msra.mxu0 %v733
    %1283 = vmatprep.subr.mxu0 %v737
    %1284 = vmatpush1.msra.mxu0 %v736
    %1285 = vmatprep.subr.mxu0 %v740
    %1286 = vmatpush1.msra.mxu0 %v739
    %1287 = vmatprep.subr.mxu0 %v743
    %1288 = vmatpush1.msra.mxu0 %v742
    %1289 = vmatprep.subr.mxu0 %v746
    %1290 = vmatpush1.msra.mxu0 %v745
    %1291 = vmatprep.subr.mxu0 %v749
    %1292 = vmatpush1.msra.mxu0 %v748
    %1293 = vmatprep.subr.mxu0 %v752
    %1294 = vmatpush1.msra.mxu0 %v751
    %1295 = vmatprep.subr.mxu0 %v755
    %1296 = vmatpush1.msra.mxu0 %v754
    %1297 = vmatprep.subr.mxu0 %v758
    %1298 = vmatpush1.msra.mxu0 %v757
    %1299 = vmatprep.subr.mxu0 %v761
    %1300 = vmatpush1.msra.mxu0 %v760
    %1301 = vmatprep.subr.mxu0 %v764
    %1302 = vmatpush1.msra.mxu0 %v763
    %1303 = vmatprep.subr.mxu0 %v767
    %1304 = vmatpush1.msra.mxu0 %v766
    %1305 = vmatprep.subr.mxu0 %v770
    %1306 = vmatpush1.msra.mxu0 %v769
    %1307 = vmatprep.subr.mxu0 0.0
    %1308 = vmatpush1.msra.mxu0 0.0
    %1309 = vmatprep.subr.mxu0 0.0
    %1310 = vmatpush1.msra.mxu0 0.0
    %1311 = vmatprep.subr.mxu0 0.0
    %1312 = vmatpush1.msra.mxu0 0.0
    %1313 = vmatprep.subr.mxu0 0.0
    %1314 = vmatpush1.msra.mxu0 0.0
    %1315 = vmatprep.subr.mxu0 0.0
    %1316 = vmatpush1.msra.mxu0 0.0
    %1317 = vmatprep.subr.mxu0 0.0
    %1318 = vmatpush1.msra.mxu0 0.0
    %1319 = vmatprep.subr.mxu0 0.0
    %1320 = vmatpush1.msra.mxu0 0.0
    %1321 = vmatprep.subr.mxu0 0.0
    %1322 = vmatpush1.msra.mxu0 0.0
    %1323 = vmatprep.subr.mxu0 0.0
    %1324 = vmatpush1.msra.mxu0 0.0
    %1325 = vmatprep.subr.mxu0 0.0
    %1326 = vmatpush1.msra.mxu0 0.0
    %1327 = vmatprep.subr.mxu0 0.0
    %1328 = vmatpush1.msra.mxu0 0.0
    %1329 = vmatprep.subr.mxu0 0.0
    %1330 = vmatpush1.msra.mxu0 0.0
    %1331 = vmatprep.subr.mxu0 0.0
    %1332 = vmatpush1.msra.mxu0 0.0
    %1333 = vmatprep.subr.mxu0 0.0
    %1334 = vmatpush1.msra.mxu0 0.0
    %1335 = vmatprep.subr.mxu0 0.0
    %1336 = vmatpush1.msra.mxu0 0.0
    %1337 = vmatprep.subr.mxu0 0.0
    %1338 = vmatpush1.msra.mxu0 0.0
    %1339 = vmatprep.mubr.f32.mxu0 0.0
    %1340 = vmatmul.mubr.f32.gmra.mrb[0].mxu0 %v1273
    %v1341 = vpop.f32.mrb[0].mxu0
    %v1342 = vadd.f32 %v777, %v1341
    %v1343 = vpop.f32.mrb[0].mxu0
    %v1344 = vadd.f32 %v781, %v1343
    %1345 = vdwg.mxu0
    %1346 = vmatprep.subr.mxu0 0.0
    %1347 = vmatpush1.msra.mxu0 %v726
    %1348 = vmatprep.subr.mxu0 0.0
    %1349 = vmatpush1.msra.mxu0 %v729
    %1350 = vmatprep.subr.mxu0 0.0
    %1351 = vmatpush1.msra.mxu0 %v732
    %1352 = vmatprep.subr.mxu0 0.0
    %1353 = vmatpush1.msra.mxu0 %v735
    %1354 = vmatprep.subr.mxu0 0.0
    %1355 = vmatpush1.msra.mxu0 %v738
    %1356 = vmatprep.subr.mxu0 0.0
    %1357 = vmatpush1.msra.mxu0 %v741
    %1358 = vmatprep.subr.mxu0 0.0
    %1359 = vmatpush1.msra.mxu0 %v744
    %1360 = vmatprep.subr.mxu0 0.0
    %1361 = vmatpush1.msra.mxu0 %v747
    %1362 = vmatprep.subr.mxu0 0.0
    %1363 = vmatpush1.msra.mxu0 %v750
    %1364 = vmatprep.subr.mxu0 0.0
    %1365 = vmatpush1.msra.mxu0 %v753
    %1366 = vmatprep.subr.mxu0 0.0
    %1367 = vmatpush1.msra.mxu0 %v756
    %1368 = vmatprep.subr.mxu0 0.0
    %1369 = vmatpush1.msra.mxu0 %v759
    %1370 = vmatprep.subr.mxu0 0.0
    %1371 = vmatpush1.msra.mxu0 %v762
    %1372 = vmatprep.subr.mxu0 0.0
    %1373 = vmatpush1.msra.mxu0 %v765
    %1374 = vmatprep.subr.mxu0 0.0
    %1375 = vmatpush1.msra.mxu0 %v768
    %1376 = vmatprep.subr.mxu0 0.0
    %1377 = vmatpush1.msra.mxu0 %v771
    %1378 = vmatprep.subr.mxu0 0.0
    %1379 = vmatpush1.msra.mxu0 0.0
    %1380 = vmatprep.subr.mxu0 0.0
    %1381 = vmatpush1.msra.mxu0 0.0
    %1382 = vmatprep.subr.mxu0 0.0
    %1383 = vmatpush1.msra.mxu0 0.0
    %1384 = vmatprep.subr.mxu0 0.0
    %1385 = vmatpush1.msra.mxu0 0.0
    %1386 = vmatprep.subr.mxu0 0.0
    %1387 = vmatpush1.msra.mxu0 0.0
    %1388 = vmatprep.subr.mxu0 0.0
    %1389 = vmatpush1.msra.mxu0 0.0
    %1390 = vmatprep.subr.mxu0 0.0
    %1391 = vmatpush1.msra.mxu0 0.0
    %1392 = vmatprep.subr.mxu0 0.0
    %1393 = vmatpush1.msra.mxu0 0.0
    %1394 = vmatprep.subr.mxu0 0.0
    %1395 = vmatpush1.msra.mxu0 0.0
    %1396 = vmatprep.subr.mxu0 0.0
    %1397 = vmatpush1.msra.mxu0 0.0
    %1398 = vmatprep.subr.mxu0 0.0
    %1399 = vmatpush1.msra.mxu0 0.0
    %1400 = vmatprep.subr.mxu0 0.0
    %1401 = vmatpush1.msra.mxu0 0.0
    %1402 = vmatprep.subr.mxu0 0.0
    %1403 = vmatpush1.msra.mxu0 0.0
    %1404 = vmatprep.subr.mxu0 0.0
    %1405 = vmatpush1.msra.mxu0 0.0
    %1406 = vmatprep.subr.mxu0 0.0
    %1407 = vmatpush1.msra.mxu0 0.0
    %1408 = vmatprep.subr.mxu0 0.0
    %1409 = vmatpush1.msra.mxu0 0.0
    %1410 = vmatprep.mubr.f32.mxu0 0.0
    %1411 = vmatmul.mubr.f32.gmra.mrb[0].mxu0 %v1273
    %v1412 = vpop.f32.mrb[0].mxu0
    %v1413 = vadd.f32 %v785, %v1412
    %v1414 = vpop.f32.mrb[0].mxu0
    %1415 = vdwg.mxu0
    %v1417 = vcombine.high %v1342, %v1342
    %v1419 = vunpack.c.l.s4 1983009808
    %v1420 = vunpack.c.0.s8 %v1419
    %v1421 = vlaneseq
    %v1422 = vshrl.u32 %v1421, 7
    %v1423 = vsub.s32 %v1420, %v1422
    %v1424 = vrot.slane %v1342, %v1423
    %v1426 = vunpack.c.l.s4 1983009808
    %v1427 = vunpack.c.0.s8 %v1426
    %v1428 = vlaneseq
    %v1429 = vshrl.u32 %v1428, 7
    %v1430 = vsub.s32 %v1427, %v1429
    %v1431 = vrot.slane %v1417, %v1430
    %v1432 = vcombine.high %v1424, %v1424
    %v1433 = vcombine.high %v1431, %v1431
    %v1434 = vrot.slane %v1424, 7
    %v1435 = vrot.slane %v1432, 7
    %v1436 = vrot.slane %v1431, 7
    %v1437 = vrot.slane %v1433, 7
    %v1446 = vadd.f32 %v521, %v1434
    %v1447 = vadd.f32 %v524, %v1424
    %v1448 = vadd.f32 %v558, %v1435
    %v1449 = vadd.f32 %v592, %v1432
    %v1450 = vadd.f32 %v626, %v1436
    %v1451 = vadd.f32 %v629, %v1431
    %v1452 = vadd.f32 %v663, %v1437
    %v1453 = vadd.f32 %v697, %v1433
    %v1454 = vxor.u32 %v1446, 2147483648
    %v1455 = vxor.u32 %v1447, 2147483648
    %v1456 = vxor.u32 %v1448, 2147483648
    %v1457 = vxor.u32 %v1449, 2147483648
    %v1458 = vxor.u32 %v1450, 2147483648
    %v1459 = vxor.u32 %v1451, 2147483648
    %v1460 = vxor.u32 %v1452, 2147483648
    %v1461 = vxor.u32 %v1453, 2147483648
    %v1462 = vmul.f32 %v1454, 1.442695
    %v1463 = vpow.pop %v1462
    %v1464 = vmul.f32 %v1455, 1.442695
    %v1465 = vpow.pop %v1464
    %v1466 = vmul.f32 %v1456, 1.442695
    %v1467 = vpow.pop %v1466
    %v1468 = vmul.f32 %v1457, 1.442695
    %v1469 = vpow.pop %v1468
    %v1470 = vmul.f32 %v1458, 1.442695
    %v1471 = vpow.pop %v1470
    %v1472 = vmul.f32 %v1459, 1.442695
    %v1473 = vpow.pop %v1472
    %v1474 = vmul.f32 %v1460, 1.442695
    %v1475 = vpow.pop %v1474
    %v1476 = vmul.f32 %v1461, 1.442695
    %v1477 = vpow.pop %v1476
    %v1478 = vadd.f32 %v1463, 1.0
    %v1479 = vadd.f32 %v1465, 1.0
    %v1480 = vadd.f32 %v1467, 1.0
    %v1481 = vadd.f32 %v1469, 1.0
    %v1482 = vadd.f32 %v1471, 1.0
    %v1483 = vadd.f32 %v1473, 1.0
    %v1484 = vadd.f32 %v1475, 1.0
    %v1485 = vadd.f32 %v1477, 1.0
    %v1486 = vrcp.pop %v1478
    %v1487 = vmul.f32 1.0, %v1486
    %v1488 = vrcp.pop %v1479
    %v1489 = vmul.f32 1.0, %v1488
    %v1490 = vrcp.pop %v1480
    %v1491 = vmul.f32 1.0, %v1490
    %v1492 = vrcp.pop %v1481
    %v1493 = vmul.f32 1.0, %v1492
    %v1494 = vrcp.pop %v1482
    %v1495 = vmul.f32 1.0, %v1494
    %v1496 = vrcp.pop %v1483
    %v1497 = vmul.f32 1.0, %v1496
    %v1498 = vrcp.pop %v1484
    %v1499 = vmul.f32 1.0, %v1498
    %v1500 = vrcp.pop %v1485
    %v1501 = vmul.f32 1.0, %v1500
    %v1503 = vcombine.high %v1344, %v1344
    %v1505 = vunpack.c.l.s4 1983009808
    %v1506 = vunpack.c.0.s8 %v1505
    %v1507 = vlaneseq
    %v1508 = vshrl.u32 %v1507, 7
    %v1509 = vsub.s32 %v1506, %v1508
    %v1510 = vrot.slane %v1344, %v1509
    %v1512 = vunpack.c.l.s4 1983009808
    %v1513 = vunpack.c.0.s8 %v1512
    %v1514 = vlaneseq
    %v1515 = vshrl.u32 %v1514, 7
    %v1516 = vsub.s32 %v1513, %v1515
    %v1517 = vrot.slane %v1503, %v1516
    %v1518 = vcombine.high %v1510, %v1510
    %v1519 = vcombine.high %v1517, %v1517
    %v1520 = vrot.slane %v1510, 7
    %v1521 = vrot.slane %v1518, 7
    %v1522 = vrot.slane %v1517, 7
    %v1523 = vrot.slane %v1519, 7
    %v1532 = vadd.f32 %v1016, %v1520
    %v1533 = vadd.f32 %v1017, %v1510
    %v1534 = vadd.f32 %v1018, %v1521
    %v1535 = vadd.f32 %v1019, %v1518
    %v1536 = vadd.f32 %v1020, %v1522
    %v1537 = vadd.f32 %v1021, %v1517
    %v1538 = vadd.f32 %v1022, %v1523
    %v1539 = vadd.f32 %v1023, %v1519
    %v1540 = vxor.u32 %v1532, 2147483648
    %v1541 = vxor.u32 %v1533, 2147483648
    %v1542 = vxor.u32 %v1534, 2147483648
    %v1543 = vxor.u32 %v1535, 2147483648
    %v1544 = vxor.u32 %v1536, 2147483648
    %v1545 = vxor.u32 %v1537, 2147483648
    %v1546 = vxor.u32 %v1538, 2147483648
    %v1547 = vxor.u32 %v1539, 2147483648
    %v1548 = vmul.f32 %v1540, 1.442695
    %v1549 = vpow.pop %v1548
    %v1550 = vmul.f32 %v1541, 1.442695
    %v1551 = vpow.pop %v1550
    %v1552 = vmul.f32 %v1542, 1.442695
    %v1553 = vpow.pop %v1552
    %v1554 = vmul.f32 %v1543, 1.442695
    %v1555 = vpow.pop %v1554
    %v1556 = vmul.f32 %v1544, 1.442695
    %v1557 = vpow.pop %v1556
    %v1558 = vmul.f32 %v1545, 1.442695
    %v1559 = vpow.pop %v1558
    %v1560 = vmul.f32 %v1546, 1.442695
    %v1561 = vpow.pop %v1560
    %v1562 = vmul.f32 %v1547, 1.442695
    %v1563 = vpow.pop %v1562
    %v1564 = vadd.f32 %v1549, 1.0
    %v1565 = vadd.f32 %v1551, 1.0
    %v1566 = vadd.f32 %v1553, 1.0
    %v1567 = vadd.f32 %v1555, 1.0
    %v1568 = vadd.f32 %v1557, 1.0
    %v1569 = vadd.f32 %v1559, 1.0
    %v1570 = vadd.f32 %v1561, 1.0
    %v1571 = vadd.f32 %v1563, 1.0
    %v1572 = vrcp.pop %v1564
    %v1573 = vmul.f32 1.0, %v1572
    %v1574 = vrcp.pop %v1565
    %v1575 = vmul.f32 1.0, %v1574
    %v1576 = vrcp.pop %v1566
    %v1577 = vmul.f32 1.0, %v1576
    %v1578 = vrcp.pop %v1567
    %v1579 = vmul.f32 1.0, %v1578
    %v1580 = vrcp.pop %v1568
    %v1581 = vmul.f32 1.0, %v1580
    %v1582 = vrcp.pop %v1569
    %v1583 = vmul.f32 1.0, %v1582
    %v1584 = vrcp.pop %v1570
    %v1585 = vmul.f32 1.0, %v1584
    %v1586 = vrcp.pop %v1571
    %v1587 = vmul.f32 1.0, %v1586
    %v1589 = vcombine.high %v1413, %v1413
    %v1591 = vunpack.c.l.s4 1983009808
    %v1592 = vunpack.c.0.s8 %v1591
    %v1593 = vlaneseq
    %v1594 = vshrl.u32 %v1593, 7
    %v1595 = vsub.s32 %v1592, %v1594
    %v1596 = vrot.slane %v1413, %v1595
    %v1598 = vunpack.c.l.s4 1983009808
    %v1599 = vunpack.c.0.s8 %v1598
    %v1600 = vlaneseq
    %v1601 = vshrl.u32 %v1600, 7
    %v1602 = vsub.s32 %v1599, %v1601
    %v1603 = vrot.slane %v1589, %v1602
    %v1604 = vcombine.high %v1596, %v1596
    %v1605 = vcombine.high %v1603, %v1603
    %v1606 = vrot.slane %v1596, 7
    %v1607 = vrot.slane %v1604, 7
    %v1608 = vrot.slane %v1603, 7
    %v1609 = vrot.slane %v1605, 7
    %v1618 = vmul.f32 %v1487, %v1606
    %v1619 = vmul.f32 %v1489, %v1596
    %v1620 = vmul.f32 %v1491, %v1607
    %v1621 = vmul.f32 %v1493, %v1604
    %v1622 = vmul.f32 %v1495, %v1608
    %v1623 = vmul.f32 %v1497, %v1603
    %v1624 = vmul.f32 %v1499, %v1609
    %v1625 = vmul.f32 %v1501, %v1605
    %v1626 = vadd.f32 %v1156, %v1618
    %v1627 = vadd.f32 %v1157, %v1619
    %v1628 = vadd.f32 %v1158, %v1620
    %v1629 = vadd.f32 %v1159, %v1621
    %v1630 = vadd.f32 %v1160, %v1622
    %v1631 = vadd.f32 %v1161, %v1623
    %v1632 = vadd.f32 %v1162, %v1624
    %v1633 = vadd.f32 %v1163, %v1625
    %v1634 = vtanh.pop %v1626
    %v1635 = vtanh.pop %v1627
    %v1636 = vtanh.pop %v1628
    %v1637 = vtanh.pop %v1629
    %v1638 = vtanh.pop %v1630
    %v1639 = vtanh.pop %v1631
    %v1640 = vtanh.pop %v1632
    %v1641 = vtanh.pop %v1633
    %v1642 = vsub.f32 1.0, %v1573
    %v1643 = vsub.f32 1.0, %v1575
    %v1644 = vsub.f32 1.0, %v1577
    %v1645 = vsub.f32 1.0, %v1579
    %v1646 = vsub.f32 1.0, %v1581
    %v1647 = vsub.f32 1.0, %v1583
    %v1648 = vsub.f32 1.0, %v1585
    %v1649 = vsub.f32 1.0, %v1587
    %v1650 = vmul.f32 %v1642, %v1634
    %v1651 = vmul.f32 %v1643, %v1635
    %v1652 = vmul.f32 %v1644, %v1636
    %v1653 = vmul.f32 %v1645, %v1637
    %v1654 = vmul.f32 %v1646, %v1638
    %v1655 = vmul.f32 %v1647, %v1639
    %v1656 = vmul.f32 %v1648, %v1640
    %v1657 = vmul.f32 %v1649, %v1641
    %v1658 = vrot.slane %v1212, 7
    %v1659 = vrot.slane %v1213, 7
    %v1660 = vrot.slane %v1214, 7
    %v1661 = vrot.slane %v1215, 7
    %v1662 = vrot.slane %v1216, 7
    %v1663 = vrot.slane %v1217, 7
    %v1664 = vrot.slane %v1218, 7
    %v1665 = vrot.slane %v1219, 7
    %v1674 = vmul.f32 %v1573, %v1658
    %v1675 = vmul.f32 %v1575, %v1659
    %v1676 = vmul.f32 %v1577, %v1660
    %v1677 = vmul.f32 %v1579, %v1661
    %v1678 = vmul.f32 %v1581, %v1662
    %v1679 = vmul.f32 %v1583, %v1663
    %v1680 = vmul.f32 %v1585, %v1664
    %v1681 = vmul.f32 %v1587, %v1665
    %v1682 = vadd.f32 %v1650, %v1674
    %v1683 = vadd.f32 %v1651, %v1675
    %v1684 = vadd.f32 %v1652, %v1676
    %v1685 = vadd.f32 %v1653, %v1677
    %v1686 = vadd.f32 %v1654, %v1678
    %v1687 = vadd.f32 %v1655, %v1679
    %v1688 = vadd.f32 %v1656, %v1680
    %v1689 = vadd.f32 %v1657, %v1681
    %v1698 = vlaneseq
    %v1699 = vshrl.u32 %v1698, 7
    %v1700 = vsub.s32 1, %v1699
    %v1701 = vrot.slane %v1682, %v1700
    %v1702 = vlaneseq
    %v1703 = vshrl.u32 %v1702, 7
    %v1704 = vsub.s32 1, %v1703
    %v1705 = vrot.slane %v1683, %v1704
    %v1706 = vlaneseq
    %v1707 = vshrl.u32 %v1706, 7
    %v1708 = vsub.s32 1, %v1707
    %v1709 = vrot.slane %v1684, %v1708
    %v1710 = vlaneseq
    %v1711 = vshrl.u32 %v1710, 7
    %v1712 = vsub.s32 1, %v1711
    %v1713 = vrot.slane %v1685, %v1712
    %v1714 = vlaneseq
    %v1715 = vshrl.u32 %v1714, 7
    %v1716 = vsub.s32 1, %v1715
    %v1717 = vrot.slane %v1686, %v1716
    %v1718 = vlaneseq
    %v1719 = vshrl.u32 %v1718, 7
    %v1720 = vsub.s32 1, %v1719
    %v1721 = vrot.slane %v1687, %v1720
    %v1722 = vlaneseq
    %v1723 = vshrl.u32 %v1722, 7
    %v1724 = vsub.s32 1, %v1723
    %v1725 = vrot.slane %v1688, %v1724
    %v1726 = vlaneseq
    %v1727 = vshrl.u32 %v1726, 7
    %v1728 = vsub.s32 1, %v1727
    %v1729 = vrot.slane %v1689, %v1728
    %v1730 = vsel %vm1260, %v1705, %v1701
    %v1731 = vsel %vm1262, %v1709, %v1730
    %v1732 = vsel %vm1264, %v1713, %v1731
    %v1733 = vsel %vm1266, %v1717, %v1732
    %v1734 = vsel %vm1268, %v1721, %v1733
    %v1735 = vsel %vm1270, %v1725, %v1734
    %v1736 = vsel %vm1272, %v1729, %v1735
    %1738 = vmatprep.subr.mxu0 %v725
    %1739 = vmatpush1.msra.mxu0 %v724
    %1740 = vmatprep.subr.mxu0 %v728
    %1741 = vmatpush1.msra.mxu0 %v727
    %1742 = vmatprep.subr.mxu0 %v731
    %1743 = vmatpush1.msra.mxu0 %v730
    %1744 = vmatprep.subr.mxu0 %v734
    %1745 = vmatpush1.msra.mxu0 %v733
    %1746 = vmatprep.subr.mxu0 %v737
    %1747 = vmatpush1.msra.mxu0 %v736
    %1748 = vmatprep.subr.mxu0 %v740
    %1749 = vmatpush1.msra.mxu0 %v739
    %1750 = vmatprep.subr.mxu0 %v743
    %1751 = vmatpush1.msra.mxu0 %v742
    %1752 = vmatprep.subr.mxu0 %v746
    %1753 = vmatpush1.msra.mxu0 %v745
    %1754 = vmatprep.subr.mxu0 %v749
    %1755 = vmatpush1.msra.mxu0 %v748
    %1756 = vmatprep.subr.mxu0 %v752
    %1757 = vmatpush1.msra.mxu0 %v751
    %1758 = vmatprep.subr.mxu0 %v755
    %1759 = vmatpush1.msra.mxu0 %v754
    %1760 = vmatprep.subr.mxu0 %v758
    %1761 = vmatpush1.msra.mxu0 %v757
    %1762 = vmatprep.subr.mxu0 %v761
    %1763 = vmatpush1.msra.mxu0 %v760
    %1764 = vmatprep.subr.mxu0 %v764
    %1765 = vmatpush1.msra.mxu0 %v763
    %1766 = vmatprep.subr.mxu0 %v767
    %1767 = vmatpush1.msra.mxu0 %v766
    %1768 = vmatprep.subr.mxu0 %v770
    %1769 = vmatpush1.msra.mxu0 %v769
    %1770 = vmatprep.subr.mxu0 0.0
    %1771 = vmatpush1.msra.mxu0 0.0
    %1772 = vmatprep.subr.mxu0 0.0
    %1773 = vmatpush1.msra.mxu0 0.0
    %1774 = vmatprep.subr.mxu0 0.0
    %1775 = vmatpush1.msra.mxu0 0.0
    %1776 = vmatprep.subr.mxu0 0.0
    %1777 = vmatpush1.msra.mxu0 0.0
    %1778 = vmatprep.subr.mxu0 0.0
    %1779 = vmatpush1.msra.mxu0 0.0
    %1780 = vmatprep.subr.mxu0 0.0
    %1781 = vmatpush1.msra.mxu0 0.0
    %1782 = vmatprep.subr.mxu0 0.0
    %1783 = vmatpush1.msra.mxu0 0.0
    %1784 = vmatprep.subr.mxu0 0.0
    %1785 = vmatpush1.msra.mxu0 0.0
    %1786 = vmatprep.subr.mxu0 0.0
    %1787 = vmatpush1.msra.mxu0 0.0
    %1788 = vmatprep.subr.mxu0 0.0
    %1789 = vmatpush1.msra.mxu0 0.0
    %1790 = vmatprep.subr.mxu0 0.0
    %1791 = vmatpush1.msra.mxu0 0.0
    %1792 = vmatprep.subr.mxu0 0.0
    %1793 = vmatpush1.msra.mxu0 0.0
    %1794 = vmatprep.subr.mxu0 0.0
    %1795 = vmatpush1.msra.mxu0 0.0
    %1796 = vmatprep.subr.mxu0 0.0
    %1797 = vmatpush1.msra.mxu0 0.0
    %1798 = vmatprep.subr.mxu0 0.0
    %1799 = vmatpush1.msra.mxu0 0.0
    %1800 = vmatprep.subr.mxu0 0.0
    %1801 = vmatpush1.msra.mxu0 0.0
    %1802 = vmatprep.mubr.f32.mxu0 0.0
    %1803 = vmatmul.mubr.f32.gmra.mrb[0].mxu0 %v1736
    %v1804 = vpop.f32.mrb[0].mxu0
    %v1805 = vadd.f32 %v777, %v1804
    %v1806 = vpop.f32.mrb[0].mxu0
    %v1807 = vadd.f32 %v781, %v1806
    %1808 = vdwg.mxu0
    %1809 = vmatprep.subr.mxu0 0.0
    %1810 = vmatpush1.msra.mxu0 %v726
    %1811 = vmatprep.subr.mxu0 0.0
    %1812 = vmatpush1.msra.mxu0 %v729
    %1813 = vmatprep.subr.mxu0 0.0
    %1814 = vmatpush1.msra.mxu0 %v732
    %1815 = vmatprep.subr.mxu0 0.0
    %1816 = vmatpush1.msra.mxu0 %v735
    %1817 = vmatprep.subr.mxu0 0.0
    %1818 = vmatpush1.msra.mxu0 %v738
    %1819 = vmatprep.subr.mxu0 0.0
    %1820 = vmatpush1.msra.mxu0 %v741
    %1821 = vmatprep.subr.mxu0 0.0
    %1822 = vmatpush1.msra.mxu0 %v744
    %1823 = vmatprep.subr.mxu0 0.0
    %1824 = vmatpush1.msra.mxu0 %v747
    %1825 = vmatprep.subr.mxu0 0.0
    %1826 = vmatpush1.msra.mxu0 %v750
    %1827 = vmatprep.subr.mxu0 0.0
    %1828 = vmatpush1.msra.mxu0 %v753
    %1829 = vmatprep.subr.mxu0 0.0
    %1830 = vmatpush1.msra.mxu0 %v756
    %1831 = vmatprep.subr.mxu0 0.0
    %1832 = vmatpush1.msra.mxu0 %v759
    %1833 = vmatprep.subr.mxu0 0.0
    %1834 = vmatpush1.msra.mxu0 %v762
    %1835 = vmatprep.subr.mxu0 0.0
    %1836 = vmatpush1.msra.mxu0 %v765
    %1837 = vmatprep.subr.mxu0 0.0
    %1838 = vmatpush1.msra.mxu0 %v768
    %1839 = vmatprep.subr.mxu0 0.0
    %1840 = vmatpush1.msra.mxu0 %v771
    %1841 = vmatprep.subr.mxu0 0.0
    %1842 = vmatpush1.msra.mxu0 0.0
    %1843 = vmatprep.subr.mxu0 0.0
    %1844 = vmatpush1.msra.mxu0 0.0
    %1845 = vmatprep.subr.mxu0 0.0
    %1846 = vmatpush1.msra.mxu0 0.0
    %1847 = vmatprep.subr.mxu0 0.0
    %1848 = vmatpush1.msra.mxu0 0.0
    %1849 = vmatprep.subr.mxu0 0.0
    %1850 = vmatpush1.msra.mxu0 0.0
    %1851 = vmatprep.subr.mxu0 0.0
    %1852 = vmatpush1.msra.mxu0 0.0
    %1853 = vmatprep.subr.mxu0 0.0
    %1854 = vmatpush1.msra.mxu0 0.0
    %1855 = vmatprep.subr.mxu0 0.0
    %1856 = vmatpush1.msra.mxu0 0.0
    %1857 = vmatprep.subr.mxu0 0.0
    %1858 = vmatpush1.msra.mxu0 0.0
    %1859 = vmatprep.subr.mxu0 0.0
    %1860 = vmatpush1.msra.mxu0 0.0
    %1861 = vmatprep.subr.mxu0 0.0
    %1862 = vmatpush1.msra.mxu0 0.0
    %1863 = vmatprep.subr.mxu0 0.0
    %1864 = vmatpush1.msra.mxu0 0.0
    %1865 = vmatprep.subr.mxu0 0.0
    %1866 = vmatpush1.msra.mxu0 0.0
    %1867 = vmatprep.subr.mxu0 0.0
    %1868 = vmatpush1.msra.mxu0 0.0
    %1869 = vmatprep.subr.mxu0 0.0
    %1870 = vmatpush1.msra.mxu0 0.0
    %1871 = vmatprep.subr.mxu0 0.0
    %1872 = vmatpush1.msra.mxu0 0.0
    %1873 = vmatprep.mubr.f32.mxu0 0.0
    %1874 = vmatmul.mubr.f32.gmra.mrb[0].mxu0 %v1736
    %v1875 = vpop.f32.mrb[0].mxu0
    %v1876 = vadd.f32 %v785, %v1875
    %v1877 = vpop.f32.mrb[0].mxu0
    %1878 = vdwg.mxu0
    %v1880 = vcombine.high %v1805, %v1805
    %v1882 = vunpack.c.l.s4 1983009808
    %v1883 = vunpack.c.0.s8 %v1882
    %v1884 = vlaneseq
    %v1885 = vshrl.u32 %v1884, 7
    %v1886 = vsub.s32 %v1883, %v1885
    %v1887 = vrot.slane %v1805, %v1886
    %v1889 = vunpack.c.l.s4 1983009808
    %v1890 = vunpack.c.0.s8 %v1889
    %v1891 = vlaneseq
    %v1892 = vshrl.u32 %v1891, 7
    %v1893 = vsub.s32 %v1890, %v1892
    %v1894 = vrot.slane %v1880, %v1893
    %v1895 = vcombine.high %v1887, %v1887
    %v1896 = vcombine.high %v1894, %v1894
    %v1897 = vrot.slane %v1887, 1
    %v1898 = vrot.slane %v1895, 1
    %v1899 = vrot.slane %v1894, 1
    %v1900 = vrot.slane %v1896, 1
    %v1909 = vadd.f32 %v522, %v1887
    %v1910 = vadd.f32 %v556, %v1897
    %v1911 = vadd.f32 %v559, %v1895
    %v1912 = vadd.f32 %v593, %v1898
    %v1913 = vadd.f32 %v627, %v1894
    %v1914 = vadd.f32 %v661, %v1899
    %v1915 = vadd.f32 %v664, %v1896
    %v1916 = vadd.f32 %v698, %v1900
    %v1917 = vxor.u32 %v1909, 2147483648
    %v1918 = vxor.u32 %v1910, 2147483648
    %v1919 = vxor.u32 %v1911, 2147483648
    %v1920 = vxor.u32 %v1912, 2147483648
    %v1921 = vxor.u32 %v1913, 2147483648
    %v1922 = vxor.u32 %v1914, 2147483648
    %v1923 = vxor.u32 %v1915, 2147483648
    %v1924 = vxor.u32 %v1916, 2147483648
    %v1925 = vmul.f32 %v1917, 1.442695
    %v1926 = vpow.pop %v1925
    %v1927 = vmul.f32 %v1918, 1.442695
    %v1928 = vpow.pop %v1927
    %v1929 = vmul.f32 %v1919, 1.442695
    %v1930 = vpow.pop %v1929
    %v1931 = vmul.f32 %v1920, 1.442695
    %v1932 = vpow.pop %v1931
    %v1933 = vmul.f32 %v1921, 1.442695
    %v1934 = vpow.pop %v1933
    %v1935 = vmul.f32 %v1922, 1.442695
    %v1936 = vpow.pop %v1935
    %v1937 = vmul.f32 %v1923, 1.442695
    %v1938 = vpow.pop %v1937
    %v1939 = vmul.f32 %v1924, 1.442695
    %v1940 = vpow.pop %v1939
    %v1941 = vadd.f32 %v1926, 1.0
    %v1942 = vadd.f32 %v1928, 1.0
    %v1943 = vadd.f32 %v1930, 1.0
    %v1944 = vadd.f32 %v1932, 1.0
    %v1945 = vadd.f32 %v1934, 1.0
    %v1946 = vadd.f32 %v1936, 1.0
    %v1947 = vadd.f32 %v1938, 1.0
    %v1948 = vadd.f32 %v1940, 1.0
    %v1949 = vrcp.pop %v1941
    %v1950 = vmul.f32 1.0, %v1949
    %v1951 = vrcp.pop %v1942
    %v1952 = vmul.f32 1.0, %v1951
    %v1953 = vrcp.pop %v1943
    %v1954 = vmul.f32 1.0, %v1953
    %v1955 = vrcp.pop %v1944
    %v1956 = vmul.f32 1.0, %v1955
    %v1957 = vrcp.pop %v1945
    %v1958 = vmul.f32 1.0, %v1957
    %v1959 = vrcp.pop %v1946
    %v1960 = vmul.f32 1.0, %v1959
    %v1961 = vrcp.pop %v1947
    %v1962 = vmul.f32 1.0, %v1961
    %v1963 = vrcp.pop %v1948
    %v1964 = vmul.f32 1.0, %v1963
    %v1965 = vrot.slane %v522, 2
    %v1966 = vrot.slane %v556, 2
    %v1967 = vrot.slane %v559, 2
    %v1968 = vrot.slane %v593, 2
    %v1969 = vrot.slane %v627, 2
    %v1970 = vrot.slane %v661, 2
    %v1971 = vrot.slane %v664, 2
    %v1972 = vrot.slane %v698, 2
    %v1982 = vcombine.high %v1807, %v1807
    %v1984 = vunpack.c.l.s4 1983009808
    %v1985 = vunpack.c.0.s8 %v1984
    %v1986 = vlaneseq
    %v1987 = vshrl.u32 %v1986, 7
    %v1988 = vsub.s32 %v1985, %v1987
    %v1989 = vrot.slane %v1807, %v1988
    %v1991 = vunpack.c.l.s4 1983009808
    %v1992 = vunpack.c.0.s8 %v1991
    %v1993 = vlaneseq
    %v1994 = vshrl.u32 %v1993, 7
    %v1995 = vsub.s32 %v1992, %v1994
    %v1996 = vrot.slane %v1982, %v1995
    %v1997 = vcombine.high %v1989, %v1989
    %v1998 = vcombine.high %v1996, %v1996
    %v1999 = vrot.slane %v1989, 1
    %v2000 = vrot.slane %v1997, 1
    %v2001 = vrot.slane %v1996, 1
    %v2002 = vrot.slane %v1998, 1
    %v2011 = vadd.f32 %v1965, %v1989
    %v2012 = vadd.f32 %v1966, %v1999
    %v2013 = vadd.f32 %v1967, %v1997
    %v2014 = vadd.f32 %v1968, %v2000
    %v2015 = vadd.f32 %v1969, %v1996
    %v2016 = vadd.f32 %v1970, %v2001
    %v2017 = vadd.f32 %v1971, %v1998
    %v2018 = vadd.f32 %v1972, %v2002
    %v2019 = vxor.u32 %v2011, 2147483648
    %v2020 = vxor.u32 %v2012, 2147483648
    %v2021 = vxor.u32 %v2013, 2147483648
    %v2022 = vxor.u32 %v2014, 2147483648
    %v2023 = vxor.u32 %v2015, 2147483648
    %v2024 = vxor.u32 %v2016, 2147483648
    %v2025 = vxor.u32 %v2017, 2147483648
    %v2026 = vxor.u32 %v2018, 2147483648
    %v2027 = vmul.f32 %v2019, 1.442695
    %v2028 = vpow.pop %v2027
    %v2029 = vmul.f32 %v2020, 1.442695
    %v2030 = vpow.pop %v2029
    %v2031 = vmul.f32 %v2021, 1.442695
    %v2032 = vpow.pop %v2031
    %v2033 = vmul.f32 %v2022, 1.442695
    %v2034 = vpow.pop %v2033
    %v2035 = vmul.f32 %v2023, 1.442695
    %v2036 = vpow.pop %v2035
    %v2037 = vmul.f32 %v2024, 1.442695
    %v2038 = vpow.pop %v2037
    %v2039 = vmul.f32 %v2025, 1.442695
    %v2040 = vpow.pop %v2039
    %v2041 = vmul.f32 %v2026, 1.442695
    %v2042 = vpow.pop %v2041
    %v2043 = vadd.f32 %v2028, 1.0
    %v2044 = vadd.f32 %v2030, 1.0
    %v2045 = vadd.f32 %v2032, 1.0
    %v2046 = vadd.f32 %v2034, 1.0
    %v2047 = vadd.f32 %v2036, 1.0
    %v2048 = vadd.f32 %v2038, 1.0
    %v2049 = vadd.f32 %v2040, 1.0
    %v2050 = vadd.f32 %v2042, 1.0
    %v2051 = vrcp.pop %v2043
    %v2052 = vmul.f32 1.0, %v2051
    %v2053 = vrcp.pop %v2044
    %v2054 = vmul.f32 1.0, %v2053
    %v2055 = vrcp.pop %v2045
    %v2056 = vmul.f32 1.0, %v2055
    %v2057 = vrcp.pop %v2046
    %v2058 = vmul.f32 1.0, %v2057
    %v2059 = vrcp.pop %v2047
    %v2060 = vmul.f32 1.0, %v2059
    %v2061 = vrcp.pop %v2048
    %v2062 = vmul.f32 1.0, %v2061
    %v2063 = vrcp.pop %v2049
    %v2064 = vmul.f32 1.0, %v2063
    %v2065 = vrcp.pop %v2050
    %v2066 = vmul.f32 1.0, %v2065
    %v2068 = vcombine.high %v1876, %v1876
    %v2070 = vunpack.c.l.s4 1983009808
    %v2071 = vunpack.c.0.s8 %v2070
    %v2072 = vlaneseq
    %v2073 = vshrl.u32 %v2072, 7
    %v2074 = vsub.s32 %v2071, %v2073
    %v2075 = vrot.slane %v1876, %v2074
    %v2077 = vunpack.c.l.s4 1983009808
    %v2078 = vunpack.c.0.s8 %v2077
    %v2079 = vlaneseq
    %v2080 = vshrl.u32 %v2079, 7
    %v2081 = vsub.s32 %v2078, %v2080
    %v2082 = vrot.slane %v2068, %v2081
    %v2083 = vcombine.high %v2075, %v2075
    %v2084 = vcombine.high %v2082, %v2082
    %v2085 = vrot.slane %v2075, 1
    %v2086 = vrot.slane %v2083, 1
    %v2087 = vrot.slane %v2082, 1
    %v2088 = vrot.slane %v2084, 1
    %v2097 = vmul.f32 %v1950, %v2075
    %v2098 = vmul.f32 %v1952, %v2085
    %v2099 = vmul.f32 %v1954, %v2083
    %v2100 = vmul.f32 %v1956, %v2086
    %v2101 = vmul.f32 %v1958, %v2082
    %v2102 = vmul.f32 %v1960, %v2087
    %v2103 = vmul.f32 %v1962, %v2084
    %v2104 = vmul.f32 %v1964, %v2088
    %v2105 = vrot.slane %v522, 4
    %v2106 = vrot.slane %v556, 4
    %v2107 = vrot.slane %v559, 4
    %v2108 = vrot.slane %v593, 4
    %v2109 = vrot.slane %v627, 4
    %v2110 = vrot.slane %v661, 4
    %v2111 = vrot.slane %v664, 4
    %v2112 = vrot.slane %v698, 4
    %v2121 = vadd.f32 %v2105, %v2097
    %v2122 = vadd.f32 %v2106, %v2098
    %v2123 = vadd.f32 %v2107, %v2099
    %v2124 = vadd.f32 %v2108, %v2100
    %v2125 = vadd.f32 %v2109, %v2101
    %v2126 = vadd.f32 %v2110, %v2102
    %v2127 = vadd.f32 %v2111, %v2103
    %v2128 = vadd.f32 %v2112, %v2104
    %v2129 = vtanh.pop %v2121
    %v2130 = vtanh.pop %v2122
    %v2131 = vtanh.pop %v2123
    %v2132 = vtanh.pop %v2124
    %v2133 = vtanh.pop %v2125
    %v2134 = vtanh.pop %v2126
    %v2135 = vtanh.pop %v2127
    %v2136 = vtanh.pop %v2128
    %v2137 = vsub.f32 1.0, %v2052
    %v2138 = vsub.f32 1.0, %v2054
    %v2139 = vsub.f32 1.0, %v2056
    %v2140 = vsub.f32 1.0, %v2058
    %v2141 = vsub.f32 1.0, %v2060
    %v2142 = vsub.f32 1.0, %v2062
    %v2143 = vsub.f32 1.0, %v2064
    %v2144 = vsub.f32 1.0, %v2066
    %v2145 = vmul.f32 %v2137, %v2129
    %v2146 = vmul.f32 %v2138, %v2130
    %v2147 = vmul.f32 %v2139, %v2131
    %v2148 = vmul.f32 %v2140, %v2132
    %v2149 = vmul.f32 %v2141, %v2133
    %v2150 = vmul.f32 %v2142, %v2134
    %v2151 = vmul.f32 %v2143, %v2135
    %v2152 = vmul.f32 %v2144, %v2136
    %v2153 = vrot.slane %v1682, 7
    %v2154 = vrot.slane %v2153, 2
    %v2155 = vrot.slane %v1683, 7
    %v2156 = vrot.slane %v2155, 2
    %v2157 = vrot.slane %v1684, 7
    %v2158 = vrot.slane %v2157, 2
    %v2159 = vrot.slane %v1685, 7
    %v2160 = vrot.slane %v2159, 2
    %v2161 = vrot.slane %v1686, 7
    %v2162 = vrot.slane %v2161, 2
    %v2163 = vrot.slane %v1687, 7
    %v2164 = vrot.slane %v2163, 2
    %v2165 = vrot.slane %v1688, 7
    %v2166 = vrot.slane %v2165, 2
    %v2167 = vrot.slane %v1689, 7
    %v2168 = vrot.slane %v2167, 2
    %v2177 = vmul.f32 %v2052, %v2154
    %v2178 = vmul.f32 %v2054, %v2156
    %v2179 = vmul.f32 %v2056, %v2158
    %v2180 = vmul.f32 %v2058, %v2160
    %v2181 = vmul.f32 %v2060, %v2162
    %v2182 = vmul.f32 %v2062, %v2164
    %v2183 = vmul.f32 %v2064, %v2166
    %v2184 = vmul.f32 %v2066, %v2168
    %v2185 = vadd.f32 %v2145, %v2177
    %v2186 = vadd.f32 %v2146, %v2178
    %v2187 = vadd.f32 %v2147, %v2179
    %v2188 = vadd.f32 %v2148, %v2180
    %v2189 = vadd.f32 %v2149, %v2181
    %v2190 = vadd.f32 %v2150, %v2182
    %v2191 = vadd.f32 %v2151, %v2183
    %v2192 = vadd.f32 %v2152, %v2184
    %v2201 = vlaneseq
    %v2202 = vshrl.u32 %v2201, 7
    %v2203 = vsub.s32 0, %v2202
    %v2204 = vrot.slane %v2185, %v2203
    %v2205 = vlaneseq
    %v2206 = vshrl.u32 %v2205, 7
    %v2207 = vsub.s32 0, %v2206
    %v2208 = vrot.slane %v2186, %v2207
    %v2209 = vlaneseq
    %v2210 = vshrl.u32 %v2209, 7
    %v2211 = vsub.s32 0, %v2210
    %v2212 = vrot.slane %v2187, %v2211
    %v2213 = vlaneseq
    %v2214 = vshrl.u32 %v2213, 7
    %v2215 = vsub.s32 0, %v2214
    %v2216 = vrot.slane %v2188, %v2215
    %v2217 = vlaneseq
    %v2218 = vshrl.u32 %v2217, 7
    %v2219 = vsub.s32 0, %v2218
    %v2220 = vrot.slane %v2189, %v2219
    %v2221 = vlaneseq
    %v2222 = vshrl.u32 %v2221, 7
    %v2223 = vsub.s32 0, %v2222
    %v2224 = vrot.slane %v2190, %v2223
    %v2225 = vlaneseq
    %v2226 = vshrl.u32 %v2225, 7
    %v2227 = vsub.s32 0, %v2226
    %v2228 = vrot.slane %v2191, %v2227
    %v2229 = vlaneseq
    %v2230 = vshrl.u32 %v2229, 7
    %v2231 = vsub.s32 0, %v2230
    %v2232 = vrot.slane %v2192, %v2231
    %v2233 = vsel %vm1260, %v2208, %v2204
    %v2234 = vsel %vm1262, %v2212, %v2233
    %v2235 = vsel %vm1264, %v2216, %v2234
    %v2236 = vsel %vm1266, %v2220, %v2235
    %v2237 = vsel %vm1268, %v2224, %v2236
    %v2238 = vsel %vm1270, %v2228, %v2237
    %v2239 = vsel %vm1272, %v2232, %v2238
    %2241 = vmatprep.subr.mxu0 %v725
    %2242 = vmatpush1.msra.mxu0 %v724
    %2243 = vmatprep.subr.mxu0 %v728
    %2244 = vmatpush1.msra.mxu0 %v727
    %2245 = vmatprep.subr.mxu0 %v731
    %2246 = vmatpush1.msra.mxu0 %v730
    %2247 = vmatprep.subr.mxu0 %v734
    %2248 = vmatpush1.msra.mxu0 %v733
    %2249 = vmatprep.subr.mxu0 %v737
    %2250 = vmatpush1.msra.mxu0 %v736
    %2251 = vmatprep.subr.mxu0 %v740
    %2252 = vmatpush1.msra.mxu0 %v739
    %2253 = vmatprep.subr.mxu0 %v743
    %2254 = vmatpush1.msra.mxu0 %v742
    %2255 = vmatprep.subr.mxu0 %v746
    %2256 = vmatpush1.msra.mxu0 %v745
    %2257 = vmatprep.subr.mxu0 %v749
    %2258 = vmatpush1.msra.mxu0 %v748
    %2259 = vmatprep.subr.mxu0 %v752
    %2260 = vmatpush1.msra.mxu0 %v751
    %2261 = vmatprep.subr.mxu0 %v755
    %2262 = vmatpush1.msra.mxu0 %v754
    %2263 = vmatprep.subr.mxu0 %v758
    %2264 = vmatpush1.msra.mxu0 %v757
    %2265 = vmatprep.subr.mxu0 %v761
    %2266 = vmatpush1.msra.mxu0 %v760
    %2267 = vmatprep.subr.mxu0 %v764
    %2268 = vmatpush1.msra.mxu0 %v763
    %2269 = vmatprep.subr.mxu0 %v767
    %2270 = vmatpush1.msra.mxu0 %v766
    %2271 = vmatprep.subr.mxu0 %v770
    %2272 = vmatpush1.msra.mxu0 %v769
    %2273 = vmatprep.subr.mxu0 0.0
    %2274 = vmatpush1.msra.mxu0 0.0
    %2275 = vmatprep.subr.mxu0 0.0
    %2276 = vmatpush1.msra.mxu0 0.0
    %2277 = vmatprep.subr.mxu0 0.0
    %2278 = vmatpush1.msra.mxu0 0.0
    %2279 = vmatprep.subr.mxu0 0.0
    %2280 = vmatpush1.msra.mxu0 0.0
    %2281 = vmatprep.subr.mxu0 0.0
    %2282 = vmatpush1.msra.mxu0 0.0
    %2283 = vmatprep.subr.mxu0 0.0
    %2284 = vmatpush1.msra.mxu0 0.0
    %2285 = vmatprep.subr.mxu0 0.0
    %2286 = vmatpush1.msra.mxu0 0.0
    %2287 = vmatprep.subr.mxu0 0.0
    %2288 = vmatpush1.msra.mxu0 0.0
    %2289 = vmatprep.subr.mxu0 0.0
    %2290 = vmatpush1.msra.mxu0 0.0
    %2291 = vmatprep.subr.mxu0 0.0
    %2292 = vmatpush1.msra.mxu0 0.0
    %2293 = vmatprep.subr.mxu0 0.0
    %2294 = vmatpush1.msra.mxu0 0.0
    %2295 = vmatprep.subr.mxu0 0.0
    %2296 = vmatpush1.msra.mxu0 0.0
    %2297 = vmatprep.subr.mxu0 0.0
    %2298 = vmatpush1.msra.mxu0 0.0
    %2299 = vmatprep.subr.mxu0 0.0
    %2300 = vmatpush1.msra.mxu0 0.0
    %2301 = vmatprep.subr.mxu0 0.0
    %2302 = vmatpush1.msra.mxu0 0.0
    %2303 = vmatprep.subr.mxu0 0.0
    %2304 = vmatpush1.msra.mxu0 0.0
    %2305 = vmatprep.mubr.f32.mxu0 0.0
    %2306 = vmatmul.mubr.f32.gmra.mrb[0].mxu0 %v2239
    %v2307 = vpop.f32.mrb[0].mxu0
    %v2308 = vadd.f32 %v777, %v2307
    %v2309 = vpop.f32.mrb[0].mxu0
    %v2310 = vadd.f32 %v781, %v2309
    %2311 = vdwg.mxu0
    %2312 = vmatprep.subr.mxu0 0.0
    %2313 = vmatpush1.msra.mxu0 %v726
    %2314 = vmatprep.subr.mxu0 0.0
    %2315 = vmatpush1.msra.mxu0 %v729
    %2316 = vmatprep.subr.mxu0 0.0
    %2317 = vmatpush1.msra.mxu0 %v732
    %2318 = vmatprep.subr.mxu0 0.0
    %2319 = vmatpush1.msra.mxu0 %v735
    %2320 = vmatprep.subr.mxu0 0.0
    %2321 = vmatpush1.msra.mxu0 %v738
    %2322 = vmatprep.subr.mxu0 0.0
    %2323 = vmatpush1.msra.mxu0 %v741
    %2324 = vmatprep.subr.mxu0 0.0
    %2325 = vmatpush1.msra.mxu0 %v744
    %2326 = vmatprep.subr.mxu0 0.0
    %2327 = vmatpush1.msra.mxu0 %v747
    %2328 = vmatprep.subr.mxu0 0.0
    %2329 = vmatpush1.msra.mxu0 %v750
    %2330 = vmatprep.subr.mxu0 0.0
    %2331 = vmatpush1.msra.mxu0 %v753
    %2332 = vmatprep.subr.mxu0 0.0
    %2333 = vmatpush1.msra.mxu0 %v756
    %2334 = vmatprep.subr.mxu0 0.0
    %2335 = vmatpush1.msra.mxu0 %v759
    %2336 = vmatprep.subr.mxu0 0.0
    %2337 = vmatpush1.msra.mxu0 %v762
    %2338 = vmatprep.subr.mxu0 0.0
    %2339 = vmatpush1.msra.mxu0 %v765
    %2340 = vmatprep.subr.mxu0 0.0
    %2341 = vmatpush1.msra.mxu0 %v768
    %2342 = vmatprep.subr.mxu0 0.0
    %2343 = vmatpush1.msra.mxu0 %v771
    %2344 = vmatprep.subr.mxu0 0.0
    %2345 = vmatpush1.msra.mxu0 0.0
    %2346 = vmatprep.subr.mxu0 0.0
    %2347 = vmatpush1.msra.mxu0 0.0
    %2348 = vmatprep.subr.mxu0 0.0
    %2349 = vmatpush1.msra.mxu0 0.0
    %2350 = vmatprep.subr.mxu0 0.0
    %2351 = vmatpush1.msra.mxu0 0.0
    %2352 = vmatprep.subr.mxu0 0.0
    %2353 = vmatpush1.msra.mxu0 0.0
    %2354 = vmatprep.subr.mxu0 0.0
    %2355 = vmatpush1.msra.mxu0 0.0
    %2356 = vmatprep.subr.mxu0 0.0
    %2357 = vmatpush1.msra.mxu0 0.0
    %2358 = vmatprep.subr.mxu0 0.0
    %2359 = vmatpush1.msra.mxu0 0.0
    %2360 = vmatprep.subr.mxu0 0.0
    %2361 = vmatpush1.msra.mxu0 0.0
    %2362 = vmatprep.subr.mxu0 0.0
    %2363 = vmatpush1.msra.mxu0 0.0
    %2364 = vmatprep.subr.mxu0 0.0
    %2365 = vmatpush1.msra.mxu0 0.0
    %2366 = vmatprep.subr.mxu0 0.0
    %2367 = vmatpush1.msra.mxu0 0.0
    %2368 = vmatprep.subr.mxu0 0.0
    %2369 = vmatpush1.msra.mxu0 0.0
    %2370 = vmatprep.subr.mxu0 0.0
    %2371 = vmatpush1.msra.mxu0 0.0
    %2372 = vmatprep.subr.mxu0 0.0
    %2373 = vmatpush1.msra.mxu0 0.0
    %2374 = vmatprep.subr.mxu0 0.0
    %2375 = vmatpush1.msra.mxu0 0.0
    %2376 = vmatprep.mubr.f32.mxu0 0.0
    %2377 = vmatmul.mubr.f32.gmra.mrb[0].mxu0 %v2239
    %v2378 = vpop.f32.mrb[0].mxu0
    %v2379 = vadd.f32 %v785, %v2378
    %v2380 = vpop.f32.mrb[0].mxu0
    %2381 = vdwg.mxu0
    %v2383 = vcombine.high %v2308, %v2308
    %v2385 = vunpack.c.l.s4 1983009808
    %v2386 = vunpack.c.0.s8 %v2385
    %v2387 = vlaneseq
    %v2388 = vshrl.u32 %v2387, 7
    %v2389 = vsub.s32 %v2386, %v2388
    %v2390 = vrot.slane %v2308, %v2389
    %v2392 = vunpack.c.l.s4 1983009808
    %v2393 = vunpack.c.0.s8 %v2392
    %v2394 = vlaneseq
    %v2395 = vshrl.u32 %v2394, 7
    %v2396 = vsub.s32 %v2393, %v2395
    %v2397 = vrot.slane %v2383, %v2396
    %v2398 = vcombine.high %v2390, %v2390
    %v2399 = vcombine.high %v2397, %v2397
    %v2400 = vrot.slane %v2390, 7
    %v2401 = vrot.slane %v2398, 7
    %v2402 = vrot.slane %v2397, 7
    %v2403 = vrot.slane %v2399, 7
    %v2412 = vadd.f32 %v522, %v2400
    %v2413 = vadd.f32 %v556, %v2390
    %v2414 = vadd.f32 %v559, %v2401
    %v2415 = vadd.f32 %v593, %v2398
    %v2416 = vadd.f32 %v627, %v2402
    %v2417 = vadd.f32 %v661, %v2397
    %v2418 = vadd.f32 %v664, %v2403
    %v2419 = vadd.f32 %v698, %v2399
    %v2420 = vxor.u32 %v2412, 2147483648
    %v2421 = vxor.u32 %v2413, 2147483648
    %v2422 = vxor.u32 %v2414, 2147483648
    %v2423 = vxor.u32 %v2415, 2147483648
    %v2424 = vxor.u32 %v2416, 2147483648
    %v2425 = vxor.u32 %v2417, 2147483648
    %v2426 = vxor.u32 %v2418, 2147483648
    %v2427 = vxor.u32 %v2419, 2147483648
    %v2428 = vmul.f32 %v2420, 1.442695
    %v2429 = vpow.pop %v2428
    %v2430 = vmul.f32 %v2421, 1.442695
    %v2431 = vpow.pop %v2430
    %v2432 = vmul.f32 %v2422, 1.442695
    %v2433 = vpow.pop %v2432
    %v2434 = vmul.f32 %v2423, 1.442695
    %v2435 = vpow.pop %v2434
    %v2436 = vmul.f32 %v2424, 1.442695
    %v2437 = vpow.pop %v2436
    %v2438 = vmul.f32 %v2425, 1.442695
    %v2439 = vpow.pop %v2438
    %v2440 = vmul.f32 %v2426, 1.442695
    %v2441 = vpow.pop %v2440
    %v2442 = vmul.f32 %v2427, 1.442695
    %v2443 = vpow.pop %v2442
    %v2444 = vadd.f32 %v2429, 1.0
    %v2445 = vadd.f32 %v2431, 1.0
    %v2446 = vadd.f32 %v2433, 1.0
    %v2447 = vadd.f32 %v2435, 1.0
    %v2448 = vadd.f32 %v2437, 1.0
    %v2449 = vadd.f32 %v2439, 1.0
    %v2450 = vadd.f32 %v2441, 1.0
    %v2451 = vadd.f32 %v2443, 1.0
    %v2452 = vrcp.pop %v2444
    %v2453 = vmul.f32 1.0, %v2452
    %v2454 = vrcp.pop %v2445
    %v2455 = vmul.f32 1.0, %v2454
    %v2456 = vrcp.pop %v2446
    %v2457 = vmul.f32 1.0, %v2456
    %v2458 = vrcp.pop %v2447
    %v2459 = vmul.f32 1.0, %v2458
    %v2460 = vrcp.pop %v2448
    %v2461 = vmul.f32 1.0, %v2460
    %v2462 = vrcp.pop %v2449
    %v2463 = vmul.f32 1.0, %v2462
    %v2464 = vrcp.pop %v2450
    %v2465 = vmul.f32 1.0, %v2464
    %v2466 = vrcp.pop %v2451
    %v2467 = vmul.f32 1.0, %v2466
    %v2469 = vcombine.high %v2310, %v2310
    %v2471 = vunpack.c.l.s4 1983009808
    %v2472 = vunpack.c.0.s8 %v2471
    %v2473 = vlaneseq
    %v2474 = vshrl.u32 %v2473, 7
    %v2475 = vsub.s32 %v2472, %v2474
    %v2476 = vrot.slane %v2310, %v2475
    %v2478 = vunpack.c.l.s4 1983009808
    %v2479 = vunpack.c.0.s8 %v2478
    %v2480 = vlaneseq
    %v2481 = vshrl.u32 %v2480, 7
    %v2482 = vsub.s32 %v2479, %v2481
    %v2483 = vrot.slane %v2469, %v2482
    %v2484 = vcombine.high %v2476, %v2476
    %v2485 = vcombine.high %v2483, %v2483
    %v2486 = vrot.slane %v2476, 7
    %v2487 = vrot.slane %v2484, 7
    %v2488 = vrot.slane %v2483, 7
    %v2489 = vrot.slane %v2485, 7
    %v2498 = vadd.f32 %v1965, %v2486
    %v2499 = vadd.f32 %v1966, %v2476
    %v2500 = vadd.f32 %v1967, %v2487
    %v2501 = vadd.f32 %v1968, %v2484
    %v2502 = vadd.f32 %v1969, %v2488
    %v2503 = vadd.f32 %v1970, %v2483
    %v2504 = vadd.f32 %v1971, %v2489
    %v2505 = vadd.f32 %v1972, %v2485
    %v2506 = vxor.u32 %v2498, 2147483648
    %v2507 = vxor.u32 %v2499, 2147483648
    %v2508 = vxor.u32 %v2500, 2147483648
    %v2509 = vxor.u32 %v2501, 2147483648
    %v2510 = vxor.u32 %v2502, 2147483648
    %v2511 = vxor.u32 %v2503, 2147483648
    %v2512 = vxor.u32 %v2504, 2147483648
    %v2513 = vxor.u32 %v2505, 2147483648
    %v2514 = vmul.f32 %v2506, 1.442695
    %v2515 = vpow.pop %v2514
    %v2516 = vmul.f32 %v2507, 1.442695
    %v2517 = vpow.pop %v2516
    %v2518 = vmul.f32 %v2508, 1.442695
    %v2519 = vpow.pop %v2518
    %v2520 = vmul.f32 %v2509, 1.442695
    %v2521 = vpow.pop %v2520
    %v2522 = vmul.f32 %v2510, 1.442695
    %v2523 = vpow.pop %v2522
    %v2524 = vmul.f32 %v2511, 1.442695
    %v2525 = vpow.pop %v2524
    %v2526 = vmul.f32 %v2512, 1.442695
    %v2527 = vpow.pop %v2526
    %v2528 = vmul.f32 %v2513, 1.442695
    %v2529 = vpow.pop %v2528
    %v2530 = vadd.f32 %v2515, 1.0
    %v2531 = vadd.f32 %v2517, 1.0
    %v2532 = vadd.f32 %v2519, 1.0
    %v2533 = vadd.f32 %v2521, 1.0
    %v2534 = vadd.f32 %v2523, 1.0
    %v2535 = vadd.f32 %v2525, 1.0
    %v2536 = vadd.f32 %v2527, 1.0
    %v2537 = vadd.f32 %v2529, 1.0
    %v2538 = vrcp.pop %v2530
    %v2539 = vmul.f32 1.0, %v2538
    %v2540 = vrcp.pop %v2531
    %v2541 = vmul.f32 1.0, %v2540
    %v2542 = vrcp.pop %v2532
    %v2543 = vmul.f32 1.0, %v2542
    %v2544 = vrcp.pop %v2533
    %v2545 = vmul.f32 1.0, %v2544
    %v2546 = vrcp.pop %v2534
    %v2547 = vmul.f32 1.0, %v2546
    %v2548 = vrcp.pop %v2535
    %v2549 = vmul.f32 1.0, %v2548
    %v2550 = vrcp.pop %v2536
    %v2551 = vmul.f32 1.0, %v2550
    %v2552 = vrcp.pop %v2537
    %v2553 = vmul.f32 1.0, %v2552
    %v2555 = vcombine.high %v2379, %v2379
    %v2557 = vunpack.c.l.s4 1983009808
    %v2558 = vunpack.c.0.s8 %v2557
    %v2559 = vlaneseq
    %v2560 = vshrl.u32 %v2559, 7
    %v2561 = vsub.s32 %v2558, %v2560
    %v2562 = vrot.slane %v2379, %v2561
    %v2564 = vunpack.c.l.s4 1983009808
    %v2565 = vunpack.c.0.s8 %v2564
    %v2566 = vlaneseq
    %v2567 = vshrl.u32 %v2566, 7
    %v2568 = vsub.s32 %v2565, %v2567
    %v2569 = vrot.slane %v2555, %v2568
    %v2570 = vcombine.high %v2562, %v2562
    %v2571 = vcombine.high %v2569, %v2569
    %v2572 = vrot.slane %v2562, 7
    %v2573 = vrot.slane %v2570, 7
    %v2574 = vrot.slane %v2569, 7
    %v2575 = vrot.slane %v2571, 7
    %v2584 = vmul.f32 %v2453, %v2572
    %v2585 = vmul.f32 %v2455, %v2562
    %v2586 = vmul.f32 %v2457, %v2573
    %v2587 = vmul.f32 %v2459, %v2570
    %v2588 = vmul.f32 %v2461, %v2574
    %v2589 = vmul.f32 %v2463, %v2569
    %v2590 = vmul.f32 %v2465, %v2575
    %v2591 = vmul.f32 %v2467, %v2571
    %v2592 = vadd.f32 %v2105, %v2584
    %v2593 = vadd.f32 %v2106, %v2585
    %v2594 = vadd.f32 %v2107, %v2586
    %v2595 = vadd.f32 %v2108, %v2587
    %v2596 = vadd.f32 %v2109, %v2588
    %v2597 = vadd.f32 %v2110, %v2589
    %v2598 = vadd.f32 %v2111, %v2590
    %v2599 = vadd.f32 %v2112, %v2591
    %v2600 = vtanh.pop %v2592
    %v2601 = vtanh.pop %v2593
    %v2602 = vtanh.pop %v2594
    %v2603 = vtanh.pop %v2595
    %v2604 = vtanh.pop %v2596
    %v2605 = vtanh.pop %v2597
    %v2606 = vtanh.pop %v2598
    %v2607 = vtanh.pop %v2599
    %v2608 = vsub.f32 1.0, %v2539
    %v2609 = vsub.f32 1.0, %v2541
    %v2610 = vsub.f32 1.0, %v2543
    %v2611 = vsub.f32 1.0, %v2545
    %v2612 = vsub.f32 1.0, %v2547
    %v2613 = vsub.f32 1.0, %v2549
    %v2614 = vsub.f32 1.0, %v2551
    %v2615 = vsub.f32 1.0, %v2553
    %v2616 = vmul.f32 %v2608, %v2600
    %v2617 = vmul.f32 %v2609, %v2601
    %v2618 = vmul.f32 %v2610, %v2602
    %v2619 = vmul.f32 %v2611, %v2603
    %v2620 = vmul.f32 %v2612, %v2604
    %v2621 = vmul.f32 %v2613, %v2605
    %v2622 = vmul.f32 %v2614, %v2606
    %v2623 = vmul.f32 %v2615, %v2607
    %v2624 = vrot.slane %v2185, 7
    %v2625 = vrot.slane %v2186, 7
    %v2626 = vrot.slane %v2187, 7
    %v2627 = vrot.slane %v2188, 7
    %v2628 = vrot.slane %v2189, 7
    %v2629 = vrot.slane %v2190, 7
    %v2630 = vrot.slane %v2191, 7
    %v2631 = vrot.slane %v2192, 7
    %v2640 = vmul.f32 %v2539, %v2624
    %v2641 = vmul.f32 %v2541, %v2625
    %v2642 = vmul.f32 %v2543, %v2626
    %v2643 = vmul.f32 %v2545, %v2627
    %v2644 = vmul.f32 %v2547, %v2628
    %v2645 = vmul.f32 %v2549, %v2629
    %v2646 = vmul.f32 %v2551, %v2630
    %v2647 = vmul.f32 %v2553, %v2631
    %v2648 = vadd.f32 %v2616, %v2640
    %v2649 = vadd.f32 %v2617, %v2641
    %v2650 = vadd.f32 %v2618, %v2642
    %v2651 = vadd.f32 %v2619, %v2643
    %v2652 = vadd.f32 %v2620, %v2644
    %v2653 = vadd.f32 %v2621, %v2645
    %v2654 = vadd.f32 %v2622, %v2646
    %v2655 = vadd.f32 %v2623, %v2647
    %v2664 = vlaneseq
    %v2665 = vshrl.u32 %v2664, 7
    %v2666 = vsub.s32 1, %v2665
    %v2667 = vrot.slane %v2648, %v2666
    %v2668 = vlaneseq
    %v2669 = vshrl.u32 %v2668, 7
    %v2670 = vsub.s32 1, %v2669
    %v2671 = vrot.slane %v2649, %v2670
    %v2672 = vlaneseq
    %v2673 = vshrl.u32 %v2672, 7
    %v2674 = vsub.s32 1, %v2673
    %v2675 = vrot.slane %v2650, %v2674
    %v2676 = vlaneseq
    %v2677 = vshrl.u32 %v2676, 7
    %v2678 = vsub.s32 1, %v2677
    %v2679 = vrot.slane %v2651, %v2678
    %v2680 = vlaneseq
    %v2681 = vshrl.u32 %v2680, 7
    %v2682 = vsub.s32 1, %v2681
    %v2683 = vrot.slane %v2652, %v2682
    %v2684 = vlaneseq
    %v2685 = vshrl.u32 %v2684, 7
    %v2686 = vsub.s32 1, %v2685
    %v2687 = vrot.slane %v2653, %v2686
    %v2688 = vlaneseq
    %v2689 = vshrl.u32 %v2688, 7
    %v2690 = vsub.s32 1, %v2689
    %v2691 = vrot.slane %v2654, %v2690
    %v2692 = vlaneseq
    %v2693 = vshrl.u32 %v2692, 7
    %v2694 = vsub.s32 1, %v2693
    %v2695 = vrot.slane %v2655, %v2694
    %v2696 = vsel %vm1260, %v2671, %v2667
    %v2697 = vsel %vm1262, %v2675, %v2696
    %v2698 = vsel %vm1264, %v2679, %v2697
    %v2699 = vsel %vm1266, %v2683, %v2698
    %v2700 = vsel %vm1268, %v2687, %v2699
    %v2701 = vsel %vm1270, %v2691, %v2700
    %v2702 = vsel %vm1272, %v2695, %v2701
    %2704 = vmatprep.subr.mxu0 %v725
    %2705 = vmatpush1.msra.mxu0 %v724
    %2706 = vmatprep.subr.mxu0 %v728
    %2707 = vmatpush1.msra.mxu0 %v727
    %2708 = vmatprep.subr.mxu0 %v731
    %2709 = vmatpush1.msra.mxu0 %v730
    %2710 = vmatprep.subr.mxu0 %v734
    %2711 = vmatpush1.msra.mxu0 %v733
    %2712 = vmatprep.subr.mxu0 %v737
    %2713 = vmatpush1.msra.mxu0 %v736
    %2714 = vmatprep.subr.mxu0 %v740
    %2715 = vmatpush1.msra.mxu0 %v739
    %2716 = vmatprep.subr.mxu0 %v743
    %2717 = vmatpush1.msra.mxu0 %v742
    %2718 = vmatprep.subr.mxu0 %v746
    %2719 = vmatpush1.msra.mxu0 %v745
    %2720 = vmatprep.subr.mxu0 %v749
    %2721 = vmatpush1.msra.mxu0 %v748
    %2722 = vmatprep.subr.mxu0 %v752
    %2723 = vmatpush1.msra.mxu0 %v751
    %2724 = vmatprep.subr.mxu0 %v755
    %2725 = vmatpush1.msra.mxu0 %v754
    %2726 = vmatprep.subr.mxu0 %v758
    %2727 = vmatpush1.msra.mxu0 %v757
    %2728 = vmatprep.subr.mxu0 %v761
    %2729 = vmatpush1.msra.mxu0 %v760
    %2730 = vmatprep.subr.mxu0 %v764
    %2731 = vmatpush1.msra.mxu0 %v763
    %2732 = vmatprep.subr.mxu0 %v767
    %2733 = vmatpush1.msra.mxu0 %v766
    %2734 = vmatprep.subr.mxu0 %v770
    %2735 = vmatpush1.msra.mxu0 %v769
    %2736 = vmatprep.subr.mxu0 0.0
    %2737 = vmatpush1.msra.mxu0 0.0
    %2738 = vmatprep.subr.mxu0 0.0
    %2739 = vmatpush1.msra.mxu0 0.0
    %2740 = vmatprep.subr.mxu0 0.0
    %2741 = vmatpush1.msra.mxu0 0.0
    %2742 = vmatprep.subr.mxu0 0.0
    %2743 = vmatpush1.msra.mxu0 0.0
    %2744 = vmatprep.subr.mxu0 0.0
    %2745 = vmatpush1.msra.mxu0 0.0
    %2746 = vmatprep.subr.mxu0 0.0
    %2747 = vmatpush1.msra.mxu0 0.0
    %2748 = vmatprep.subr.mxu0 0.0
    %2749 = vmatpush1.msra.mxu0 0.0
    %2750 = vmatprep.subr.mxu0 0.0
    %2751 = vmatpush1.msra.mxu0 0.0
    %2752 = vmatprep.subr.mxu0 0.0
    %2753 = vmatpush1.msra.mxu0 0.0
    %2754 = vmatprep.subr.mxu0 0.0
    %2755 = vmatpush1.msra.mxu0 0.0
    %2756 = vmatprep.subr.mxu0 0.0
    %2757 = vmatpush1.msra.mxu0 0.0
    %2758 = vmatprep.subr.mxu0 0.0
    %2759 = vmatpush1.msra.mxu0 0.0
    %2760 = vmatprep.subr.mxu0 0.0
    %2761 = vmatpush1.msra.mxu0 0.0
    %2762 = vmatprep.subr.mxu0 0.0
    %2763 = vmatpush1.msra.mxu0 0.0
    %2764 = vmatprep.subr.mxu0 0.0
    %2765 = vmatpush1.msra.mxu0 0.0
    %2766 = vmatprep.subr.mxu0 0.0
    %2767 = vmatpush1.msra.mxu0 0.0
    %2768 = vmatprep.mubr.f32.mxu0 0.0
    %2769 = vmatmul.mubr.f32.gmra.mrb[0].mxu0 %v2702
    %v2770 = vpop.f32.mrb[0].mxu0
    %v2771 = vadd.f32 %v777, %v2770
    %v2772 = vpop.f32.mrb[0].mxu0
    %v2773 = vadd.f32 %v781, %v2772
    %2774 = vdwg.mxu0
    %2775 = vmatprep.subr.mxu0 0.0
    %2776 = vmatpush1.msra.mxu0 %v726
    %2777 = vmatprep.subr.mxu0 0.0
    %2778 = vmatpush1.msra.mxu0 %v729
    %2779 = vmatprep.subr.mxu0 0.0
    %2780 = vmatpush1.msra.mxu0 %v732
    %2781 = vmatprep.subr.mxu0 0.0
    %2782 = vmatpush1.msra.mxu0 %v735
    %2783 = vmatprep.subr.mxu0 0.0
    %2784 = vmatpush1.msra.mxu0 %v738
    %2785 = vmatprep.subr.mxu0 0.0
    %2786 = vmatpush1.msra.mxu0 %v741
    %2787 = vmatprep.subr.mxu0 0.0
    %2788 = vmatpush1.msra.mxu0 %v744
    %2789 = vmatprep.subr.mxu0 0.0
    %2790 = vmatpush1.msra.mxu0 %v747
    %2791 = vmatprep.subr.mxu0 0.0
    %2792 = vmatpush1.msra.mxu0 %v750
    %2793 = vmatprep.subr.mxu0 0.0
    %2794 = vmatpush1.msra.mxu0 %v753
    %2795 = vmatprep.subr.mxu0 0.0
    %2796 = vmatpush1.msra.mxu0 %v756
    %2797 = vmatprep.subr.mxu0 0.0
    %2798 = vmatpush1.msra.mxu0 %v759
    %2799 = vmatprep.subr.mxu0 0.0
    %2800 = vmatpush1.msra.mxu0 %v762
    %2801 = vmatprep.subr.mxu0 0.0
    %2802 = vmatpush1.msra.mxu0 %v765
    %2803 = vmatprep.subr.mxu0 0.0
    %2804 = vmatpush1.msra.mxu0 %v768
    %2805 = vmatprep.subr.mxu0 0.0
    %2806 = vmatpush1.msra.mxu0 %v771
    %2807 = vmatprep.subr.mxu0 0.0
    %2808 = vmatpush1.msra.mxu0 0.0
    %2809 = vmatprep.subr.mxu0 0.0
    %2810 = vmatpush1.msra.mxu0 0.0
    %2811 = vmatprep.subr.mxu0 0.0
    %2812 = vmatpush1.msra.mxu0 0.0
    %2813 = vmatprep.subr.mxu0 0.0
    %2814 = vmatpush1.msra.mxu0 0.0
    %2815 = vmatprep.subr.mxu0 0.0
    %2816 = vmatpush1.msra.mxu0 0.0
    %2817 = vmatprep.subr.mxu0 0.0
    %2818 = vmatpush1.msra.mxu0 0.0
    %2819 = vmatprep.subr.mxu0 0.0
    %2820 = vmatpush1.msra.mxu0 0.0
    %2821 = vmatprep.subr.mxu0 0.0
    %2822 = vmatpush1.msra.mxu0 0.0
    %2823 = vmatprep.subr.mxu0 0.0
    %2824 = vmatpush1.msra.mxu0 0.0
    %2825 = vmatprep.subr.mxu0 0.0
    %2826 = vmatpush1.msra.mxu0 0.0
    %2827 = vmatprep.subr.mxu0 0.0
    %2828 = vmatpush1.msra.mxu0 0.0
    %2829 = vmatprep.subr.mxu0 0.0
    %2830 = vmatpush1.msra.mxu0 0.0
    %2831 = vmatprep.subr.mxu0 0.0
    %2832 = vmatpush1.msra.mxu0 0.0
    %2833 = vmatprep.subr.mxu0 0.0
    %2834 = vmatpush1.msra.mxu0 0.0
    %2835 = vmatprep.subr.mxu0 0.0
    %2836 = vmatpush1.msra.mxu0 0.0
    %2837 = vmatprep.subr.mxu0 0.0
    %2838 = vmatpush1.msra.mxu0 0.0
    %2839 = vmatprep.mubr.f32.mxu0 0.0
    %2840 = vmatmul.mubr.f32.gmra.mrb[0].mxu0 %v2702
    %v2841 = vpop.f32.mrb[0].mxu0
    %v2842 = vadd.f32 %v785, %v2841
    %v2843 = vpop.f32.mrb[0].mxu0
    %2844 = vdwg.mxu0
    %v2846 = vcombine.high %v2771, %v2771
    %v2848 = vunpack.c.l.s4 1983009808
    %v2849 = vunpack.c.0.s8 %v2848
    %v2850 = vlaneseq
    %v2851 = vshrl.u32 %v2850, 7
    %v2852 = vsub.s32 %v2849, %v2851
    %v2853 = vrot.slane %v2771, %v2852
    %v2855 = vunpack.c.l.s4 1983009808
    %v2856 = vunpack.c.0.s8 %v2855
    %v2857 = vlaneseq
    %v2858 = vshrl.u32 %v2857, 7
    %v2859 = vsub.s32 %v2856, %v2858
    %v2860 = vrot.slane %v2846, %v2859
    %v2861 = vcombine.high %v2853, %v2853
    %v2862 = vcombine.high %v2860, %v2860
    %v2863 = vrot.slane %v2853, 1
    %v2864 = vrot.slane %v2861, 1
    %v2865 = vrot.slane %v2860, 1
    %v2866 = vrot.slane %v2862, 1
    %v2875 = vadd.f32 %v523, %v2853
    %v2876 = vadd.f32 %v557, %v2863
    %v2877 = vadd.f32 %v591, %v2861
    %v2878 = vadd.f32 %v594, %v2864
    %v2879 = vadd.f32 %v628, %v2860
    %v2880 = vadd.f32 %v662, %v2865
    %v2881 = vadd.f32 %v696, %v2862
    %v2882 = vadd.f32 %v699, %v2866
    %v2883 = vxor.u32 %v2875, 2147483648
    %v2884 = vxor.u32 %v2876, 2147483648
    %v2885 = vxor.u32 %v2877, 2147483648
    %v2886 = vxor.u32 %v2878, 2147483648
    %v2887 = vxor.u32 %v2879, 2147483648
    %v2888 = vxor.u32 %v2880, 2147483648
    %v2889 = vxor.u32 %v2881, 2147483648
    %v2890 = vxor.u32 %v2882, 2147483648
    %v2891 = vmul.f32 %v2883, 1.442695
    %v2892 = vpow.pop %v2891
    %v2893 = vmul.f32 %v2884, 1.442695
    %v2894 = vpow.pop %v2893
    %v2895 = vmul.f32 %v2885, 1.442695
    %v2896 = vpow.pop %v2895
    %v2897 = vmul.f32 %v2886, 1.442695
    %v2898 = vpow.pop %v2897
    %v2899 = vmul.f32 %v2887, 1.442695
    %v2900 = vpow.pop %v2899
    %v2901 = vmul.f32 %v2888, 1.442695
    %v2902 = vpow.pop %v2901
    %v2903 = vmul.f32 %v2889, 1.442695
    %v2904 = vpow.pop %v2903
    %v2905 = vmul.f32 %v2890, 1.442695
    %v2906 = vpow.pop %v2905
    %v2907 = vadd.f32 %v2892, 1.0
    %v2908 = vadd.f32 %v2894, 1.0
    %v2909 = vadd.f32 %v2896, 1.0
    %v2910 = vadd.f32 %v2898, 1.0
    %v2911 = vadd.f32 %v2900, 1.0
    %v2912 = vadd.f32 %v2902, 1.0
    %v2913 = vadd.f32 %v2904, 1.0
    %v2914 = vadd.f32 %v2906, 1.0
    %v2915 = vrcp.pop %v2907
    %v2916 = vmul.f32 1.0, %v2915
    %v2917 = vrcp.pop %v2908
    %v2918 = vmul.f32 1.0, %v2917
    %v2919 = vrcp.pop %v2909
    %v2920 = vmul.f32 1.0, %v2919
    %v2921 = vrcp.pop %v2910
    %v2922 = vmul.f32 1.0, %v2921
    %v2923 = vrcp.pop %v2911
    %v2924 = vmul.f32 1.0, %v2923
    %v2925 = vrcp.pop %v2912
    %v2926 = vmul.f32 1.0, %v2925
    %v2927 = vrcp.pop %v2913
    %v2928 = vmul.f32 1.0, %v2927
    %v2929 = vrcp.pop %v2914
    %v2930 = vmul.f32 1.0, %v2929
    %v2931 = vrot.slane %v523, 2
    %v2932 = vrot.slane %v557, 2
    %v2933 = vrot.slane %v591, 2
    %v2934 = vrot.slane %v594, 2
    %v2935 = vrot.slane %v628, 2
    %v2936 = vrot.slane %v662, 2
    %v2937 = vrot.slane %v696, 2
    %v2938 = vrot.slane %v699, 2
    %v2948 = vcombine.high %v2773, %v2773
    %v2950 = vunpack.c.l.s4 1983009808
    %v2951 = vunpack.c.0.s8 %v2950
    %v2952 = vlaneseq
    %v2953 = vshrl.u32 %v2952, 7
    %v2954 = vsub.s32 %v2951, %v2953
    %v2955 = vrot.slane %v2773, %v2954
    %v2957 = vunpack.c.l.s4 1983009808
    %v2958 = vunpack.c.0.s8 %v2957
    %v2959 = vlaneseq
    %v2960 = vshrl.u32 %v2959, 7
    %v2961 = vsub.s32 %v2958, %v2960
    %v2962 = vrot.slane %v2948, %v2961
    %v2963 = vcombine.high %v2955, %v2955
    %v2964 = vcombine.high %v2962, %v2962
    %v2965 = vrot.slane %v2955, 1
    %v2966 = vrot.slane %v2963, 1
    %v2967 = vrot.slane %v2962, 1
    %v2968 = vrot.slane %v2964, 1
    %v2977 = vadd.f32 %v2931, %v2955
    %v2978 = vadd.f32 %v2932, %v2965
    %v2979 = vadd.f32 %v2933, %v2963
    %v2980 = vadd.f32 %v2934, %v2966
    %v2981 = vadd.f32 %v2935, %v2962
    %v2982 = vadd.f32 %v2936, %v2967
    %v2983 = vadd.f32 %v2937, %v2964
    %v2984 = vadd.f32 %v2938, %v2968
    %v2985 = vxor.u32 %v2977, 2147483648
    %v2986 = vxor.u32 %v2978, 2147483648
    %v2987 = vxor.u32 %v2979, 2147483648
    %v2988 = vxor.u32 %v2980, 2147483648
    %v2989 = vxor.u32 %v2981, 2147483648
    %v2990 = vxor.u32 %v2982, 2147483648
    %v2991 = vxor.u32 %v2983, 2147483648
    %v2992 = vxor.u32 %v2984, 2147483648
    %v2993 = vmul.f32 %v2985, 1.442695
    %v2994 = vpow.pop %v2993
    %v2995 = vmul.f32 %v2986, 1.442695
    %v2996 = vpow.pop %v2995
    %v2997 = vmul.f32 %v2987, 1.442695
    %v2998 = vpow.pop %v2997
    %v2999 = vmul.f32 %v2988, 1.442695
    %v3000 = vpow.pop %v2999
    %v3001 = vmul.f32 %v2989, 1.442695
    %v3002 = vpow.pop %v3001
    %v3003 = vmul.f32 %v2990, 1.442695
    %v3004 = vpow.pop %v3003
    %v3005 = vmul.f32 %v2991, 1.442695
    %v3006 = vpow.pop %v3005
    %v3007 = vmul.f32 %v2992, 1.442695
    %v3008 = vpow.pop %v3007
    %v3009 = vadd.f32 %v2994, 1.0
    %v3010 = vadd.f32 %v2996, 1.0
    %v3011 = vadd.f32 %v2998, 1.0
    %v3012 = vadd.f32 %v3000, 1.0
    %v3013 = vadd.f32 %v3002, 1.0
    %v3014 = vadd.f32 %v3004, 1.0
    %v3015 = vadd.f32 %v3006, 1.0
    %v3016 = vadd.f32 %v3008, 1.0
    %v3017 = vrcp.pop %v3009
    %v3018 = vmul.f32 1.0, %v3017
    %v3019 = vrcp.pop %v3010
    %v3020 = vmul.f32 1.0, %v3019
    %v3021 = vrcp.pop %v3011
    %v3022 = vmul.f32 1.0, %v3021
    %v3023 = vrcp.pop %v3012
    %v3024 = vmul.f32 1.0, %v3023
    %v3025 = vrcp.pop %v3013
    %v3026 = vmul.f32 1.0, %v3025
    %v3027 = vrcp.pop %v3014
    %v3028 = vmul.f32 1.0, %v3027
    %v3029 = vrcp.pop %v3015
    %v3030 = vmul.f32 1.0, %v3029
    %v3031 = vrcp.pop %v3016
    %v3032 = vmul.f32 1.0, %v3031
    %v3034 = vcombine.high %v2842, %v2842
    %v3036 = vunpack.c.l.s4 1983009808
    %v3037 = vunpack.c.0.s8 %v3036
    %v3038 = vlaneseq
    %v3039 = vshrl.u32 %v3038, 7
    %v3040 = vsub.s32 %v3037, %v3039
    %v3041 = vrot.slane %v2842, %v3040
    %v3043 = vunpack.c.l.s4 1983009808
    %v3044 = vunpack.c.0.s8 %v3043
    %v3045 = vlaneseq
    %v3046 = vshrl.u32 %v3045, 7
    %v3047 = vsub.s32 %v3044, %v3046
    %v3048 = vrot.slane %v3034, %v3047
    %v3049 = vcombine.high %v3041, %v3041
    %v3050 = vcombine.high %v3048, %v3048
    %v3051 = vrot.slane %v3041, 1
    %v3052 = vrot.slane %v3049, 1
    %v3053 = vrot.slane %v3048, 1
    %v3054 = vrot.slane %v3050, 1
    %v3063 = vmul.f32 %v2916, %v3041
    %v3064 = vmul.f32 %v2918, %v3051
    %v3065 = vmul.f32 %v2920, %v3049
    %v3066 = vmul.f32 %v2922, %v3052
    %v3067 = vmul.f32 %v2924, %v3048
    %v3068 = vmul.f32 %v2926, %v3053
    %v3069 = vmul.f32 %v2928, %v3050
    %v3070 = vmul.f32 %v2930, %v3054
    %v3071 = vrot.slane %v523, 4
    %v3072 = vrot.slane %v557, 4
    %v3073 = vrot.slane %v591, 4
    %v3074 = vrot.slane %v594, 4
    %v3075 = vrot.slane %v628, 4
    %v3076 = vrot.slane %v662, 4
    %v3077 = vrot.slane %v696, 4
    %v3078 = vrot.slane %v699, 4
    %v3087 = vadd.f32 %v3071, %v3063
    %v3088 = vadd.f32 %v3072, %v3064
    %v3089 = vadd.f32 %v3073, %v3065
    %v3090 = vadd.f32 %v3074, %v3066
    %v3091 = vadd.f32 %v3075, %v3067
    %v3092 = vadd.f32 %v3076, %v3068
    %v3093 = vadd.f32 %v3077, %v3069
    %v3094 = vadd.f32 %v3078, %v3070
    %v3095 = vtanh.pop %v3087
    %v3096 = vtanh.pop %v3088
    %v3097 = vtanh.pop %v3089
    %v3098 = vtanh.pop %v3090
    %v3099 = vtanh.pop %v3091
    %v3100 = vtanh.pop %v3092
    %v3101 = vtanh.pop %v3093
    %v3102 = vtanh.pop %v3094
    %v3103 = vsub.f32 1.0, %v3018
    %v3104 = vsub.f32 1.0, %v3020
    %v3105 = vsub.f32 1.0, %v3022
    %v3106 = vsub.f32 1.0, %v3024
    %v3107 = vsub.f32 1.0, %v3026
    %v3108 = vsub.f32 1.0, %v3028
    %v3109 = vsub.f32 1.0, %v3030
    %v3110 = vsub.f32 1.0, %v3032
    %v3111 = vmul.f32 %v3103, %v3095
    %v3112 = vmul.f32 %v3104, %v3096
    %v3113 = vmul.f32 %v3105, %v3097
    %v3114 = vmul.f32 %v3106, %v3098
    %v3115 = vmul.f32 %v3107, %v3099
    %v3116 = vmul.f32 %v3108, %v3100
    %v3117 = vmul.f32 %v3109, %v3101
    %v3118 = vmul.f32 %v3110, %v3102
    %v3119 = vrot.slane %v2648, 7
    %v3120 = vrot.slane %v3119, 2
    %v3121 = vrot.slane %v2649, 7
    %v3122 = vrot.slane %v3121, 2
    %v3123 = vrot.slane %v2650, 7
    %v3124 = vrot.slane %v3123, 2
    %v3125 = vrot.slane %v2651, 7
    %v3126 = vrot.slane %v3125, 2
    %v3127 = vrot.slane %v2652, 7
    %v3128 = vrot.slane %v3127, 2
    %v3129 = vrot.slane %v2653, 7
    %v3130 = vrot.slane %v3129, 2
    %v3131 = vrot.slane %v2654, 7
    %v3132 = vrot.slane %v3131, 2
    %v3133 = vrot.slane %v2655, 7
    %v3134 = vrot.slane %v3133, 2
    %v3143 = vmul.f32 %v3018, %v3120
    %v3144 = vmul.f32 %v3020, %v3122
    %v3145 = vmul.f32 %v3022, %v3124
    %v3146 = vmul.f32 %v3024, %v3126
    %v3147 = vmul.f32 %v3026, %v3128
    %v3148 = vmul.f32 %v3028, %v3130
    %v3149 = vmul.f32 %v3030, %v3132
    %v3150 = vmul.f32 %v3032, %v3134
    %v3151 = vadd.f32 %v3111, %v3143
    %v3152 = vadd.f32 %v3112, %v3144
    %v3153 = vadd.f32 %v3113, %v3145
    %v3154 = vadd.f32 %v3114, %v3146
    %v3155 = vadd.f32 %v3115, %v3147
    %v3156 = vadd.f32 %v3116, %v3148
    %v3157 = vadd.f32 %v3117, %v3149
    %v3158 = vadd.f32 %v3118, %v3150
    %v3167 = vlaneseq
    %v3168 = vshrl.u32 %v3167, 7
    %v3169 = vsub.s32 0, %v3168
    %v3170 = vrot.slane %v3151, %v3169
    %v3171 = vlaneseq
    %v3172 = vshrl.u32 %v3171, 7
    %v3173 = vsub.s32 0, %v3172
    %v3174 = vrot.slane %v3152, %v3173
    %v3175 = vlaneseq
    %v3176 = vshrl.u32 %v3175, 7
    %v3177 = vsub.s32 0, %v3176
    %v3178 = vrot.slane %v3153, %v3177
    %v3179 = vlaneseq
    %v3180 = vshrl.u32 %v3179, 7
    %v3181 = vsub.s32 0, %v3180
    %v3182 = vrot.slane %v3154, %v3181
    %v3183 = vlaneseq
    %v3184 = vshrl.u32 %v3183, 7
    %v3185 = vsub.s32 0, %v3184
    %v3186 = vrot.slane %v3155, %v3185
    %v3187 = vlaneseq
    %v3188 = vshrl.u32 %v3187, 7
    %v3189 = vsub.s32 0, %v3188
    %v3190 = vrot.slane %v3156, %v3189
    %v3191 = vlaneseq
    %v3192 = vshrl.u32 %v3191, 7
    %v3193 = vsub.s32 0, %v3192
    %v3194 = vrot.slane %v3157, %v3193
    %v3195 = vlaneseq
    %v3196 = vshrl.u32 %v3195, 7
    %v3197 = vsub.s32 0, %v3196
    %v3198 = vrot.slane %v3158, %v3197
    %v3199 = vsel %vm1260, %v3174, %v3170
    %v3200 = vsel %vm1262, %v3178, %v3199
    %v3201 = vsel %vm1264, %v3182, %v3200
    %v3202 = vsel %vm1266, %v3186, %v3201
    %v3203 = vsel %vm1268, %v3190, %v3202
    %v3204 = vsel %vm1270, %v3194, %v3203
    %v3205 = vsel %vm1272, %v3198, %v3204
    %3207 = vmatprep.subr.mxu0 %v725
    %3208 = vmatpush1.msra.mxu0 %v724
    %3209 = vmatprep.subr.mxu0 %v728
    %3210 = vmatpush1.msra.mxu0 %v727
    %3211 = vmatprep.subr.mxu0 %v731
    %3212 = vmatpush1.msra.mxu0 %v730
    %3213 = vmatprep.subr.mxu0 %v734
    %3214 = vmatpush1.msra.mxu0 %v733
    %3215 = vmatprep.subr.mxu0 %v737
    %3216 = vmatpush1.msra.mxu0 %v736
    %3217 = vmatprep.subr.mxu0 %v740
    %3218 = vmatpush1.msra.mxu0 %v739
    %3219 = vmatprep.subr.mxu0 %v743
    %3220 = vmatpush1.msra.mxu0 %v742
    %3221 = vmatprep.subr.mxu0 %v746
    %3222 = vmatpush1.msra.mxu0 %v745
    %3223 = vmatprep.subr.mxu0 %v749
    %3224 = vmatpush1.msra.mxu0 %v748
    %3225 = vmatprep.subr.mxu0 %v752
    %3226 = vmatpush1.msra.mxu0 %v751
    %3227 = vmatprep.subr.mxu0 %v755
    %3228 = vmatpush1.msra.mxu0 %v754
    %3229 = vmatprep.subr.mxu0 %v758
    %3230 = vmatpush1.msra.mxu0 %v757
    %3231 = vmatprep.subr.mxu0 %v761
    %3232 = vmatpush1.msra.mxu0 %v760
    %3233 = vmatprep.subr.mxu0 %v764
    %3234 = vmatpush1.msra.mxu0 %v763
    %3235 = vmatprep.subr.mxu0 %v767
    %3236 = vmatpush1.msra.mxu0 %v766
    %3237 = vmatprep.subr.mxu0 %v770
    %3238 = vmatpush1.msra.mxu0 %v769
    %3239 = vmatprep.subr.mxu0 0.0
    %3240 = vmatpush1.msra.mxu0 0.0
    %3241 = vmatprep.subr.mxu0 0.0
    %3242 = vmatpush1.msra.mxu0 0.0
    %3243 = vmatprep.subr.mxu0 0.0
    %3244 = vmatpush1.msra.mxu0 0.0
    %3245 = vmatprep.subr.mxu0 0.0
    %3246 = vmatpush1.msra.mxu0 0.0
    %3247 = vmatprep.subr.mxu0 0.0
    %3248 = vmatpush1.msra.mxu0 0.0
    %3249 = vmatprep.subr.mxu0 0.0
    %3250 = vmatpush1.msra.mxu0 0.0
    %3251 = vmatprep.subr.mxu0 0.0
    %3252 = vmatpush1.msra.mxu0 0.0
    %3253 = vmatprep.subr.mxu0 0.0
    %3254 = vmatpush1.msra.mxu0 0.0
    %3255 = vmatprep.subr.mxu0 0.0
    %3256 = vmatpush1.msra.mxu0 0.0
    %3257 = vmatprep.subr.mxu0 0.0
    %3258 = vmatpush1.msra.mxu0 0.0
    %3259 = vmatprep.subr.mxu0 0.0
    %3260 = vmatpush1.msra.mxu0 0.0
    %3261 = vmatprep.subr.mxu0 0.0
    %3262 = vmatpush1.msra.mxu0 0.0
    %3263 = vmatprep.subr.mxu0 0.0
    %3264 = vmatpush1.msra.mxu0 0.0
    %3265 = vmatprep.subr.mxu0 0.0
    %3266 = vmatpush1.msra.mxu0 0.0
    %3267 = vmatprep.subr.mxu0 0.0
    %3268 = vmatpush1.msra.mxu0 0.0
    %3269 = vmatprep.subr.mxu0 0.0
    %3270 = vmatpush1.msra.mxu0 0.0
    %3271 = vmatprep.mubr.f32.mxu0 0.0
    %3272 = vmatmul.mubr.f32.gmra.mrb[0].mxu0 %v3205
    %v3273 = vpop.f32.mrb[0].mxu0
    %v3274 = vadd.f32 %v777, %v3273
    %v3275 = vpop.f32.mrb[0].mxu0
    %v3276 = vadd.f32 %v781, %v3275
    %3277 = vdwg.mxu0
    %3278 = vmatprep.subr.mxu0 0.0
    %3279 = vmatpush1.msra.mxu0 %v726
    %3280 = vmatprep.subr.mxu0 0.0
    %3281 = vmatpush1.msra.mxu0 %v729
    %3282 = vmatprep.subr.mxu0 0.0
    %3283 = vmatpush1.msra.mxu0 %v732
    %3284 = vmatprep.subr.mxu0 0.0
    %3285 = vmatpush1.msra.mxu0 %v735
    %3286 = vmatprep.subr.mxu0 0.0
    %3287 = vmatpush1.msra.mxu0 %v738
    %3288 = vmatprep.subr.mxu0 0.0
    %3289 = vmatpush1.msra.mxu0 %v741
    %3290 = vmatprep.subr.mxu0 0.0
    %3291 = vmatpush1.msra.mxu0 %v744
    %3292 = vmatprep.subr.mxu0 0.0
    %3293 = vmatpush1.msra.mxu0 %v747
    %3294 = vmatprep.subr.mxu0 0.0
    %3295 = vmatpush1.msra.mxu0 %v750
    %3296 = vmatprep.subr.mxu0 0.0
    %3297 = vmatpush1.msra.mxu0 %v753
    %3298 = vmatprep.subr.mxu0 0.0
    %3299 = vmatpush1.msra.mxu0 %v756
    %3300 = vmatprep.subr.mxu0 0.0
    %3301 = vmatpush1.msra.mxu0 %v759
    %3302 = vmatprep.subr.mxu0 0.0
    %3303 = vmatpush1.msra.mxu0 %v762
    %3304 = vmatprep.subr.mxu0 0.0
    %3305 = vmatpush1.msra.mxu0 %v765
    %3306 = vmatprep.subr.mxu0 0.0
    %3307 = vmatpush1.msra.mxu0 %v768
    %3308 = vmatprep.subr.mxu0 0.0
    %3309 = vmatpush1.msra.mxu0 %v771
    %3310 = vmatprep.subr.mxu0 0.0
    %3311 = vmatpush1.msra.mxu0 0.0
    %3312 = vmatprep.subr.mxu0 0.0
    %3313 = vmatpush1.msra.mxu0 0.0
    %3314 = vmatprep.subr.mxu0 0.0
    %3315 = vmatpush1.msra.mxu0 0.0
    %3316 = vmatprep.subr.mxu0 0.0
    %3317 = vmatpush1.msra.mxu0 0.0
    %3318 = vmatprep.subr.mxu0 0.0
    %3319 = vmatpush1.msra.mxu0 0.0
    %3320 = vmatprep.subr.mxu0 0.0
    %3321 = vmatpush1.msra.mxu0 0.0
    %3322 = vmatprep.subr.mxu0 0.0
    %3323 = vmatpush1.msra.mxu0 0.0
    %3324 = vmatprep.subr.mxu0 0.0
    %3325 = vmatpush1.msra.mxu0 0.0
    %3326 = vmatprep.subr.mxu0 0.0
    %3327 = vmatpush1.msra.mxu0 0.0
    %3328 = vmatprep.subr.mxu0 0.0
    %3329 = vmatpush1.msra.mxu0 0.0
    %3330 = vmatprep.subr.mxu0 0.0
    %3331 = vmatpush1.msra.mxu0 0.0
    %3332 = vmatprep.subr.mxu0 0.0
    %3333 = vmatpush1.msra.mxu0 0.0
    %3334 = vmatprep.subr.mxu0 0.0
    %3335 = vmatpush1.msra.mxu0 0.0
    %3336 = vmatprep.subr.mxu0 0.0
    %3337 = vmatpush1.msra.mxu0 0.0
    %3338 = vmatprep.subr.mxu0 0.0
    %3339 = vmatpush1.msra.mxu0 0.0
    %3340 = vmatprep.subr.mxu0 0.0
    %3341 = vmatpush1.msra.mxu0 0.0
    %3342 = vmatprep.mubr.f32.mxu0 0.0
    %3343 = vmatmul.mubr.f32.gmra.mrb[0].mxu0 %v3205
    %v3344 = vpop.f32.mrb[0].mxu0
    %v3345 = vadd.f32 %v785, %v3344
    %v3346 = vpop.f32.mrb[0].mxu0
    %3347 = vdwg.mxu0
    %v3349 = vcombine.high %v3274, %v3274
    %v3351 = vunpack.c.l.s4 1983009808
    %v3352 = vunpack.c.0.s8 %v3351
    %v3353 = vlaneseq
    %v3354 = vshrl.u32 %v3353, 7
    %v3355 = vsub.s32 %v3352, %v3354
    %v3356 = vrot.slane %v3274, %v3355
    %v3358 = vunpack.c.l.s4 1983009808
    %v3359 = vunpack.c.0.s8 %v3358
    %v3360 = vlaneseq
    %v3361 = vshrl.u32 %v3360, 7
    %v3362 = vsub.s32 %v3359, %v3361
    %v3363 = vrot.slane %v3349, %v3362
    %v3364 = vcombine.high %v3356, %v3356
    %v3365 = vcombine.high %v3363, %v3363
    %v3366 = vrot.slane %v3356, 7
    %v3367 = vrot.slane %v3364, 7
    %v3368 = vrot.slane %v3363, 7
    %v3369 = vrot.slane %v3365, 7
    %v3378 = vadd.f32 %v523, %v3366
    %v3379 = vadd.f32 %v557, %v3356
    %v3380 = vadd.f32 %v591, %v3367
    %v3381 = vadd.f32 %v594, %v3364
    %v3382 = vadd.f32 %v628, %v3368
    %v3383 = vadd.f32 %v662, %v3363
    %v3384 = vadd.f32 %v696, %v3369
    %v3385 = vadd.f32 %v699, %v3365
    %v3386 = vxor.u32 %v3378, 2147483648
    %v3387 = vxor.u32 %v3379, 2147483648
    %v3388 = vxor.u32 %v3380, 2147483648
    %v3389 = vxor.u32 %v3381, 2147483648
    %v3390 = vxor.u32 %v3382, 2147483648
    %v3391 = vxor.u32 %v3383, 2147483648
    %v3392 = vxor.u32 %v3384, 2147483648
    %v3393 = vxor.u32 %v3385, 2147483648
    %v3394 = vmul.f32 %v3386, 1.442695
    %v3395 = vpow.pop %v3394
    %v3396 = vmul.f32 %v3387, 1.442695
    %v3397 = vpow.pop %v3396
    %v3398 = vmul.f32 %v3388, 1.442695
    %v3399 = vpow.pop %v3398
    %v3400 = vmul.f32 %v3389, 1.442695
    %v3401 = vpow.pop %v3400
    %v3402 = vmul.f32 %v3390, 1.442695
    %v3403 = vpow.pop %v3402
    %v3404 = vmul.f32 %v3391, 1.442695
    %v3405 = vpow.pop %v3404
    %v3406 = vmul.f32 %v3392, 1.442695
    %v3407 = vpow.pop %v3406
    %v3408 = vmul.f32 %v3393, 1.442695
    %v3409 = vpow.pop %v3408
    %v3410 = vadd.f32 %v3395, 1.0
    %v3411 = vadd.f32 %v3397, 1.0
    %v3412 = vadd.f32 %v3399, 1.0
    %v3413 = vadd.f32 %v3401, 1.0
    %v3414 = vadd.f32 %v3403, 1.0
    %v3415 = vadd.f32 %v3405, 1.0
    %v3416 = vadd.f32 %v3407, 1.0
    %v3417 = vadd.f32 %v3409, 1.0
    %v3418 = vrcp.pop %v3410
    %v3419 = vmul.f32 1.0, %v3418
    %v3420 = vrcp.pop %v3411
    %v3421 = vmul.f32 1.0, %v3420
    %v3422 = vrcp.pop %v3412
    %v3423 = vmul.f32 1.0, %v3422
    %v3424 = vrcp.pop %v3413
    %v3425 = vmul.f32 1.0, %v3424
    %v3426 = vrcp.pop %v3414
    %v3427 = vmul.f32 1.0, %v3426
    %v3428 = vrcp.pop %v3415
    %v3429 = vmul.f32 1.0, %v3428
    %v3430 = vrcp.pop %v3416
    %v3431 = vmul.f32 1.0, %v3430
    %v3432 = vrcp.pop %v3417
    %v3433 = vmul.f32 1.0, %v3432
    %v3435 = vcombine.high %v3276, %v3276
    %v3437 = vunpack.c.l.s4 1983009808
    %v3438 = vunpack.c.0.s8 %v3437
    %v3439 = vlaneseq
    %v3440 = vshrl.u32 %v3439, 7
    %v3441 = vsub.s32 %v3438, %v3440
    %v3442 = vrot.slane %v3276, %v3441
    %v3444 = vunpack.c.l.s4 1983009808
    %v3445 = vunpack.c.0.s8 %v3444
    %v3446 = vlaneseq
    %v3447 = vshrl.u32 %v3446, 7
    %v3448 = vsub.s32 %v3445, %v3447
    %v3449 = vrot.slane %v3435, %v3448
    %v3450 = vcombine.high %v3442, %v3442
    %v3451 = vcombine.high %v3449, %v3449
    %v3452 = vrot.slane %v3442, 7
    %v3453 = vrot.slane %v3450, 7
    %v3454 = vrot.slane %v3449, 7
    %v3455 = vrot.slane %v3451, 7
    %v3464 = vadd.f32 %v2931, %v3452
    %v3465 = vadd.f32 %v2932, %v3442
    %v3466 = vadd.f32 %v2933, %v3453
    %v3467 = vadd.f32 %v2934, %v3450
    %v3468 = vadd.f32 %v2935, %v3454
    %v3469 = vadd.f32 %v2936, %v3449
    %v3470 = vadd.f32 %v2937, %v3455
    %v3471 = vadd.f32 %v2938, %v3451
    %v3472 = vxor.u32 %v3464, 2147483648
    %v3473 = vxor.u32 %v3465, 2147483648
    %v3474 = vxor.u32 %v3466, 2147483648
    %v3475 = vxor.u32 %v3467, 2147483648
    %v3476 = vxor.u32 %v3468, 2147483648
    %v3477 = vxor.u32 %v3469, 2147483648
    %v3478 = vxor.u32 %v3470, 2147483648
    %v3479 = vxor.u32 %v3471, 2147483648
    %v3480 = vmul.f32 %v3472, 1.442695
    %v3481 = vpow.pop %v3480
    %v3482 = vmul.f32 %v3473, 1.442695
    %v3483 = vpow.pop %v3482
    %v3484 = vmul.f32 %v3474, 1.442695
    %v3485 = vpow.pop %v3484
    %v3486 = vmul.f32 %v3475, 1.442695
    %v3487 = vpow.pop %v3486
    %v3488 = vmul.f32 %v3476, 1.442695
    %v3489 = vpow.pop %v3488
    %v3490 = vmul.f32 %v3477, 1.442695
    %v3491 = vpow.pop %v3490
    %v3492 = vmul.f32 %v3478, 1.442695
    %v3493 = vpow.pop %v3492
    %v3494 = vmul.f32 %v3479, 1.442695
    %v3495 = vpow.pop %v3494
    %v3496 = vadd.f32 %v3481, 1.0
    %v3497 = vadd.f32 %v3483, 1.0
    %v3498 = vadd.f32 %v3485, 1.0
    %v3499 = vadd.f32 %v3487, 1.0
    %v3500 = vadd.f32 %v3489, 1.0
    %v3501 = vadd.f32 %v3491, 1.0
    %v3502 = vadd.f32 %v3493, 1.0
    %v3503 = vadd.f32 %v3495, 1.0
    %v3504 = vrcp.pop %v3496
    %v3505 = vmul.f32 1.0, %v3504
    %v3506 = vrcp.pop %v3497
    %v3507 = vmul.f32 1.0, %v3506
    %v3508 = vrcp.pop %v3498
    %v3509 = vmul.f32 1.0, %v3508
    %v3510 = vrcp.pop %v3499
    %v3511 = vmul.f32 1.0, %v3510
    %v3512 = vrcp.pop %v3500
    %v3513 = vmul.f32 1.0, %v3512
    %v3514 = vrcp.pop %v3501
    %v3515 = vmul.f32 1.0, %v3514
    %v3516 = vrcp.pop %v3502
    %v3517 = vmul.f32 1.0, %v3516
    %v3518 = vrcp.pop %v3503
    %v3519 = vmul.f32 1.0, %v3518
    %v3521 = vcombine.high %v3345, %v3345
    %v3523 = vunpack.c.l.s4 1983009808
    %v3524 = vunpack.c.0.s8 %v3523
    %v3525 = vlaneseq
    %v3526 = vshrl.u32 %v3525, 7
    %v3527 = vsub.s32 %v3524, %v3526
    %v3528 = vrot.slane %v3345, %v3527
    %v3530 = vunpack.c.l.s4 1983009808
    %v3531 = vunpack.c.0.s8 %v3530
    %v3532 = vlaneseq
    %v3533 = vshrl.u32 %v3532, 7
    %v3534 = vsub.s32 %v3531, %v3533
    %v3535 = vrot.slane %v3521, %v3534
    %v3536 = vcombine.high %v3528, %v3528
    %v3537 = vcombine.high %v3535, %v3535
    %v3538 = vrot.slane %v3528, 7
    %v3539 = vrot.slane %v3536, 7
    %v3540 = vrot.slane %v3535, 7
    %v3541 = vrot.slane %v3537, 7
    %v3550 = vmul.f32 %v3419, %v3538
    %v3551 = vmul.f32 %v3421, %v3528
    %v3552 = vmul.f32 %v3423, %v3539
    %v3553 = vmul.f32 %v3425, %v3536
    %v3554 = vmul.f32 %v3427, %v3540
    %v3555 = vmul.f32 %v3429, %v3535
    %v3556 = vmul.f32 %v3431, %v3541
    %v3557 = vmul.f32 %v3433, %v3537
    %v3558 = vadd.f32 %v3071, %v3550
    %v3559 = vadd.f32 %v3072, %v3551
    %v3560 = vadd.f32 %v3073, %v3552
    %v3561 = vadd.f32 %v3074, %v3553
    %v3562 = vadd.f32 %v3075, %v3554
    %v3563 = vadd.f32 %v3076, %v3555
    %v3564 = vadd.f32 %v3077, %v3556
    %v3565 = vadd.f32 %v3078, %v3557
    %v3566 = vtanh.pop %v3558
    %v3567 = vtanh.pop %v3559
    %v3568 = vtanh.pop %v3560
    %v3569 = vtanh.pop %v3561
    %v3570 = vtanh.pop %v3562
    %v3571 = vtanh.pop %v3563
    %v3572 = vtanh.pop %v3564
    %v3573 = vtanh.pop %v3565
    %v3574 = vsub.f32 1.0, %v3505
    %v3575 = vsub.f32 1.0, %v3507
    %v3576 = vsub.f32 1.0, %v3509
    %v3577 = vsub.f32 1.0, %v3511
    %v3578 = vsub.f32 1.0, %v3513
    %v3579 = vsub.f32 1.0, %v3515
    %v3580 = vsub.f32 1.0, %v3517
    %v3581 = vsub.f32 1.0, %v3519
    %v3582 = vmul.f32 %v3574, %v3566
    %v3583 = vmul.f32 %v3575, %v3567
    %v3584 = vmul.f32 %v3576, %v3568
    %v3585 = vmul.f32 %v3577, %v3569
    %v3586 = vmul.f32 %v3578, %v3570
    %v3587 = vmul.f32 %v3579, %v3571
    %v3588 = vmul.f32 %v3580, %v3572
    %v3589 = vmul.f32 %v3581, %v3573
    %v3590 = vrot.slane %v3151, 7
    %v3591 = vrot.slane %v3152, 7
    %v3592 = vrot.slane %v3153, 7
    %v3593 = vrot.slane %v3154, 7
    %v3594 = vrot.slane %v3155, 7
    %v3595 = vrot.slane %v3156, 7
    %v3596 = vrot.slane %v3157, 7
    %v3597 = vrot.slane %v3158, 7
    %v3606 = vmul.f32 %v3505, %v3590
    %v3607 = vmul.f32 %v3507, %v3591
    %v3608 = vmul.f32 %v3509, %v3592
    %v3609 = vmul.f32 %v3511, %v3593
    %v3610 = vmul.f32 %v3513, %v3594
    %v3611 = vmul.f32 %v3515, %v3595
    %v3612 = vmul.f32 %v3517, %v3596
    %v3613 = vmul.f32 %v3519, %v3597
    %v3614 = vadd.f32 %v3582, %v3606
    %v3615 = vadd.f32 %v3583, %v3607
    %v3616 = vadd.f32 %v3584, %v3608
    %v3617 = vadd.f32 %v3585, %v3609
    %v3618 = vadd.f32 %v3586, %v3610
    %v3619 = vadd.f32 %v3587, %v3611
    %v3620 = vadd.f32 %v3588, %v3612
    %v3621 = vadd.f32 %v3589, %v3613
    %v3622 = vld [vmem:[%s7] sm:$0x1]
    %v3624 = vlaneseq
    %v3625 = vshrl.u32 %v3624, 7
    %v3626 = vsub.s32 0, %v3625
    %v3627 = vrot.slane %v3622, %v3626
    %v3628 = vcombine.high %v3627, %v3627
    %v3630 = vunpack.c.l.s4 1983009808
    %v3631 = vunpack.c.0.s8 %v3630
    %v3632 = vlaneseq
    %v3633 = vshrl.u32 %v3632, 7
    %v3634 = vsub.s32 %v3631, %v3633
    %v3635 = vrot.slane %v3627, %v3634
    %v3637 = vunpack.c.l.s4 1983009808
    %v3638 = vunpack.c.0.s8 %v3637
    %v3639 = vlaneseq
    %v3640 = vshrl.u32 %v3639, 7
    %v3641 = vsub.s32 %v3638, %v3640
    %v3642 = vrot.slane %v3628, %v3641
    %v3643 = vcombine.high %v3635, %v3635
    %v3644 = vcombine.high %v3642, %v3642
    %v3645 = vrot.slane %v3635, 7
    %v3646 = vrot.slane %v3643, 7
    %v3647 = vrot.slane %v3642, 7
    %v3648 = vrot.slane %v3644, 7
    %v3657 = vmul.f32 %v3614, %v3645
    %v3658 = vmul.f32 %v3615, %v3635
    %v3659 = vmul.f32 %v3616, %v3646
    %v3660 = vmul.f32 %v3617, %v3643
    %v3661 = vmul.f32 %v3618, %v3647
    %v3662 = vmul.f32 %v3619, %v3642
    %v3663 = vmul.f32 %v3620, %v3648
    %v3664 = vmul.f32 %v3621, %v3644
    %v3665 = vld [vmem:[%s8] sm:$0x1]
    %v3667 = vlaneseq
    %v3668 = vshrl.u32 %v3667, 7
    %v3669 = vsub.s32 0, %v3668
    %v3670 = vrot.slane %v3665, %v3669
    %v3671 = vcombine.high %v3670, %v3670
    %v3673 = vunpack.c.l.s4 1983009808
    %v3674 = vunpack.c.0.s8 %v3673
    %v3675 = vlaneseq
    %v3676 = vshrl.u32 %v3675, 7
    %v3677 = vsub.s32 %v3674, %v3676
    %v3678 = vrot.slane %v3670, %v3677
    %v3680 = vunpack.c.l.s4 1983009808
    %v3681 = vunpack.c.0.s8 %v3680
    %v3682 = vlaneseq
    %v3683 = vshrl.u32 %v3682, 7
    %v3684 = vsub.s32 %v3681, %v3683
    %v3685 = vrot.slane %v3671, %v3684
    %v3686 = vcombine.high %v3678, %v3678
    %v3687 = vcombine.high %v3685, %v3685
    %v3688 = vrot.slane %v3678, 7
    %v3689 = vrot.slane %v3686, 7
    %v3690 = vrot.slane %v3685, 7
    %v3691 = vrot.slane %v3687, 7
    %v3700 = vadd.f32 %v3657, %v3688
    %v3701 = vadd.f32 %v3658, %v3678
    %v3702 = vadd.f32 %v3659, %v3689
    %v3703 = vadd.f32 %v3660, %v3686
    %v3704 = vadd.f32 %v3661, %v3690
    %v3705 = vadd.f32 %v3662, %v3685
    %v3706 = vadd.f32 %v3663, %v3691
    %v3707 = vadd.f32 %v3664, %v3687
    %v3708 = vld [vmem:[%s9] sm:$0xff]
    %v3709 = vld [vmem:[%s9 + $0x8] sm:$0xff]
    %v3710 = vld [vmem:[%s9 + $0x10] sm:$0xff]
    %v3711 = vld [vmem:[%s9 + $0x18] sm:$0xff]
    %v3712 = vld [vmem:[%s9 + $0x20] sm:$0xff]
    %v3713 = vld [vmem:[%s9 + $0x28] sm:$0xff]
    %v3714 = vld [vmem:[%s9 + $0x30] sm:$0xff]
    %v3715 = vld [vmem:[%s9 + $0x38] sm:$0xff]
    %v3716 = vld [vmem:[%s9 + $0x40] sm:$0xff]
    %v3717 = vld [vmem:[%s9 + $0x48] sm:$0xff]
    %v3718 = vld [vmem:[%s9 + $0x50] sm:$0xff]
    %v3719 = vld [vmem:[%s9 + $0x58] sm:$0xff]
    %v3720 = vld [vmem:[%s9 + $0x60] sm:$0xff]
    %v3721 = vld [vmem:[%s9 + $0x68] sm:$0xff]
    %v3722 = vld [vmem:[%s9 + $0x70] sm:$0xff]
    %v3723 = vld [vmem:[%s9 + $0x78] sm:$0xff]
    %v3724 = vld [vmem:[%s10] sm:$0x1]
    %v3726 = vlaneseq
    %v3727 = vshrl.u32 %v3726, 7
    %v3728 = vsub.s32 0, %v3727
    %v3729 = vrot.slane %v3724, %v3728
    %v3739 = vlaneseq
    %v3740 = vshrl.u32 %v3739, 7
    %v3741 = vsub.s32 1, %v3740
    %v3742 = vrot.slane %v3700, %v3741
    %v3743 = vlaneseq
    %v3744 = vshrl.u32 %v3743, 7
    %v3745 = vsub.s32 1, %v3744
    %v3746 = vrot.slane %v3701, %v3745
    %v3747 = vlaneseq
    %v3748 = vshrl.u32 %v3747, 7
    %v3749 = vsub.s32 1, %v3748
    %v3750 = vrot.slane %v3702, %v3749
    %v3751 = vlaneseq
    %v3752 = vshrl.u32 %v3751, 7
    %v3753 = vsub.s32 1, %v3752
    %v3754 = vrot.slane %v3703, %v3753
    %v3755 = vlaneseq
    %v3756 = vshrl.u32 %v3755, 7
    %v3757 = vsub.s32 1, %v3756
    %v3758 = vrot.slane %v3704, %v3757
    %v3759 = vlaneseq
    %v3760 = vshrl.u32 %v3759, 7
    %v3761 = vsub.s32 1, %v3760
    %v3762 = vrot.slane %v3705, %v3761
    %v3763 = vlaneseq
    %v3764 = vshrl.u32 %v3763, 7
    %v3765 = vsub.s32 1, %v3764
    %v3766 = vrot.slane %v3706, %v3765
    %v3767 = vlaneseq
    %v3768 = vshrl.u32 %v3767, 7
    %v3769 = vsub.s32 1, %v3768
    %v3770 = vrot.slane %v3707, %v3769
    %v3771 = vsel %vm1260, %v3746, %v3742
    %v3772 = vsel %vm1262, %v3750, %v3771
    %v3773 = vsel %vm1264, %v3754, %v3772
    %v3774 = vsel %vm1266, %v3758, %v3773
    %v3775 = vsel %vm1268, %v3762, %v3774
    %v3776 = vsel %vm1270, %v3766, %v3775
    %v3777 = vsel %vm1272, %v3770, %v3776
    %3779 = vmatprep.subr.mxu0 0.0
    %3780 = vmatpush1.msra.mxu0 %v3708
    %3781 = vmatprep.subr.mxu0 0.0
    %3782 = vmatpush1.msra.mxu0 %v3709
    %3783 = vmatprep.subr.mxu0 0.0
    %3784 = vmatpush1.msra.mxu0 %v3710
    %3785 = vmatprep.subr.mxu0 0.0
    %3786 = vmatpush1.msra.mxu0 %v3711
    %3787 = vmatprep.subr.mxu0 0.0
    %3788 = vmatpush1.msra.mxu0 %v3712
    %3789 = vmatprep.subr.mxu0 0.0
    %3790 = vmatpush1.msra.mxu0 %v3713
    %3791 = vmatprep.subr.mxu0 0.0
    %3792 = vmatpush1.msra.mxu0 %v3714
    %3793 = vmatprep.subr.mxu0 0.0
    %3794 = vmatpush1.msra.mxu0 %v3715
    %3795 = vmatprep.subr.mxu0 0.0
    %3796 = vmatpush1.msra.mxu0 %v3716
    %3797 = vmatprep.subr.mxu0 0.0
    %3798 = vmatpush1.msra.mxu0 %v3717
    %3799 = vmatprep.subr.mxu0 0.0
    %3800 = vmatpush1.msra.mxu0 %v3718
    %3801 = vmatprep.subr.mxu0 0.0
    %3802 = vmatpush1.msra.mxu0 %v3719
    %3803 = vmatprep.subr.mxu0 0.0
    %3804 = vmatpush1.msra.mxu0 %v3720
    %3805 = vmatprep.subr.mxu0 0.0
    %3806 = vmatpush1.msra.mxu0 %v3721
    %3807 = vmatprep.subr.mxu0 0.0
    %3808 = vmatpush1.msra.mxu0 %v3722
    %3809 = vmatprep.subr.mxu0 0.0
    %3810 = vmatpush1.msra.mxu0 %v3723
    %3811 = vmatprep.subr.mxu0 0.0
    %3812 = vmatpush1.msra.mxu0 0.0
    %3813 = vmatprep.subr.mxu0 0.0
    %3814 = vmatpush1.msra.mxu0 0.0
    %3815 = vmatprep.subr.mxu0 0.0
    %3816 = vmatpush1.msra.mxu0 0.0
    %3817 = vmatprep.subr.mxu0 0.0
    %3818 = vmatpush1.msra.mxu0 0.0
    %3819 = vmatprep.subr.mxu0 0.0
    %3820 = vmatpush1.msra.mxu0 0.0
    %3821 = vmatprep.subr.mxu0 0.0
    %3822 = vmatpush1.msra.mxu0 0.0
    %3823 = vmatprep.subr.mxu0 0.0
    %3824 = vmatpush1.msra.mxu0 0.0
    %3825 = vmatprep.subr.mxu0 0.0
    %3826 = vmatpush1.msra.mxu0 0.0
    %3827 = vmatprep.subr.mxu0 0.0
    %3828 = vmatpush1.msra.mxu0 0.0
    %3829 = vmatprep.subr.mxu0 0.0
    %3830 = vmatpush1.msra.mxu0 0.0
    %3831 = vmatprep.subr.mxu0 0.0
    %3832 = vmatpush1.msra.mxu0 0.0
    %3833 = vmatprep.subr.mxu0 0.0
    %3834 = vmatpush1.msra.mxu0 0.0
    %3835 = vmatprep.subr.mxu0 0.0
    %3836 = vmatpush1.msra.mxu0 0.0
    %3837 = vmatprep.subr.mxu0 0.0
    %3838 = vmatpush1.msra.mxu0 0.0
    %3839 = vmatprep.subr.mxu0 0.0
    %3840 = vmatpush1.msra.mxu0 0.0
    %3841 = vmatprep.subr.mxu0 0.0
    %3842 = vmatpush1.msra.mxu0 0.0
    %3843 = vmatprep.mubr.f32.mxu0 0.0
    %3844 = vmatmul.mubr.f32.gmra.mrb[0].mxu0 %v3777
    %v3845 = vpop.f32.mrb[0].mxu0
    %v3846 = vadd.f32 %v3729, %v3845
    %v3847 = vpop.f32.mrb[0].mxu0
    %3848 = vdwg.mxu0
    %v3849 = vtanh.pop %v3846
    %3850 = vmax.xlane.f32.xlu0 %v3849
    %v3851 = vpop.xlane.xlu0 %3850
    %v3852 = vsub.f32 %v3849, %v3851
    %v3853 = vmul.f32 %v3852, 1.442695
    %v3854 = vpow.pop %v3853
    %3855 = vadd.xlane.f32.xlu0 %v3854
    %v3856 = vpop.xlane.xlu0 %3855
    %v3857 = vrcp.pop %v3856
    %v3858 = vmul.f32 %v3854, %v3857
    %v3860 = vcombine.high %v3858, %v3858
    %v3862 = vunpack.c.l.s4 1983009808
    %v3863 = vunpack.c.0.s8 %v3862
    %v3864 = vlaneseq
    %v3865 = vshrl.u32 %v3864, 7
    %v3866 = vsub.s32 %v3863, %v3865
    %v3867 = vrot.slane %v3858, %v3866
    %v3869 = vunpack.c.l.s4 1983009808
    %v3870 = vunpack.c.0.s8 %v3869
    %v3871 = vlaneseq
    %v3872 = vshrl.u32 %v3871, 7
    %v3873 = vsub.s32 %v3870, %v3872
    %v3874 = vrot.slane %v3860, %v3873
    %v3875 = vcombine.high %v3867, %v3867
    %v3876 = vcombine.high %v3874, %v3874
    %v3877 = vrot.slane %v3867, 7
    %v3878 = vrot.slane %v3875, 7
    %v3879 = vrot.slane %v3874, 7
    %v3880 = vrot.slane %v3876, 7
    %v3889 = vmul.f32 %v3700, %v3877
    %v3890 = vmul.f32 %v3701, %v3867
    %v3891 = vmul.f32 %v3702, %v3878
    %v3892 = vmul.f32 %v3703, %v3875
    %v3893 = vmul.f32 %v3704, %v3879
    %v3894 = vmul.f32 %v3705, %v3874
    %v3895 = vmul.f32 %v3706, %v3880
    %v3896 = vmul.f32 %v3707, %v3876
    %v3897 = vld [vmem:[%s11] sm:$0x1]
    %v3899 = vlaneseq
    %v3900 = vshrl.u32 %v3899, 7
    %v3901 = vsub.s32 0, %v3900
    %v3902 = vrot.slane %v3897, %v3901
    %v3903 = vcombine.high %v3902, %v3902
    %v3905 = vunpack.c.l.s4 1983009808
    %v3906 = vunpack.c.0.s8 %v3905
    %v3907 = vlaneseq
    %v3908 = vshrl.u32 %v3907, 7
    %v3909 = vsub.s32 %v3906, %v3908
    %v3910 = vrot.slane %v3902, %v3909
    %v3912 = vunpack.c.l.s4 1983009808
    %v3913 = vunpack.c.0.s8 %v3912
    %v3914 = vlaneseq
    %v3915 = vshrl.u32 %v3914, 7
    %v3916 = vsub.s32 %v3913, %v3915
    %v3917 = vrot.slane %v3903, %v3916
    %v3918 = vcombine.high %v3910, %v3910
    %v3919 = vcombine.high %v3917, %v3917
    %v3920 = vrot.slane %v3910, 7
    %v3921 = vrot.slane %v3918, 7
    %v3922 = vrot.slane %v3917, 7
    %v3923 = vrot.slane %v3919, 7
    %v3932 = vmul.f32 %v3889, %v3920
    %v3933 = vmul.f32 %v3890, %v3910
    %v3934 = vmul.f32 %v3891, %v3921
    %v3935 = vmul.f32 %v3892, %v3918
    %v3936 = vmul.f32 %v3893, %v3922
    %v3937 = vmul.f32 %v3894, %v3917
    %v3938 = vmul.f32 %v3895, %v3923
    %v3939 = vmul.f32 %v3896, %v3919
    %v3948 = vlaneseq
    %v3949 = vshrl.u32 %v3948, 7
    %v3950 = vsub.s32 1, %v3949
    %v3951 = vrot.slane %v3932, %v3950
    %v3952 = vlaneseq
    %v3953 = vshrl.u32 %v3952, 7
    %v3954 = vsub.s32 1, %v3953
    %v3955 = vrot.slane %v3933, %v3954
    %v3956 = vlaneseq
    %v3957 = vshrl.u32 %v3956, 7
    %v3958 = vsub.s32 1, %v3957
    %v3959 = vrot.slane %v3934, %v3958
    %v3960 = vlaneseq
    %v3961 = vshrl.u32 %v3960, 7
    %v3962 = vsub.s32 1, %v3961
    %v3963 = vrot.slane %v3935, %v3962
    %v3964 = vlaneseq
    %v3965 = vshrl.u32 %v3964, 7
    %v3966 = vsub.s32 1, %v3965
    %v3967 = vrot.slane %v3936, %v3966
    %v3968 = vlaneseq
    %v3969 = vshrl.u32 %v3968, 7
    %v3970 = vsub.s32 1, %v3969
    %v3971 = vrot.slane %v3937, %v3970
    %v3972 = vlaneseq
    %v3973 = vshrl.u32 %v3972, 7
    %v3974 = vsub.s32 1, %v3973
    %v3975 = vrot.slane %v3938, %v3974
    %v3976 = vlaneseq
    %v3977 = vshrl.u32 %v3976, 7
    %v3978 = vsub.s32 1, %v3977
    %v3979 = vrot.slane %v3939, %v3978
    %v3980 = vsel %vm1262, %v3955, %v3951
    %v3981 = vsel %vm1264, %v3959, %v3980
    %v3982 = vsel %vm1266, %v3963, %v3981
    %v3983 = vsel %vm1268, %v3967, %v3982
    %v3984 = vsel %vm1270, %v3971, %v3983
    %v3985 = vsel %vm1272, %v3975, %v3984
    %vm3988 = vcmask 1047553
    %v3989 = vsel %vm3988, %v3985, 0.0
    %3990 = vadd.xlane.f32.xlu0 %v3989
    %v3991 = vpop.xlane.xlu0 %3990
    %vm3992 = vcmask 1040384
    %v3993 = vsel %vm3992, %v3979, 0.0
    %3994 = vadd.xlane.f32.xlu0 %v3993
    %v3995 = vpop.xlane.xlu0 %3994
    %v3996 = vld [vmem:[#allocation2] sm:$0x1]
    %v3998 = vlaneseq
    %v3999 = vshrl.u32 %v3998, 7
    %v4000 = vsub.s32 0, %v3999
    %v4001 = vrot.slane %v3996, %v4000
    %v4003 = vadd.f32 %v3991, %v4001
    %v4004 = vadd.f32 %v3995, %v4001
    %vm4005 = vcmask 7169
    %4006 = vst.msk [vmem:[%s13 - $0x1] sm:$0xfe] %vm4005, %v4003
    %vm4007 = vcmask 0
    %4008 = vst.msk [vmem:[%s13 + $0x7] sm:$0x1] %vm4007, %v4004
    // Predicated region
    $region62: #{daily_model_forward.1} parent=1 // pred_check
      _
    $region63: #{daily_model_forward.1} parent=1 // pred_check_branch
      %4010 = sbr.rel (0) target = $region65
    $region64: #{daily_model_forward.1} parent=1 // pred_region
      _
    $region65: #{daily_model_forward.1} parent=1 // pred_fallthru
      _
    // Predicated region
    $region66: #{daily_model_forward.1} parent=1 // pred_check
      _
    $region67: #{daily_model_forward.1} parent=1 // pred_check_branch
      %4012 = sbr.rel (0) target = $region69
    $region68: #{daily_model_forward.1} parent=1 // pred_region
      _
    $region69: #{daily_model_forward.1} parent=1 // pred_fallthru
      _
    %4013 = vsyncpa [#allocation4], 1
    %4014 = vsyncpa [#allocation6], 1

</llo_original>
